<compile_context>
chip_gen: v7x
topology: tpu7x:2x2x1
jax: 0.10.0
libtpu: 0.0.40
codegen_flags: <defaults>
</compile_context>

<pallas_src>
import jax
import jax.numpy as jnp
from jax.experimental import pallas as pl
from jax.experimental.pallas import tpu as pltpu

DIMS = (784, 512, 256, 128, 64, 10)
H4_PAD = 128    # layer-4 features padded 64 -> 128 (lane-dense intermediates, full MXU N/K)
OUT_PAD = 128   # output features padded 10 -> 128 (lane-dense, unmasked writeback)


def _round_up(x, m):
    return (x + m - 1) // m * m


def _pick_tile(B, batch_tile):
    """Pick the batch tile.

    Small batches get a single tile (rounded to 8 sublanes, minimal padding). Larger batches
    pick the biggest power-of-two tile <= batch_tile with <= ~12.5% batch-pad waste, preferring
    tiles that give the grid >= 4 steps (DMA/compute pipelining, even 2-TC split on v7x)."""
    B8 = _round_up(B, 8)
    if B8 <= 256:
        return B8
    cands = []
    t = batch_tile
    while t >= 64:
        cands.append(t)
        t //= 2
    for need_steps in (4, 1):
        for t in cands:
            padded = _round_up(B, t)
            if (padded - B) * 8 <= padded and padded // t >= need_steps:
                return t
    # Fallback: least total padding, then largest tile.
    return min(cands, key=lambda t: (_round_up(B, t), -t))


def mlp_kernel(x_ref,
               w1_ref, b1_ref,
               w2_ref, b2_ref,
               w3_ref, b3_ref,
               w4_ref, b4_ref,
               w5_ref, b5_ref,
               out_ref):
    # bf16 MXU operands + f32 accumulation; bias add / ReLU stay f32 on the VPU.
    h = jnp.dot(x_ref[...].astype(jnp.bfloat16), w1_ref[...],
                preferred_element_type=jnp.float32) + b1_ref[...]
    h = jnp.maximum(h, 0.0)
    h = jnp.dot(h.astype(jnp.bfloat16), w2_ref[...],
                preferred_element_type=jnp.float32) + b2_ref[...]
    h = jnp.maximum(h, 0.0)
    h = jnp.dot(h.astype(jnp.bfloat16), w3_ref[...],
                preferred_element_type=jnp.float32) + b3_ref[...]
    h = jnp.maximum(h, 0.0)
    h = jnp.dot(h.astype(jnp.bfloat16), w4_ref[...],
                preferred_element_type=jnp.float32) + b4_ref[...]
    h = jnp.maximum(h, 0.0)
    # layer 5: Linear, no activation (features zero-padded 10 -> 128).
    out = jnp.dot(h.astype(jnp.bfloat16), w5_ref[...],
                  preferred_element_type=jnp.float32) + b5_ref[...]
    out_ref[...] = out.astype(out_ref.dtype)


def init_params(key):
    """f32 master params mimicking torch.nn.Linear default U(-1/sqrt(fan_in), 1/sqrt(fan_in)).

    Weights stored as (in_features, out_features) so the kernel computes x @ W."""
    params = []
    for i in range(5):
        fan_in, fan_out = DIMS[i], DIMS[i + 1]
        key, kw, kb = jax.random.split(key, 3)
        bound = 1.0 / jnp.sqrt(jnp.float32(fan_in))
        w = jax.random.uniform(kw, (fan_in, fan_out), jnp.float32, -bound, bound)
        b = jax.random.uniform(kb, (1, fan_out), jnp.float32, -bound, bound)
        params += [w, b]
    return params


def prepare_kernel_params(params):
    """One-time conversion of the f32 master params into kernel layout:
    bf16 weights, layer-4 features padded 64 -> 128, output features padded 10 -> 128."""
    w1, b1, w2, b2, w3, b3, w4, b4, w5, b5 = params
    w4p = jnp.pad(w4, ((0, 0), (0, H4_PAD - DIMS[4]))).astype(jnp.bfloat16)
    b4p = jnp.pad(b4, ((0, 0), (0, H4_PAD - DIMS[4])))
    w5p = jnp.pad(w5, ((0, H4_PAD - DIMS[4]), (0, OUT_PAD - DIMS[5]))).astype(jnp.bfloat16)
    b5p = jnp.pad(b5, ((0, 0), (0, OUT_PAD - DIMS[5])))
    return [w1.astype(jnp.bfloat16), b1,
            w2.astype(jnp.bfloat16), b2,
            w3.astype(jnp.bfloat16), b3,
            w4p, b4p, w5p, b5p]


def net_forward(x_nchw, kern_params, *, batch_tile=512):
    # x.view(-1, 784); x stays f32 in HBM (cast to bf16 in-kernel before the first dot).
    x = x_nchw.reshape(-1, DIMS[0]).astype(jnp.float32)
    B = x.shape[0]

    tile = _pick_tile(B, batch_tile)
    padded_B = _round_up(B, tile)
    if padded_B != B:   # pad batch rows only when the tile doesn't divide B
        x = jnp.pad(x, ((0, padded_B - B), (0, 0)))

    layer_shapes = [(DIMS[0], DIMS[1]), (DIMS[1], DIMS[2]), (DIMS[2], DIMS[3]),
                    (DIMS[3], H4_PAD), (H4_PAD, OUT_PAD)]

    # x / out tiled along the batch grid axis; weights & biases are full, grid-invariant,
    # single-buffered blocks (constant index_map -> never re-fetched).
    x_spec = pl.BlockSpec((tile, DIMS[0]), lambda i: (i, 0))
    param_specs = []
    for fan_in, fan_out in layer_shapes:
        param_specs.append(pl.BlockSpec((fan_in, fan_out), lambda i: (0, 0),
                                        pipeline_mode=pl.Buffered(1)))
        param_specs.append(pl.BlockSpec((1, fan_out), lambda i: (0, 0),
                                        pipeline_mode=pl.Buffered(1)))
    out_spec = pl.BlockSpec((tile, OUT_PAD), lambda i: (i, 0))

    flops = 2 * padded_B * sum(k * n for k, n in layer_shapes)
    bytes_accessed = (padded_B * DIMS[0] * 4                      # x (f32)
                      + sum(k * n * 2 for k, n in layer_shapes)    # weights (bf16)
                      + sum(n * 4 for _, n in layer_shapes)        # biases (f32)
                      + padded_B * OUT_PAD * 2)                    # output (bf16)

    out = pl.pallas_call(
        mlp_kernel,
        out_shape=jax.ShapeDtypeStruct((padded_B, OUT_PAD), jnp.bfloat16),
        grid_spec=pltpu.PrefetchScalarGridSpec(
            num_scalar_prefetch=0,
            grid=(padded_B // tile,),
            in_specs=[x_spec] + param_specs,
            out_specs=out_spec,
        ),
        compiler_params=pltpu.CompilerParams(
            dimension_semantics=("parallel",),      # batch tiles shard across TCs (v7x)
            vmem_limit_bytes=48 * 1024 * 1024,      # headroom; safe under v7x's 64 MiB VMEM
        ),
        cost_estimate=pl.CostEstimate(flops=flops, transcendentals=0,
                                      bytes_accessed=bytes_accessed),
    )(x, *kern_params)

    # Strip batch padding and the 10 -> 128 output-feature padding; return f32 logits.
    return out[:B, :DIMS[-1]].astype(jnp.float32)


def net_forward_ref(x_nchw, params):
    """Pure-JAX f32 reference matching the PyTorch module exactly."""
    h = x_nchw.reshape(-1, DIMS[0]).astype(jnp.float32)
    for li in range(4):
        w, b = params[2 * li], params[2 * li + 1]
        h = jnp.maximum(h @ w + b, 0.0)
    w, b = params[8], params[9]
    return h @ w + b


def _check(out, ref, name):
    # bf16 matmul operands + bf16 output store -> ~1% intentional drift vs the f32 reference.
    rel = jnp.linalg.norm(out - ref) / (jnp.linalg.norm(ref) + 1e-12)
    assert rel < 3e-2, f"{name}: relative error {rel} too large"
    assert jnp.allclose(out, ref, atol=5e-2, rtol=5e-2), f"{name}: mismatch vs reference"


if __name__ == "__main__":
    key = jax.random.PRNGKey(0)
    key, kx1, kx2, kx3 = jax.random.split(key, 4)
    params = init_params(key)
    kern_params = prepare_kernel_params(params)

    fwd = jax.jit(lambda x, p: net_forward(x, p))

    # Multi-tile run: batch 512 -> tile 128, grid of 4 (pipelining + even 2-TC split).
    x_big = jax.random.normal(kx1, (512, 1, 28, 28), jnp.float32)
    out_big = jax.block_until_ready(fwd(x_big, kern_params))
    assert out_big.shape == (512, 10)
    _check(out_big, net_forward_ref(x_big, params), "batch=512")

    # Awkward batch size: exercises the low-waste tile pick + tail padding (tile 64, grid 5).
    x_odd = jax.random.normal(kx2, (300, 1, 28, 28), jnp.float32)
    out_odd = jax.block_until_ready(fwd(x_odd, kern_params))
    assert out_odd.shape == (300, 10)
    _check(out_odd, net_forward_ref(x_odd, params), "batch=300")

    # Small MNIST-like batch: single 8-row tile.
    x_small = jax.random.normal(kx3, (8, 1, 28, 28), jnp.float32)
    out_small = jax.block_until_ready(fwd(x_small, kern_params))
    assert out_small.shape == (8, 10)
    _check(out_small, net_forward_ref(x_small, params), "batch=8")

    print("KERNEL_OK")
</pallas_src>

<mosaic_0001>
module attributes {stable_mosaic.version = 11 : i64} {
  func.func @mlp_kernel(%arg0: i32, %arg1: memref<128x784xf32, #tpu.memory_space<vmem>>, %arg2: memref<784x512xbf16, #tpu.memory_space<vmem>>, %arg3: memref<1x512xf32, #tpu.memory_space<vmem>>, %arg4: memref<512x256xbf16, #tpu.memory_space<vmem>>, %arg5: memref<1x256xf32, #tpu.memory_space<vmem>>, %arg6: memref<256x128xbf16, #tpu.memory_space<vmem>>, %arg7: memref<1x128xf32, #tpu.memory_space<vmem>>, %arg8: memref<128x128xbf16, #tpu.memory_space<vmem>>, %arg9: memref<1x128xf32, #tpu.memory_space<vmem>>, %arg10: memref<128x128xbf16, #tpu.memory_space<vmem>>, %arg11: memref<1x128xf32, #tpu.memory_space<vmem>>, %arg12: memref<128x128xbf16, #tpu.memory_space<vmem>>) attributes {dimension_semantics = [#tpu.dimension_semantics<parallel>], iteration_bounds = array<i64: 4>, scalar_prefetch = 0 : i64, scratch_operands = 0 : i64, tpu.core_type = #tpu.core_type<tc>, window_params = [{transform_indices = @transform_0, window_bounds = array<i64: 128, 784>}, {pipeline_mode = #tpu.pipeline_mode<synchronous>, transform_indices = @transform_1, window_bounds = array<i64: 784, 512>}, {pipeline_mode = #tpu.pipeline_mode<synchronous>, transform_indices = @transform_2, window_bounds = array<i64: 1, 512>}, {pipeline_mode = #tpu.pipeline_mode<synchronous>, transform_indices = @transform_3, window_bounds = array<i64: 512, 256>}, {pipeline_mode = #tpu.pipeline_mode<synchronous>, transform_indices = @transform_4, window_bounds = array<i64: 1, 256>}, {pipeline_mode = #tpu.pipeline_mode<synchronous>, transform_indices = @transform_5, window_bounds = array<i64: 256, 128>}, {pipeline_mode = #tpu.pipeline_mode<synchronous>, transform_indices = @transform_6, window_bounds = array<i64: 1, 128>}, {pipeline_mode = #tpu.pipeline_mode<synchronous>, transform_indices = @transform_7, window_bounds = array<i64: 128, 128>}, {pipeline_mode = #tpu.pipeline_mode<synchronous>, transform_indices = @transform_8, window_bounds = array<i64: 1, 128>}, {pipeline_mode = #tpu.pipeline_mode<synchronous>, transform_indices = @transform_9, window_bounds = array<i64: 128, 128>}, {pipeline_mode = #tpu.pipeline_mode<synchronous>, transform_indices = @transform_10, window_bounds = array<i64: 1, 128>}, {transform_indices = @transform_11, window_bounds = array<i64: 128, 128>}]} {
    %c0 = arith.constant 0 : index
    %c0_0 = arith.constant 0 : index
    %0 = vector.load %arg1[%c0, %c0_0] : memref<128x784xf32, #tpu.memory_space<vmem>>, vector<128x784xf32>
    %1 = arith.truncf %0 : vector<128x784xf32> to vector<128x784xbf16>
    %c0_1 = arith.constant 0 : index
    %c0_2 = arith.constant 0 : index
    %2 = vector.load %arg2[%c0_1, %c0_2] : memref<784x512xbf16, #tpu.memory_space<vmem>>, vector<784x512xbf16>
    %cst = arith.constant dense<0.000000e+00> : vector<128x512xf32>
    %3 = tpu.matmul %1, %2, %cst {dimension_numbers = #tpu.dot_dimension_numbers<[1], [0], [0], [1], [0, 0, 1, 1], [], []>} : vector<128x784xbf16>, vector<784x512xbf16>, vector<128x512xf32> -> vector<128x512xf32>
    %c0_3 = arith.constant 0 : index
    %c0_4 = arith.constant 0 : index
    %4 = vector.load %arg3[%c0_3, %c0_4] : memref<1x512xf32, #tpu.memory_space<vmem>>, vector<1x512xf32>
    %5 = vector.broadcast %4 : vector<1x512xf32> to vector<128x512xf32>
    %6 = arith.addf %3, %5 : vector<128x512xf32>
    %cst_5 = arith.constant 0.000000e+00 : f32
    %7 = vector.broadcast %cst_5 : f32 to vector<128x512xf32>
    %8 = arith.maximumf %6, %7 : vector<128x512xf32>
    %9 = arith.truncf %8 : vector<128x512xf32> to vector<128x512xbf16>
    %c0_6 = arith.constant 0 : index
    %c0_7 = arith.constant 0 : index
    %10 = vector.load %arg4[%c0_6, %c0_7] : memref<512x256xbf16, #tpu.memory_space<vmem>>, vector<512x256xbf16>
    %cst_8 = arith.constant dense<0.000000e+00> : vector<128x256xf32>
    %11 = tpu.matmul %9, %10, %cst_8 {dimension_numbers = #tpu.dot_dimension_numbers<[1], [0], [0], [1], [0, 0, 1, 1], [], []>} : vector<128x512xbf16>, vector<512x256xbf16>, vector<128x256xf32> -> vector<128x256xf32>
    %c0_9 = arith.constant 0 : index
    %c0_10 = arith.constant 0 : index
    %12 = vector.load %arg5[%c0_9, %c0_10] : memref<1x256xf32, #tpu.memory_space<vmem>>, vector<1x256xf32>
    %13 = vector.broadcast %12 : vector<1x256xf32> to vector<128x256xf32>
    %14 = arith.addf %11, %13 : vector<128x256xf32>
    %cst_11 = arith.constant 0.000000e+00 : f32
    %15 = vector.broadcast %cst_11 : f32 to vector<128x256xf32>
    %16 = arith.maximumf %14, %15 : vector<128x256xf32>
    %17 = arith.truncf %16 : vector<128x256xf32> to vector<128x256xbf16>
    %c0_12 = arith.constant 0 : index
    %c0_13 = arith.constant 0 : index
    %18 = vector.load %arg6[%c0_12, %c0_13] : memref<256x128xbf16, #tpu.memory_space<vmem>>, vector<256x128xbf16>
    %cst_14 = arith.constant dense<0.000000e+00> : vector<128x128xf32>
    %19 = tpu.matmul %17, %18, %cst_14 {dimension_numbers = #tpu.dot_dimension_numbers<[1], [0], [0], [1], [0, 0, 1, 1], [], []>} : vector<128x256xbf16>, vector<256x128xbf16>, vector<128x128xf32> -> vector<128x128xf32>
    %c0_15 = arith.constant 0 : index
    %c0_16 = arith.constant 0 : index
    %20 = vector.load %arg7[%c0_15, %c0_16] : memref<1x128xf32, #tpu.memory_space<vmem>>, vector<1x128xf32>
    %21 = vector.broadcast %20 : vector<1x128xf32> to vector<128x128xf32>
    %22 = arith.addf %19, %21 : vector<128x128xf32>
    %cst_17 = arith.constant 0.000000e+00 : f32
    %23 = vector.broadcast %cst_17 : f32 to vector<128x128xf32>
    %24 = arith.maximumf %22, %23 : vector<128x128xf32>
    %25 = arith.truncf %24 : vector<128x128xf32> to vector<128x128xbf16>
    %c0_18 = arith.constant 0 : index
    %c0_19 = arith.constant 0 : index
    %26 = vector.load %arg8[%c0_18, %c0_19] : memref<128x128xbf16, #tpu.memory_space<vmem>>, vector<128x128xbf16>
    %cst_20 = arith.constant dense<0.000000e+00> : vector<128x128xf32>
    %27 = tpu.matmul %25, %26, %cst_20 {dimension_numbers = #tpu.dot_dimension_numbers<[1], [0], [0], [1], [0, 0, 1, 1], [], []>} : vector<128x128xbf16>, vector<128x128xbf16>, vector<128x128xf32> -> vector<128x128xf32>
    %c0_21 = arith.constant 0 : index
    %c0_22 = arith.constant 0 : index
    %28 = vector.load %arg9[%c0_21, %c0_22] : memref<1x128xf32, #tpu.memory_space<vmem>>, vector<1x128xf32>
    %29 = vector.broadcast %28 : vector<1x128xf32> to vector<128x128xf32>
    %30 = arith.addf %27, %29 : vector<128x128xf32>
    %cst_23 = arith.constant 0.000000e+00 : f32
    %31 = vector.broadcast %cst_23 : f32 to vector<128x128xf32>
    %32 = arith.maximumf %30, %31 : vector<128x128xf32>
    %33 = arith.truncf %32 : vector<128x128xf32> to vector<128x128xbf16>
    %c0_24 = arith.constant 0 : index
    %c0_25 = arith.constant 0 : index
    %34 = vector.load %arg10[%c0_24, %c0_25] : memref<128x128xbf16, #tpu.memory_space<vmem>>, vector<128x128xbf16>
    %cst_26 = arith.constant dense<0.000000e+00> : vector<128x128xf32>
    %35 = tpu.matmul %33, %34, %cst_26 {dimension_numbers = #tpu.dot_dimension_numbers<[1], [0], [0], [1], [0, 0, 1, 1], [], []>} : vector<128x128xbf16>, vector<128x128xbf16>, vector<128x128xf32> -> vector<128x128xf32>
    %c0_27 = arith.constant 0 : index
    %c0_28 = arith.constant 0 : index
    %36 = vector.load %arg11[%c0_27, %c0_28] : memref<1x128xf32, #tpu.memory_space<vmem>>, vector<1x128xf32>
    %37 = vector.broadcast %36 : vector<1x128xf32> to vector<128x128xf32>
    %38 = arith.addf %35, %37 : vector<128x128xf32>
    %39 = arith.truncf %38 : vector<128x128xf32> to vector<128x128xbf16>
    %c0_29 = arith.constant 0 : index
    %c0_30 = arith.constant 0 : index
    %40 = vector.load %arg12[%c0_29, %c0_30] : memref<128x128xbf16, #tpu.memory_space<vmem>>, vector<128x128xbf16>
    tpu.vector_store %arg12[%c0_29, %c0_30], %39 {strides = array<i32>} : memref<128x128xbf16, #tpu.memory_space<vmem>>, vector<128x128xbf16>,
    return
  }
  func.func @transform_0(%arg0: i32) -> (i32, i32) {
    %c0_i32 = arith.constant 0 : i32
    %c0_i32_0 = arith.constant 0 : i32
    return %arg0, %c0_i32 : i32, i32
  }
  func.func @transform_1(%arg0: i32) -> (i32, i32) {
    %c0_i32 = arith.constant 0 : i32
    %c0_i32_0 = arith.constant 0 : i32
    %c0_i32_1 = arith.constant 0 : i32
    return %c0_i32, %c0_i32_0 : i32, i32
  }
  func.func @transform_2(%arg0: i32) -> (i32, i32) {
    %c0_i32 = arith.constant 0 : i32
    %c0_i32_0 = arith.constant 0 : i32
    %c0_i32_1 = arith.constant 0 : i32
    return %c0_i32, %c0_i32_0 : i32, i32
  }
  func.func @transform_3(%arg0: i32) -> (i32, i32) {
    %c0_i32 = arith.constant 0 : i32
    %c0_i32_0 = arith.constant 0 : i32
    %c0_i32_1 = arith.constant 0 : i32
    return %c0_i32, %c0_i32_0 : i32, i32
  }
  func.func @transform_4(%arg0: i32) -> (i32, i32) {
    %c0_i32 = arith.constant 0 : i32
    %c0_i32_0 = arith.constant 0 : i32
    %c0_i32_1 = arith.constant 0 : i32
    return %c0_i32, %c0_i32_0 : i32, i32
  }
  func.func @transform_5(%arg0: i32) -> (i32, i32) {
    %c0_i32 = arith.constant 0 : i32
    %c0_i32_0 = arith.constant 0 : i32
    %c0_i32_1 = arith.constant 0 : i32
    return %c0_i32, %c0_i32_0 : i32, i32
  }
  func.func @transform_6(%arg0: i32) -> (i32, i32) {
    %c0_i32 = arith.constant 0 : i32
    %c0_i32_0 = arith.constant 0 : i32
    %c0_i32_1 = arith.constant 0 : i32
    return %c0_i32, %c0_i32_0 : i32, i32
  }
  func.func @transform_7(%arg0: i32) -> (i32, i32) {
    %c0_i32 = arith.constant 0 : i32
    %c0_i32_0 = arith.constant 0 : i32
    %c0_i32_1 = arith.constant 0 : i32
    return %c0_i32, %c0_i32_0 : i32, i32
  }
  func.func @transform_8(%arg0: i32) -> (i32, i32) {
    %c0_i32 = arith.constant 0 : i32
    %c0_i32_0 = arith.constant 0 : i32
    %c0_i32_1 = arith.constant 0 : i32
    return %c0_i32, %c0_i32_0 : i32, i32
  }
  func.func @transform_9(%arg0: i32) -> (i32, i32) {
    %c0_i32 = arith.constant 0 : i32
    %c0_i32_0 = arith.constant 0 : i32
    %c0_i32_1 = arith.constant 0 : i32
    return %c0_i32, %c0_i32_0 : i32, i32
  }
  func.func @transform_10(%arg0: i32) -> (i32, i32) {
    %c0_i32 = arith.constant 0 : i32
    %c0_i32_0 = arith.constant 0 : i32
    %c0_i32_1 = arith.constant 0 : i32
    return %c0_i32, %c0_i32_0 : i32, i32
  }
  func.func @transform_11(%arg0: i32) -> (i32, i32) {
    %c0_i32 = arith.constant 0 : i32
    %c0_i32_0 = arith.constant 0 : i32
    return %arg0, %c0_i32 : i32, i32
  }
}

</mosaic_0001>

<llo_original>
// kernel: _lambda_.1
$region0: #{_lambda_.1}
  #allocation0 [shape = 'u32[]', space=smem, size = 0x4, offset = 0x4, fixed_abs, tag = 'smem constant byte address 0x4 - core index']
  #allocation1 [shape = 'u32[144,128]{1,0:T(1,128)}', space=vmem, size = 0x12000, scoped, tag = 'internal scratch']
  %s0 = inlined_call_operand.vmem [shape: f32[512,784], index: 0, kind: input, shape index: {}]
  %s1 = inlined_call_operand.vmem [shape: bf16[784,512], index: 1, kind: input, shape index: {}]
  %s2 = inlined_call_operand.vmem [shape: f32[1,512], index: 2, kind: input, shape index: {}]
  %s3 = inlined_call_operand.vmem [shape: bf16[512,256], index: 3, kind: input, shape index: {}]
  %s4 = inlined_call_operand.vmem [shape: f32[1,256], index: 4, kind: input, shape index: {}]
  %s5 = inlined_call_operand.vmem [shape: bf16[256,128], index: 5, kind: input, shape index: {}]
  %s6 = inlined_call_operand.vmem [shape: f32[1,128], index: 6, kind: input, shape index: {}]
  %s7 = inlined_call_operand.vmem [shape: bf16[128,128], index: 7, kind: input, shape index: {}]
  %s8 = inlined_call_operand.vmem [shape: f32[1,128], index: 8, kind: input, shape index: {}]
  %s9 = inlined_call_operand.vmem [shape: bf16[128,128], index: 9, kind: input, shape index: {}]
  %s10 = inlined_call_operand.vmem [shape: f32[1,128], index: 10, kind: input, shape index: {}]
  %s11 = inlined_call_operand.vmem [shape: bf16[512,128], index: 11, kind: output, shape index: {}]
  %s12 = sld [smem:[#allocation0]]
  $region77: #{_lambda_.1} parent=0
    _
  %s14 = ssub.s32 1, %s12
  %s15 = scalar_select 0, %s14, %s12
  loop: start=0, step=1, limit=6
  $region2: #{_lambda_.1} parent=0 // loop_pre_header
    _
  $region3: #{_lambda_.1} parent=0 // loop_header
    %s17 = sphi 0, %s21
    %p18 = scmp.ge.s32.totalorder %s17, 6
    %s27 = sphi 0, %s29
    %s30 = sphi 0, %s27
    %s31 = sphi 0, %s30
    %s47 = sphi 0, %s31
    %s51 = sphi 0, %s51
    %s53 = sphi 0, %s51
    %s54 = sphi 0, %s53
    %s68 = sphi 0, %s54
    %s72 = sphi 0, %s72
    %s74 = sphi 0, %s72
    %s75 = sphi 0, %s74
    %s89 = sphi 0, %s75
    %s93 = sphi 0, %s93
    %s95 = sphi 0, %s93
    %s96 = sphi 0, %s95
    %s110 = sphi 0, %s96
    %s114 = sphi 0, %s114
    %s116 = sphi 0, %s114
    %s117 = sphi 0, %s116
    %s131 = sphi 0, %s117
    %s135 = sphi 0, %s135
    %s137 = sphi 0, %s135
    %s138 = sphi 0, %s137
    %s152 = sphi 0, %s138
    %s156 = sphi 0, %s156
    %s158 = sphi 0, %s156
    %s159 = sphi 0, %s158
    %s173 = sphi 0, %s159
    %s177 = sphi 0, %s177
    %s179 = sphi 0, %s177
    %s180 = sphi 0, %s179
    %s194 = sphi 0, %s180
    %s198 = sphi 0, %s198
    %s200 = sphi 0, %s198
    %s201 = sphi 0, %s200
    %s215 = sphi 0, %s201
    %s219 = sphi 0, %s219
    %s221 = sphi 0, %s219
    %s222 = sphi 0, %s221
    %s236 = sphi 0, %s222
    %s240 = sphi 0, %s240
    %s242 = sphi 0, %s240
    %s243 = sphi 0, %s242
    %s257 = sphi 0, %s243
    %s263 = sphi 0, %s265
    %s266 = sphi 0, %s263
    %s267 = sphi 0, %s266
    %s283 = sphi 0, %s267
  $region4: #{_lambda_.1} parent=0 // loop_header_branch
    %20 = sbr.rel (%p18) target = $region8
  $region5: #{_lambda_.1} parent=0 // loop_body
    %s22 = ssub.s32 %s17, 1
    %s23 = ssub.s32 %s17, 2
    %s24 = sadd.s32 %s17, 1
    %s25 = ssub.s32 %s17, %s24
    %p26 = scmp.eq.s32.totalorder %s25, 0
    %s28 = sadd.s32 %s27, 1
    %s29 = scalar_select %p26, %s27, %s28
    %p32 = pneg %p26
    %p33 = scmp.eq.s32.totalorder %s17, 3
    %p34 = por %p32, %p33
    %p35 = scmp.ne.s32.totalorder %s27, %s30
    %p36 = scmp.eq.s32.totalorder %s17, 0
    %p37 = por %p35, %p36
    %p38 = scmp.ne.s32.totalorder %s27, %s30
    %p39 = scmp.eq.s32.totalorder %s22, 3
    %p40 = por %p38, %p39
    %p41 = scmp.ne.s32.totalorder %s30, %s31
    %p42 = scmp.eq.s32.totalorder %s22, 0
    %p43 = por %p41, %p42
    %p44 = scmp.ne.s32.totalorder %s30, %s31
    %p45 = scmp.eq.s32.totalorder %s23, 3
    %p46 = por %p44, %p45
    %p48 = scmp.ne.s32.totalorder %s31, %s47
    %p49 = scmp.eq.s32.totalorder %s23, 0
    %p50 = por %p48, %p49
    %s52 = sadd.s32 %s51, 1
    %p55 = scmp.eq.s32.totalorder %s17, 3
    %p56 = scmp.ne.s32.totalorder %s51, %s53
    %p57 = scmp.eq.s32.totalorder %s17, 0
    %p58 = por %p56, %p57
    %p59 = scmp.ne.s32.totalorder %s51, %s53
    %p60 = scmp.eq.s32.totalorder %s22, 3
    %p61 = por %p59, %p60
    %p62 = scmp.ne.s32.totalorder %s53, %s54
    %p63 = scmp.eq.s32.totalorder %s22, 0
    %p64 = por %p62, %p63
    %p65 = scmp.ne.s32.totalorder %s53, %s54
    %p66 = scmp.eq.s32.totalorder %s23, 3
    %p67 = por %p65, %p66
    %p69 = scmp.ne.s32.totalorder %s54, %s68
    %p70 = scmp.eq.s32.totalorder %s23, 0
    %p71 = por %p69, %p70
    %s73 = sadd.s32 %s72, 1
    %p76 = scmp.eq.s32.totalorder %s17, 3
    %p77 = scmp.ne.s32.totalorder %s72, %s74
    %p78 = scmp.eq.s32.totalorder %s17, 0
    %p79 = por %p77, %p78
    %p80 = scmp.ne.s32.totalorder %s72, %s74
    %p81 = scmp.eq.s32.totalorder %s22, 3
    %p82 = por %p80, %p81
    %p83 = scmp.ne.s32.totalorder %s74, %s75
    %p84 = scmp.eq.s32.totalorder %s22, 0
    %p85 = por %p83, %p84
    %p86 = scmp.ne.s32.totalorder %s74, %s75
    %p87 = scmp.eq.s32.totalorder %s23, 3
    %p88 = por %p86, %p87
    %p90 = scmp.ne.s32.totalorder %s75, %s89
    %p91 = scmp.eq.s32.totalorder %s23, 0
    %p92 = por %p90, %p91
    %s94 = sadd.s32 %s93, 1
    %p97 = scmp.eq.s32.totalorder %s17, 3
    %p98 = scmp.ne.s32.totalorder %s93, %s95
    %p99 = scmp.eq.s32.totalorder %s17, 0
    %p100 = por %p98, %p99
    %p101 = scmp.ne.s32.totalorder %s93, %s95
    %p102 = scmp.eq.s32.totalorder %s22, 3
    %p103 = por %p101, %p102
    %p104 = scmp.ne.s32.totalorder %s95, %s96
    %p105 = scmp.eq.s32.totalorder %s22, 0
    %p106 = por %p104, %p105
    %p107 = scmp.ne.s32.totalorder %s95, %s96
    %p108 = scmp.eq.s32.totalorder %s23, 3
    %p109 = por %p107, %p108
    %p111 = scmp.ne.s32.totalorder %s96, %s110
    %p112 = scmp.eq.s32.totalorder %s23, 0
    %p113 = por %p111, %p112
    %s115 = sadd.s32 %s114, 1
    %p118 = scmp.eq.s32.totalorder %s17, 3
    %p119 = scmp.ne.s32.totalorder %s114, %s116
    %p120 = scmp.eq.s32.totalorder %s17, 0
    %p121 = por %p119, %p120
    %p122 = scmp.ne.s32.totalorder %s114, %s116
    %p123 = scmp.eq.s32.totalorder %s22, 3
    %p124 = por %p122, %p123
    %p125 = scmp.ne.s32.totalorder %s116, %s117
    %p126 = scmp.eq.s32.totalorder %s22, 0
    %p127 = por %p125, %p126
    %p128 = scmp.ne.s32.totalorder %s116, %s117
    %p129 = scmp.eq.s32.totalorder %s23, 3
    %p130 = por %p128, %p129
    %p132 = scmp.ne.s32.totalorder %s117, %s131
    %p133 = scmp.eq.s32.totalorder %s23, 0
    %p134 = por %p132, %p133
    %s136 = sadd.s32 %s135, 1
    %p139 = scmp.eq.s32.totalorder %s17, 3
    %p140 = scmp.ne.s32.totalorder %s135, %s137
    %p141 = scmp.eq.s32.totalorder %s17, 0
    %p142 = por %p140, %p141
    %p143 = scmp.ne.s32.totalorder %s135, %s137
    %p144 = scmp.eq.s32.totalorder %s22, 3
    %p145 = por %p143, %p144
    %p146 = scmp.ne.s32.totalorder %s137, %s138
    %p147 = scmp.eq.s32.totalorder %s22, 0
    %p148 = por %p146, %p147
    %p149 = scmp.ne.s32.totalorder %s137, %s138
    %p150 = scmp.eq.s32.totalorder %s23, 3
    %p151 = por %p149, %p150
    %p153 = scmp.ne.s32.totalorder %s138, %s152
    %p154 = scmp.eq.s32.totalorder %s23, 0
    %p155 = por %p153, %p154
    %s157 = sadd.s32 %s156, 1
    %p160 = scmp.eq.s32.totalorder %s17, 3
    %p161 = scmp.ne.s32.totalorder %s156, %s158
    %p162 = scmp.eq.s32.totalorder %s17, 0
    %p163 = por %p161, %p162
    %p164 = scmp.ne.s32.totalorder %s156, %s158
    %p165 = scmp.eq.s32.totalorder %s22, 3
    %p166 = por %p164, %p165
    %p167 = scmp.ne.s32.totalorder %s158, %s159
    %p168 = scmp.eq.s32.totalorder %s22, 0
    %p169 = por %p167, %p168
    %p170 = scmp.ne.s32.totalorder %s158, %s159
    %p171 = scmp.eq.s32.totalorder %s23, 3
    %p172 = por %p170, %p171
    %p174 = scmp.ne.s32.totalorder %s159, %s173
    %p175 = scmp.eq.s32.totalorder %s23, 0
    %p176 = por %p174, %p175
    %s178 = sadd.s32 %s177, 1
    %p181 = scmp.eq.s32.totalorder %s17, 3
    %p182 = scmp.ne.s32.totalorder %s177, %s179
    %p183 = scmp.eq.s32.totalorder %s17, 0
    %p184 = por %p182, %p183
    %p185 = scmp.ne.s32.totalorder %s177, %s179
    %p186 = scmp.eq.s32.totalorder %s22, 3
    %p187 = por %p185, %p186
    %p188 = scmp.ne.s32.totalorder %s179, %s180
    %p189 = scmp.eq.s32.totalorder %s22, 0
    %p190 = por %p188, %p189
    %p191 = scmp.ne.s32.totalorder %s179, %s180
    %p192 = scmp.eq.s32.totalorder %s23, 3
    %p193 = por %p191, %p192
    %p195 = scmp.ne.s32.totalorder %s180, %s194
    %p196 = scmp.eq.s32.totalorder %s23, 0
    %p197 = por %p195, %p196
    %s199 = sadd.s32 %s198, 1
    %p202 = scmp.eq.s32.totalorder %s17, 3
    %p203 = scmp.ne.s32.totalorder %s198, %s200
    %p204 = scmp.eq.s32.totalorder %s17, 0
    %p205 = por %p203, %p204
    %p206 = scmp.ne.s32.totalorder %s198, %s200
    %p207 = scmp.eq.s32.totalorder %s22, 3
    %p208 = por %p206, %p207
    %p209 = scmp.ne.s32.totalorder %s200, %s201
    %p210 = scmp.eq.s32.totalorder %s22, 0
    %p211 = por %p209, %p210
    %p212 = scmp.ne.s32.totalorder %s200, %s201
    %p213 = scmp.eq.s32.totalorder %s23, 3
    %p214 = por %p212, %p213
    %p216 = scmp.ne.s32.totalorder %s201, %s215
    %p217 = scmp.eq.s32.totalorder %s23, 0
    %p218 = por %p216, %p217
    %s220 = sadd.s32 %s219, 1
    %p223 = scmp.eq.s32.totalorder %s17, 3
    %p224 = scmp.ne.s32.totalorder %s219, %s221
    %p225 = scmp.eq.s32.totalorder %s17, 0
    %p226 = por %p224, %p225
    %p227 = scmp.ne.s32.totalorder %s219, %s221
    %p228 = scmp.eq.s32.totalorder %s22, 3
    %p229 = por %p227, %p228
    %p230 = scmp.ne.s32.totalorder %s221, %s222
    %p231 = scmp.eq.s32.totalorder %s22, 0
    %p232 = por %p230, %p231
    %p233 = scmp.ne.s32.totalorder %s221, %s222
    %p234 = scmp.eq.s32.totalorder %s23, 3
    %p235 = por %p233, %p234
    %p237 = scmp.ne.s32.totalorder %s222, %s236
    %p238 = scmp.eq.s32.totalorder %s23, 0
    %p239 = por %p237, %p238
    %s241 = sadd.s32 %s240, 1
    %p244 = scmp.eq.s32.totalorder %s17, 3
    %p245 = scmp.ne.s32.totalorder %s240, %s242
    %p246 = scmp.eq.s32.totalorder %s17, 0
    %p247 = por %p245, %p246
    %p248 = scmp.ne.s32.totalorder %s240, %s242
    %p249 = scmp.eq.s32.totalorder %s22, 3
    %p250 = por %p248, %p249
    %p251 = scmp.ne.s32.totalorder %s242, %s243
    %p252 = scmp.eq.s32.totalorder %s22, 0
    %p253 = por %p251, %p252
    %p254 = scmp.ne.s32.totalorder %s242, %s243
    %p255 = scmp.eq.s32.totalorder %s23, 3
    %p256 = por %p254, %p255
    %p258 = scmp.ne.s32.totalorder %s243, %s257
    %p259 = scmp.eq.s32.totalorder %s23, 0
    %p260 = por %p258, %p259
    %s261 = ssub.s32 %s17, %s24
    %p262 = scmp.eq.s32.totalorder %s261, 0
    %s264 = sadd.s32 %s263, 1
    %s265 = scalar_select %p262, %s263, %s264
    %p268 = pneg %p262
    %p269 = scmp.eq.s32.totalorder %s17, 3
    %p270 = por %p268, %p269
    %p271 = scmp.ne.s32.totalorder %s263, %s266
    %p272 = scmp.eq.s32.totalorder %s17, 0
    %p273 = por %p271, %p272
    %p274 = scmp.ne.s32.totalorder %s263, %s266
    %p275 = scmp.eq.s32.totalorder %s22, 3
    %p276 = por %p274, %p275
    %p277 = scmp.ne.s32.totalorder %s266, %s267
    %p278 = scmp.eq.s32.totalorder %s22, 0
    %p279 = por %p277, %p278
    %p280 = scmp.ne.s32.totalorder %s266, %s267
    %p281 = scmp.eq.s32.totalorder %s23, 3
    %p282 = por %p280, %p281
    %p284 = scmp.ne.s32.totalorder %s267, %s283
    %p285 = scmp.eq.s32.totalorder %s23, 0
    %p286 = por %p284, %p285
    %p287 = scmp.le.s32.totalorder 1, %s17
    %p288 = scmp.lt.s32.totalorder %s17, 5
    %p289 = pnand %p287, %p288
    %p290 = pneg %p289
    // Predicated region
    $region9: #{_lambda_.1} parent=5 // pred_check
      _
    $region10: #{_lambda_.1} parent=5 // pred_check_branch
      %292 = sbr.rel (%p289) target = $region12
    $region11: #{_lambda_.1} parent=5 // pred_region
      %s293 = ssub.s32 %s17, 1
      // Predicated region
      $region13: #{_lambda_.1} parent=11 // pred_check
        %p294 = pneg %p64
      $region14: #{_lambda_.1} parent=11 // pred_check_branch
        %296 = sbr.rel (%p294) target = $region16
      $region15: #{_lambda_.1} parent=11 // pred_region
        _
      $region16: #{_lambda_.1} parent=11 // pred_fallthru
        _
      // Predicated region
      $region17: #{_lambda_.1} parent=11 // pred_check
        %p297 = pneg %p85
      $region18: #{_lambda_.1} parent=11 // pred_check_branch
        %299 = sbr.rel (%p297) target = $region20
      $region19: #{_lambda_.1} parent=11 // pred_region
        _
      $region20: #{_lambda_.1} parent=11 // pred_fallthru
        _
      // Predicated region
      $region21: #{_lambda_.1} parent=11 // pred_check
        %p300 = pneg %p106
      $region22: #{_lambda_.1} parent=11 // pred_check_branch
        %302 = sbr.rel (%p300) target = $region24
      $region23: #{_lambda_.1} parent=11 // pred_region
        _
      $region24: #{_lambda_.1} parent=11 // pred_fallthru
        _
      // Predicated region
      $region25: #{_lambda_.1} parent=11 // pred_check
        %p303 = pneg %p127
      $region26: #{_lambda_.1} parent=11 // pred_check_branch
        %305 = sbr.rel (%p303) target = $region28
      $region27: #{_lambda_.1} parent=11 // pred_region
        _
      $region28: #{_lambda_.1} parent=11 // pred_fallthru
        _
      // Predicated region
      $region29: #{_lambda_.1} parent=11 // pred_check
        %p306 = pneg %p148
      $region30: #{_lambda_.1} parent=11 // pred_check_branch
        %308 = sbr.rel (%p306) target = $region32
      $region31: #{_lambda_.1} parent=11 // pred_region
        _
      $region32: #{_lambda_.1} parent=11 // pred_fallthru
        _
      // Predicated region
      $region33: #{_lambda_.1} parent=11 // pred_check
        %p309 = pneg %p169
      $region34: #{_lambda_.1} parent=11 // pred_check_branch
        %311 = sbr.rel (%p309) target = $region36
      $region35: #{_lambda_.1} parent=11 // pred_region
        _
      $region36: #{_lambda_.1} parent=11 // pred_fallthru
        _
      // Predicated region
      $region37: #{_lambda_.1} parent=11 // pred_check
        %p312 = pneg %p190
      $region38: #{_lambda_.1} parent=11 // pred_check_branch
        %314 = sbr.rel (%p312) target = $region40
      $region39: #{_lambda_.1} parent=11 // pred_region
        _
      $region40: #{_lambda_.1} parent=11 // pred_fallthru
        _
      // Predicated region
      $region41: #{_lambda_.1} parent=11 // pred_check
        %p315 = pneg %p211
      $region42: #{_lambda_.1} parent=11 // pred_check_branch
        %317 = sbr.rel (%p315) target = $region44
      $region43: #{_lambda_.1} parent=11 // pred_region
        _
      $region44: #{_lambda_.1} parent=11 // pred_fallthru
        _
      // Predicated region
      $region45: #{_lambda_.1} parent=11 // pred_check
        %p318 = pneg %p232
      $region46: #{_lambda_.1} parent=11 // pred_check_branch
        %320 = sbr.rel (%p318) target = $region48
      $region47: #{_lambda_.1} parent=11 // pred_region
        _
      $region48: #{_lambda_.1} parent=11 // pred_fallthru
        _
      // Predicated region
      $region49: #{_lambda_.1} parent=11 // pred_check
        %p321 = pneg %p253
      $region50: #{_lambda_.1} parent=11 // pred_check_branch
        %323 = sbr.rel (%p321) target = $region52
      $region51: #{_lambda_.1} parent=11 // pred_region
        _
      $region52: #{_lambda_.1} parent=11 // pred_fallthru
        _
    $region12: #{_lambda_.1} parent=5 // pred_fallthru
      _
    %p324 = scmp.lt.s32.totalorder %s17, 4
    // Predicated region
    $region53: #{_lambda_.1} parent=5 // pred_check
      %p325 = pneg %p324
    $region54: #{_lambda_.1} parent=5 // pred_check_branch
      %327 = sbr.rel (%p325) target = $region56
    $region55: #{_lambda_.1} parent=5 // pred_region
      // Predicated region
      $region57: #{_lambda_.1} parent=55 // pred_check
        %p328 = pneg %p37
      $region58: #{_lambda_.1} parent=55 // pred_check_branch
        %330 = sbr.rel (%p328) target = $region60
      $region59: #{_lambda_.1} parent=55 // pred_region
        %s331 = smul.u32 16, %s17
        %p332 = scmp.lt.s32.totalorder %s331, 63
        %s333 = scalar_select %p332, %s331, 63
        %s334 = smul.addr %s333, 7
        %s335 = smul.addr %s334, 8
        %s336 = scalar_lea.vmem %s0, %s335
        %s337 = smul.u32 16, %s17
      $region60: #{_lambda_.1} parent=55 // pred_fallthru
        _
    $region56: #{_lambda_.1} parent=5 // pred_fallthru
      _
    %p338 = scmp.le.s32.totalorder 1, %s17
    %p339 = scmp.lt.s32.totalorder %s17, 5
    %p340 = pnand %p338, %p339
    %p341 = pneg %p340
    // Predicated region
    $region61: #{_lambda_.1} parent=5 // pred_check
      _
    $region62: #{_lambda_.1} parent=5 // pred_check_branch
      %343 = sbr.rel (%p340) target = $region64
    $region63: #{_lambda_.1} parent=5 // pred_region
      %s344 = ssub.s32 %s17, 1
      %s345 = smul.u32 16, %s22
      %p346 = scmp.lt.s32.totalorder %s345, 63
      %s347 = scalar_select %p346, %s345, 63
      %s348 = smul.addr %s347, 7
      %s349 = smul.addr %s348, 8
      %s350 = scalar_lea.vmem %s0, %s349
      %p351 = pneg %p43
      %p352 = pneg %p40
      %p353 = pneg %p64
      %p354 = pneg %p61
      %p355 = pneg %p85
      %p356 = pneg %p82
      %p357 = pneg %p106
      %p358 = pneg %p103
      %p359 = pneg %p127
      %p360 = pneg %p124
      %p361 = pneg %p148
      %p362 = pneg %p145
      %p363 = pneg %p169
      %p364 = pneg %p166
      %p365 = pneg %p190
      %p366 = pneg %p187
      %p367 = pneg %p211
      %p368 = pneg %p208
      %p369 = pneg %p232
      %p370 = pneg %p229
      %p371 = pneg %p253
      %p372 = pneg %p250
      %p373 = pneg %p279
      %p374 = pneg %p276
      %s375 = smul.u32 16, %s22
      %p376 = scmp.lt.s32.totalorder %s375, 63
      %s377 = scalar_select %p376, %s375, 63
      %s378 = smul.addr %s377, 4
      %s379 = scalar_lea.vmem %s11, %s378
      %s380 = smul.u32 16, %s22
      %p381 = scmp.lt.s32.totalorder %s380, 63
      %s382 = scalar_select %p381, %s380, 63
      %s383 = smul.addr %s382, 7
      %s384 = smul.addr %s383, 8
      %s385 = scalar_lea.vmem %s0, %s384
      %s386 = smul.u32 16, %s22
      %s387 = smul.u32 16, %s22
      %p388 = scmp.lt.s32.totalorder %s387, 63
      %s389 = scalar_select %p388, %s387, 63
      %s390 = smul.addr %s389, 4
      %s391 = scalar_lea.vmem %s11, %s390
      %s392 = smul.u32 16, %s22
      %v394 = vld [vmem:[%s385] sm:$0xff]
      %v395 = vld [vmem:[%s385 + $0x8] sm:$0xff]
      %v396 = vld [vmem:[%s385 + $0x10] sm:$0xff]
      %v397 = vld [vmem:[%s385 + $0x18] sm:$0xff]
      %v398 = vld [vmem:[%s385 + $0x20] sm:$0xff]
      %v399 = vld [vmem:[%s385 + $0x28] sm:$0xff]
      %v400 = vld [vmem:[%s385 + $0x30] sm:$0xff]
      %v401 = vld [vmem:[%s385 + $0x38] sm:$0xff]
      %v402 = vld [vmem:[%s385 + $0x40] sm:$0xff]
      %v403 = vld [vmem:[%s385 + $0x48] sm:$0xff]
      %v404 = vld [vmem:[%s385 + $0x50] sm:$0xff]
      %v405 = vld [vmem:[%s385 + $0x58] sm:$0xff]
      %v406 = vld [vmem:[%s385 + $0x60] sm:$0xff]
      %v407 = vld [vmem:[%s385 + $0x68] sm:$0xff]
      %v408 = vld [vmem:[%s385 + $0x70] sm:$0xff]
      %v409 = vld [vmem:[%s385 + $0x78] sm:$0xff]
      %v410 = vld [vmem:[%s385 + $0x80] sm:$0xff]
      %v411 = vld [vmem:[%s385 + $0x88] sm:$0xff]
      %v412 = vld [vmem:[%s385 + $0x90] sm:$0xff]
      %v413 = vld [vmem:[%s385 + $0x98] sm:$0xff]
      %v414 = vld [vmem:[%s385 + $0xa0] sm:$0xff]
      %v415 = vld [vmem:[%s385 + $0xa8] sm:$0xff]
      %v416 = vld [vmem:[%s385 + $0xb0] sm:$0xff]
      %v417 = vld [vmem:[%s385 + $0xb8] sm:$0xff]
      %v418 = vld [vmem:[%s385 + $0xc0] sm:$0xff]
      %v419 = vld [vmem:[%s385 + $0xc8] sm:$0xff]
      %v420 = vld [vmem:[%s385 + $0xd0] sm:$0xff]
      %v421 = vld [vmem:[%s385 + $0xd8] sm:$0xff]
      %v422 = vld [vmem:[%s385 + $0xe0] sm:$0xff]
      %v423 = vld [vmem:[%s385 + $0xe8] sm:$0xff]
      %v424 = vld [vmem:[%s385 + $0xf0] sm:$0xff]
      %v425 = vld [vmem:[%s385 + $0xf8] sm:$0xff]
      %v426 = vld [vmem:[%s385 + $0x100] sm:$0xff]
      %v427 = vld [vmem:[%s385 + $0x108] sm:$0xff]
      %v428 = vld [vmem:[%s385 + $0x110] sm:$0xff]
      %v429 = vld [vmem:[%s385 + $0x118] sm:$0xff]
      %v430 = vld [vmem:[%s385 + $0x120] sm:$0xff]
      %v431 = vld [vmem:[%s385 + $0x128] sm:$0xff]
      %v432 = vld [vmem:[%s385 + $0x130] sm:$0xff]
      %v433 = vld [vmem:[%s385 + $0x138] sm:$0xff]
      %v434 = vld [vmem:[%s385 + $0x140] sm:$0xff]
      %v435 = vld [vmem:[%s385 + $0x148] sm:$0xff]
      %v436 = vld [vmem:[%s385 + $0x150] sm:$0xff]
      %v437 = vld [vmem:[%s385 + $0x158] sm:$0xff]
      %v438 = vld [vmem:[%s385 + $0x160] sm:$0xff]
      %v439 = vld [vmem:[%s385 + $0x168] sm:$0xff]
      %v440 = vld [vmem:[%s385 + $0x170] sm:$0xff]
      %v441 = vld [vmem:[%s385 + $0x178] sm:$0xff]
      %v442 = vld [vmem:[%s385 + $0x180] sm:$0xff]
      %v443 = vld [vmem:[%s385 + $0x188] sm:$0xff]
      %v444 = vld [vmem:[%s385 + $0x190] sm:$0xff]
      %v445 = vld [vmem:[%s385 + $0x198] sm:$0xff]
      %v446 = vld [vmem:[%s385 + $0x1a0] sm:$0xff]
      %v447 = vld [vmem:[%s385 + $0x1a8] sm:$0xff]
      %v448 = vld [vmem:[%s385 + $0x1b0] sm:$0xff]
      %v449 = vld [vmem:[%s385 + $0x1b8] sm:$0xff]
      %v450 = vld [vmem:[%s385 + $0x1c0] sm:$0xff]
      %v451 = vld [vmem:[%s385 + $0x1c8] sm:$0xff]
      %v452 = vld [vmem:[%s385 + $0x1d0] sm:$0xff]
      %v453 = vld [vmem:[%s385 + $0x1d8] sm:$0xff]
      %v454 = vld [vmem:[%s385 + $0x1e0] sm:$0xff]
      %v455 = vld [vmem:[%s385 + $0x1e8] sm:$0xff]
      %v456 = vld [vmem:[%s385 + $0x1f0] sm:$0xff]
      %v457 = vld [vmem:[%s385 + $0x1f8] sm:$0xff]
      %v458 = vld [vmem:[%s385 + $0x200] sm:$0xff]
      %v459 = vld [vmem:[%s385 + $0x208] sm:$0xff]
      %v460 = vld [vmem:[%s385 + $0x210] sm:$0xff]
      %v461 = vld [vmem:[%s385 + $0x218] sm:$0xff]
      %v462 = vld [vmem:[%s385 + $0x220] sm:$0xff]
      %v463 = vld [vmem:[%s385 + $0x228] sm:$0xff]
      %v464 = vld [vmem:[%s385 + $0x230] sm:$0xff]
      %v465 = vld [vmem:[%s385 + $0x238] sm:$0xff]
      %v466 = vld [vmem:[%s385 + $0x240] sm:$0xff]
      %v467 = vld [vmem:[%s385 + $0x248] sm:$0xff]
      %v468 = vld [vmem:[%s385 + $0x250] sm:$0xff]
      %v469 = vld [vmem:[%s385 + $0x258] sm:$0xff]
      %v470 = vld [vmem:[%s385 + $0x260] sm:$0xff]
      %v471 = vld [vmem:[%s385 + $0x268] sm:$0xff]
      %v472 = vld [vmem:[%s385 + $0x270] sm:$0xff]
      %v473 = vld [vmem:[%s385 + $0x278] sm:$0xff]
      %v474 = vld [vmem:[%s385 + $0x280] sm:$0xff]
      %v475 = vld [vmem:[%s385 + $0x288] sm:$0xff]
      %v476 = vld [vmem:[%s385 + $0x290] sm:$0xff]
      %v477 = vld [vmem:[%s385 + $0x298] sm:$0xff]
      %v478 = vld [vmem:[%s385 + $0x2a0] sm:$0xff]
      %v479 = vld [vmem:[%s385 + $0x2a8] sm:$0xff]
      %v480 = vld [vmem:[%s385 + $0x2b0] sm:$0xff]
      %v481 = vld [vmem:[%s385 + $0x2b8] sm:$0xff]
      %v482 = vld [vmem:[%s385 + $0x2c0] sm:$0xff]
      %v483 = vld [vmem:[%s385 + $0x2c8] sm:$0xff]
      %v484 = vld [vmem:[%s385 + $0x2d0] sm:$0xff]
      %v485 = vld [vmem:[%s385 + $0x2d8] sm:$0xff]
      %v486 = vld [vmem:[%s385 + $0x2e0] sm:$0xff]
      %v487 = vld [vmem:[%s385 + $0x2e8] sm:$0xff]
      %v488 = vld [vmem:[%s385 + $0x2f0] sm:$0xff]
      %v489 = vld [vmem:[%s385 + $0x2f8] sm:$0xff]
      %v490 = vld [vmem:[%s385 + $0x300] sm:$0xff]
      %v491 = vld [vmem:[%s385 + $0x308] sm:$0xff]
      %v492 = vld [vmem:[%s385 + $0x310] sm:$0xff]
      %v493 = vld [vmem:[%s385 + $0x318] sm:$0xff]
      %v494 = vld [vmem:[%s385 + $0x320] sm:$0xff]
      %v495 = vld [vmem:[%s385 + $0x328] sm:$0xff]
      %v496 = vld [vmem:[%s385 + $0x330] sm:$0xff]
      %v497 = vld [vmem:[%s385 + $0x338] sm:$0xff]
      %v498 = vld [vmem:[%s385 + $0x340] sm:$0xff]
      %v499 = vld [vmem:[%s385 + $0x348] sm:$0xff]
      %v500 = vld [vmem:[%s385 + $0x350] sm:$0xff]
      %v501 = vld [vmem:[%s385 + $0x358] sm:$0xff]
      %v502 = vld [vmem:[%s385 + $0x360] sm:$0xff]
      %v503 = vld [vmem:[%s385 + $0x368] sm:$0xff]
      %v504 = vld [vmem:[%s385 + $0x370] sm:$0xff]
      %v505 = vld [vmem:[%s385 + $0x378] sm:$0xff]
      %v506 = vpack.c.bf16 %v401, %v394
      %v507 = vpack.c.bf16 %v402, %v395
      %v508 = vpack.c.bf16 %v403, %v396
      %v509 = vpack.c.bf16 %v404, %v397
      %v510 = vpack.c.bf16 %v405, %v398
      %v511 = vpack.c.bf16 %v406, %v399
      %v512 = vpack.c.bf16 %v407, %v400
      %v513 = vpack.c.bf16 %v415, %v408
      %v514 = vpack.c.bf16 %v416, %v409
      %v515 = vpack.c.bf16 %v417, %v410
      %v516 = vpack.c.bf16 %v418, %v411
      %v517 = vpack.c.bf16 %v419, %v412
      %v518 = vpack.c.bf16 %v420, %v413
      %v519 = vpack.c.bf16 %v421, %v414
      %v520 = vpack.c.bf16 %v429, %v422
      %v521 = vpack.c.bf16 %v430, %v423
      %v522 = vpack.c.bf16 %v431, %v424
      %v523 = vpack.c.bf16 %v432, %v425
      %v524 = vpack.c.bf16 %v433, %v426
      %v525 = vpack.c.bf16 %v434, %v427
      %v526 = vpack.c.bf16 %v435, %v428
      %v527 = vpack.c.bf16 %v443, %v436
      %v528 = vpack.c.bf16 %v444, %v437
      %v529 = vpack.c.bf16 %v445, %v438
      %v530 = vpack.c.bf16 %v446, %v439
      %v531 = vpack.c.bf16 %v447, %v440
      %v532 = vpack.c.bf16 %v448, %v441
      %v533 = vpack.c.bf16 %v449, %v442
      %v534 = vpack.c.bf16 %v457, %v450
      %v535 = vpack.c.bf16 %v458, %v451
      %v536 = vpack.c.bf16 %v459, %v452
      %v537 = vpack.c.bf16 %v460, %v453
      %v538 = vpack.c.bf16 %v461, %v454
      %v539 = vpack.c.bf16 %v462, %v455
      %v540 = vpack.c.bf16 %v463, %v456
      %v541 = vpack.c.bf16 %v471, %v464
      %v542 = vpack.c.bf16 %v472, %v465
      %v543 = vpack.c.bf16 %v473, %v466
      %v544 = vpack.c.bf16 %v474, %v467
      %v545 = vpack.c.bf16 %v475, %v468
      %v546 = vpack.c.bf16 %v476, %v469
      %v547 = vpack.c.bf16 %v477, %v470
      %v548 = vpack.c.bf16 %v485, %v478
      %v549 = vpack.c.bf16 %v486, %v479
      %v550 = vpack.c.bf16 %v487, %v480
      %v551 = vpack.c.bf16 %v488, %v481
      %v552 = vpack.c.bf16 %v489, %v482
      %v553 = vpack.c.bf16 %v490, %v483
      %v554 = vpack.c.bf16 %v491, %v484
      %v555 = vpack.c.bf16 %v499, %v492
      %v556 = vpack.c.bf16 %v500, %v493
      %v557 = vpack.c.bf16 %v501, %v494
      %v558 = vpack.c.bf16 %v502, %v495
      %v559 = vpack.c.bf16 %v503, %v496
      %v560 = vpack.c.bf16 %v504, %v497
      %v561 = vpack.c.bf16 %v505, %v498
      %v562 = vld [vmem:[%s1] sm:$0xff]
      %v563 = vld [vmem:[%s1 + $0x8] sm:$0xff]
      %v564 = vld [vmem:[%s1 + $0x10] sm:$0xff]
      %v565 = vld [vmem:[%s1 + $0x18] sm:$0xff]
      %v566 = vld [vmem:[%s1 + $0x20] sm:$0xff]
      %v567 = vld [vmem:[%s1 + $0x28] sm:$0xff]
      %v568 = vld [vmem:[%s1 + $0x30] sm:$0xff]
      %v569 = vld [vmem:[%s1 + $0x38] sm:$0xff]
      %v570 = vld [vmem:[%s1 + $0x40] sm:$0xff]
      %v571 = vld [vmem:[%s1 + $0x48] sm:$0xff]
      %v572 = vld [vmem:[%s1 + $0x50] sm:$0xff]
      %v573 = vld [vmem:[%s1 + $0x58] sm:$0xff]
      %v574 = vld [vmem:[%s1 + $0x60] sm:$0xff]
      %v575 = vld [vmem:[%s1 + $0x68] sm:$0xff]
      %v576 = vld [vmem:[%s1 + $0x70] sm:$0xff]
      %v577 = vld [vmem:[%s1 + $0x78] sm:$0xff]
      %v578 = vld [vmem:[%s1 + $0x80] sm:$0xff]
      %v579 = vld [vmem:[%s1 + $0x88] sm:$0xff]
      %v580 = vld [vmem:[%s1 + $0x90] sm:$0xff]
      %v581 = vld [vmem:[%s1 + $0x98] sm:$0xff]
      %v582 = vld [vmem:[%s1 + $0xa0] sm:$0xff]
      %v583 = vld [vmem:[%s1 + $0xa8] sm:$0xff]
      %v584 = vld [vmem:[%s1 + $0xb0] sm:$0xff]
      %v585 = vld [vmem:[%s1 + $0xb8] sm:$0xff]
      %v586 = vld [vmem:[%s1 + $0xc0] sm:$0xff]
      %v587 = vld [vmem:[%s1 + $0xc8] sm:$0xff]
      %v588 = vld [vmem:[%s1 + $0xd0] sm:$0xff]
      %v589 = vld [vmem:[%s1 + $0xd8] sm:$0xff]
      %v590 = vld [vmem:[%s1 + $0xe0] sm:$0xff]
      %v591 = vld [vmem:[%s1 + $0xe8] sm:$0xff]
      %v592 = vld [vmem:[%s1 + $0xf0] sm:$0xff]
      %v593 = vld [vmem:[%s1 + $0xf8] sm:$0xff]
      %v594 = vld [vmem:[%s1 + $0x100] sm:$0xff]
      %v595 = vld [vmem:[%s1 + $0x108] sm:$0xff]
      %v596 = vld [vmem:[%s1 + $0x110] sm:$0xff]
      %v597 = vld [vmem:[%s1 + $0x118] sm:$0xff]
      %v598 = vld [vmem:[%s1 + $0x120] sm:$0xff]
      %v599 = vld [vmem:[%s1 + $0x128] sm:$0xff]
      %v600 = vld [vmem:[%s1 + $0x130] sm:$0xff]
      %v601 = vld [vmem:[%s1 + $0x138] sm:$0xff]
      %v602 = vld [vmem:[%s1 + $0x140] sm:$0xff]
      %v603 = vld [vmem:[%s1 + $0x148] sm:$0xff]
      %v604 = vld [vmem:[%s1 + $0x150] sm:$0xff]
      %v605 = vld [vmem:[%s1 + $0x158] sm:$0xff]
      %v606 = vld [vmem:[%s1 + $0x160] sm:$0xff]
      %v607 = vld [vmem:[%s1 + $0x168] sm:$0xff]
      %v608 = vld [vmem:[%s1 + $0x170] sm:$0xff]
      %v609 = vld [vmem:[%s1 + $0x178] sm:$0xff]
      %v610 = vld [vmem:[%s1 + $0x180] sm:$0xff]
      %v611 = vld [vmem:[%s1 + $0x188] sm:$0xff]
      %v612 = vld [vmem:[%s1 + $0x190] sm:$0xff]
      %v613 = vld [vmem:[%s1 + $0x198] sm:$0xff]
      %v614 = vld [vmem:[%s1 + $0x1a0] sm:$0xff]
      %v615 = vld [vmem:[%s1 + $0x1a8] sm:$0xff]
      %v616 = vld [vmem:[%s1 + $0x1b0] sm:$0xff]
      %v617 = vld [vmem:[%s1 + $0x1b8] sm:$0xff]
      %v618 = vld [vmem:[%s1 + $0x1c0] sm:$0xff]
      %v619 = vld [vmem:[%s1 + $0x1c8] sm:$0xff]
      %v620 = vld [vmem:[%s1 + $0x1d0] sm:$0xff]
      %v621 = vld [vmem:[%s1 + $0x1d8] sm:$0xff]
      %v622 = vld [vmem:[%s1 + $0x1e0] sm:$0xff]
      %v623 = vld [vmem:[%s1 + $0x1e8] sm:$0xff]
      %v624 = vld [vmem:[%s1 + $0x1f0] sm:$0xff]
      %v625 = vld [vmem:[%s1 + $0x1f8] sm:$0xff]
      %v626 = vld [vmem:[%s1 + $0x200] sm:$0xff]
      %v627 = vld [vmem:[%s1 + $0x208] sm:$0xff]
      %v628 = vld [vmem:[%s1 + $0x210] sm:$0xff]
      %v629 = vld [vmem:[%s1 + $0x218] sm:$0xff]
      %v630 = vld [vmem:[%s1 + $0x220] sm:$0xff]
      %v631 = vld [vmem:[%s1 + $0x228] sm:$0xff]
      %v632 = vld [vmem:[%s1 + $0x230] sm:$0xff]
      %v633 = vld [vmem:[%s1 + $0x238] sm:$0xff]
      %v634 = vld [vmem:[%s1 + $0x240] sm:$0xff]
      %v635 = vld [vmem:[%s1 + $0x248] sm:$0xff]
      %v636 = vld [vmem:[%s1 + $0x250] sm:$0xff]
      %v637 = vld [vmem:[%s1 + $0x258] sm:$0xff]
      %v638 = vld [vmem:[%s1 + $0x260] sm:$0xff]
      %v639 = vld [vmem:[%s1 + $0x268] sm:$0xff]
      %v640 = vld [vmem:[%s1 + $0x270] sm:$0xff]
      %v641 = vld [vmem:[%s1 + $0x278] sm:$0xff]
      %v642 = vld [vmem:[%s1 + $0x280] sm:$0xff]
      %v643 = vld [vmem:[%s1 + $0x288] sm:$0xff]
      %v644 = vld [vmem:[%s1 + $0x290] sm:$0xff]
      %v645 = vld [vmem:[%s1 + $0x298] sm:$0xff]
      %v646 = vld [vmem:[%s1 + $0x2a0] sm:$0xff]
      %v647 = vld [vmem:[%s1 + $0x2a8] sm:$0xff]
      %v648 = vld [vmem:[%s1 + $0x2b0] sm:$0xff]
      %v649 = vld [vmem:[%s1 + $0x2b8] sm:$0xff]
      %v650 = vld [vmem:[%s1 + $0x2c0] sm:$0xff]
      %v651 = vld [vmem:[%s1 + $0x2c8] sm:$0xff]
      %v652 = vld [vmem:[%s1 + $0x2d0] sm:$0xff]
      %v653 = vld [vmem:[%s1 + $0x2d8] sm:$0xff]
      %v654 = vld [vmem:[%s1 + $0x2e0] sm:$0xff]
      %v655 = vld [vmem:[%s1 + $0x2e8] sm:$0xff]
      %v656 = vld [vmem:[%s1 + $0x2f0] sm:$0xff]
      %v657 = vld [vmem:[%s1 + $0x2f8] sm:$0xff]
      %v658 = vld [vmem:[%s1 + $0x300] sm:$0xff]
      %v659 = vld [vmem:[%s1 + $0x308] sm:$0xff]
      %v660 = vld [vmem:[%s1 + $0x310] sm:$0xff]
      %v661 = vld [vmem:[%s1 + $0x318] sm:$0xff]
      %v662 = vld [vmem:[%s1 + $0x320] sm:$0xff]
      %v663 = vld [vmem:[%s1 + $0x328] sm:$0xff]
      %v664 = vld [vmem:[%s1 + $0x330] sm:$0xff]
      %v665 = vld [vmem:[%s1 + $0x338] sm:$0xff]
      %v666 = vld [vmem:[%s1 + $0x340] sm:$0xff]
      %v667 = vld [vmem:[%s1 + $0x348] sm:$0xff]
      %v668 = vld [vmem:[%s1 + $0x350] sm:$0xff]
      %v669 = vld [vmem:[%s1 + $0x358] sm:$0xff]
      %v670 = vld [vmem:[%s1 + $0x360] sm:$0xff]
      %v671 = vld [vmem:[%s1 + $0x368] sm:$0xff]
      %v672 = vld [vmem:[%s1 + $0x370] sm:$0xff]
      %v673 = vld [vmem:[%s1 + $0x378] sm:$0xff]
      %v674 = vld [vmem:[%s1 + $0x380] sm:$0xff]
      %v675 = vld [vmem:[%s1 + $0x388] sm:$0xff]
      %v676 = vld [vmem:[%s1 + $0x390] sm:$0xff]
      %v677 = vld [vmem:[%s1 + $0x398] sm:$0xff]
      %v678 = vld [vmem:[%s1 + $0x3a0] sm:$0xff]
      %v679 = vld [vmem:[%s1 + $0x3a8] sm:$0xff]
      %v680 = vld [vmem:[%s1 + $0x3b0] sm:$0xff]
      %v681 = vld [vmem:[%s1 + $0x3b8] sm:$0xff]
      %v682 = vld [vmem:[%s1 + $0x3c0] sm:$0xff]
      %v683 = vld [vmem:[%s1 + $0x3c8] sm:$0xff]
      %v684 = vld [vmem:[%s1 + $0x3d0] sm:$0xff]
      %v685 = vld [vmem:[%s1 + $0x3d8] sm:$0xff]
      %v686 = vld [vmem:[%s1 + $0x3e0] sm:$0xff]
      %v687 = vld [vmem:[%s1 + $0x3e8] sm:$0xff]
      %v688 = vld [vmem:[%s1 + $0x3f0] sm:$0xff]
      %v689 = vld [vmem:[%s1 + $0x3f8] sm:$0xff]
      %v690 = vld [vmem:[%s1 + $0x400] sm:$0xff]
      %v691 = vld [vmem:[%s1 + $0x408] sm:$0xff]
      %v692 = vld [vmem:[%s1 + $0x410] sm:$0xff]
      %v693 = vld [vmem:[%s1 + $0x418] sm:$0xff]
      %v694 = vld [vmem:[%s1 + $0x420] sm:$0xff]
      %v695 = vld [vmem:[%s1 + $0x428] sm:$0xff]
      %v696 = vld [vmem:[%s1 + $0x430] sm:$0xff]
      %v697 = vld [vmem:[%s1 + $0x438] sm:$0xff]
      %v698 = vld [vmem:[%s1 + $0x440] sm:$0xff]
      %v699 = vld [vmem:[%s1 + $0x448] sm:$0xff]
      %v700 = vld [vmem:[%s1 + $0x450] sm:$0xff]
      %v701 = vld [vmem:[%s1 + $0x458] sm:$0xff]
      %v702 = vld [vmem:[%s1 + $0x460] sm:$0xff]
      %v703 = vld [vmem:[%s1 + $0x468] sm:$0xff]
      %v704 = vld [vmem:[%s1 + $0x470] sm:$0xff]
      %v705 = vld [vmem:[%s1 + $0x478] sm:$0xff]
      %v706 = vld [vmem:[%s1 + $0x480] sm:$0xff]
      %v707 = vld [vmem:[%s1 + $0x488] sm:$0xff]
      %v708 = vld [vmem:[%s1 + $0x490] sm:$0xff]
      %v709 = vld [vmem:[%s1 + $0x498] sm:$0xff]
      %v710 = vld [vmem:[%s1 + $0x4a0] sm:$0xff]
      %v711 = vld [vmem:[%s1 + $0x4a8] sm:$0xff]
      %v712 = vld [vmem:[%s1 + $0x4b0] sm:$0xff]
      %v713 = vld [vmem:[%s1 + $0x4b8] sm:$0xff]
      %v714 = vld [vmem:[%s1 + $0x4c0] sm:$0xff]
      %v715 = vld [vmem:[%s1 + $0x4c8] sm:$0xff]
      %v716 = vld [vmem:[%s1 + $0x4d0] sm:$0xff]
      %v717 = vld [vmem:[%s1 + $0x4d8] sm:$0xff]
      %v718 = vld [vmem:[%s1 + $0x4e0] sm:$0xff]
      %v719 = vld [vmem:[%s1 + $0x4e8] sm:$0xff]
      %v720 = vld [vmem:[%s1 + $0x4f0] sm:$0xff]
      %v721 = vld [vmem:[%s1 + $0x4f8] sm:$0xff]
      %v722 = vld [vmem:[%s1 + $0x500] sm:$0xff]
      %v723 = vld [vmem:[%s1 + $0x508] sm:$0xff]
      %v724 = vld [vmem:[%s1 + $0x510] sm:$0xff]
      %v725 = vld [vmem:[%s1 + $0x518] sm:$0xff]
      %v726 = vld [vmem:[%s1 + $0x520] sm:$0xff]
      %v727 = vld [vmem:[%s1 + $0x528] sm:$0xff]
      %v728 = vld [vmem:[%s1 + $0x530] sm:$0xff]
      %v729 = vld [vmem:[%s1 + $0x538] sm:$0xff]
      %v730 = vld [vmem:[%s1 + $0x540] sm:$0xff]
      %v731 = vld [vmem:[%s1 + $0x548] sm:$0xff]
      %v732 = vld [vmem:[%s1 + $0x550] sm:$0xff]
      %v733 = vld [vmem:[%s1 + $0x558] sm:$0xff]
      %v734 = vld [vmem:[%s1 + $0x560] sm:$0xff]
      %v735 = vld [vmem:[%s1 + $0x568] sm:$0xff]
      %v736 = vld [vmem:[%s1 + $0x570] sm:$0xff]
      %v737 = vld [vmem:[%s1 + $0x578] sm:$0xff]
      %v738 = vld [vmem:[%s1 + $0x580] sm:$0xff]
      %v739 = vld [vmem:[%s1 + $0x588] sm:$0xff]
      %v740 = vld [vmem:[%s1 + $0x590] sm:$0xff]
      %v741 = vld [vmem:[%s1 + $0x598] sm:$0xff]
      %v742 = vld [vmem:[%s1 + $0x5a0] sm:$0xff]
      %v743 = vld [vmem:[%s1 + $0x5a8] sm:$0xff]
      %v744 = vld [vmem:[%s1 + $0x5b0] sm:$0xff]
      %v745 = vld [vmem:[%s1 + $0x5b8] sm:$0xff]
      %v746 = vld [vmem:[%s1 + $0x5c0] sm:$0xff]
      %v747 = vld [vmem:[%s1 + $0x5c8] sm:$0xff]
      %v748 = vld [vmem:[%s1 + $0x5d0] sm:$0xff]
      %v749 = vld [vmem:[%s1 + $0x5d8] sm:$0xff]
      %v750 = vld [vmem:[%s1 + $0x5e0] sm:$0xff]
      %v751 = vld [vmem:[%s1 + $0x5e8] sm:$0xff]
      %v752 = vld [vmem:[%s1 + $0x5f0] sm:$0xff]
      %v753 = vld [vmem:[%s1 + $0x5f8] sm:$0xff]
      %v754 = vld [vmem:[%s1 + $0x600] sm:$0xff]
      %v755 = vld [vmem:[%s1 + $0x608] sm:$0xff]
      %v756 = vld [vmem:[%s1 + $0x610] sm:$0xff]
      %v757 = vld [vmem:[%s1 + $0x618] sm:$0xff]
      %v758 = vld [vmem:[%s2] sm:$0xf]
      %v760 = vlaneseq
      %v761 = vshrl.u32 %v760, 7
      %v762 = vsub.s32 0, %v761
      %v763 = vrot.slane %v758, %v762
      %v764 = vlaneseq
      %v765 = vshrl.u32 %v764, 7
      %v766 = vsub.s32 1, %v765
      %v767 = vrot.slane %v758, %v766
      %v768 = vlaneseq
      %v769 = vshrl.u32 %v768, 7
      %v770 = vsub.s32 2, %v769
      %v771 = vrot.slane %v758, %v770
      %v772 = vlaneseq
      %v773 = vshrl.u32 %v772, 7
      %v774 = vsub.s32 3, %v773
      %v775 = vrot.slane %v758, %v774
      %v976 = vunpack.c.l.b16 %v562
      %v977 = vunpack.c.h.b16 %v562
      %v978 = vunpack.c.l.b16 %v563
      %v979 = vunpack.c.h.b16 %v563
      %v980 = vunpack.c.l.b16 %v564
      %v981 = vunpack.c.h.b16 %v564
      %v982 = vunpack.c.l.b16 %v565
      %v983 = vunpack.c.h.b16 %v565
      %v984 = vunpack.c.l.b16 %v566
      %v985 = vunpack.c.h.b16 %v566
      %v986 = vunpack.c.l.b16 %v567
      %v987 = vunpack.c.h.b16 %v567
      %v988 = vunpack.c.l.b16 %v568
      %v989 = vunpack.c.h.b16 %v568
      %v990 = vunpack.c.l.b16 %v569
      %v991 = vunpack.c.h.b16 %v569
      %v992 = vunpack.c.l.b16 %v570
      %v993 = vunpack.c.h.b16 %v570
      %v994 = vunpack.c.l.b16 %v571
      %v995 = vunpack.c.h.b16 %v571
      %v996 = vunpack.c.l.b16 %v572
      %v997 = vunpack.c.h.b16 %v572
      %v998 = vunpack.c.l.b16 %v573
      %v999 = vunpack.c.h.b16 %v573
      %v1000 = vunpack.c.l.b16 %v574
      %v1001 = vunpack.c.h.b16 %v574
      %v1002 = vunpack.c.l.b16 %v575
      %v1003 = vunpack.c.h.b16 %v575
      %v1004 = vunpack.c.l.b16 %v576
      %v1005 = vunpack.c.h.b16 %v576
      %v1006 = vunpack.c.l.b16 %v577
      %v1007 = vunpack.c.h.b16 %v577
      %v1008 = vunpack.c.l.b16 %v578
      %v1009 = vunpack.c.h.b16 %v578
      %v1010 = vunpack.c.l.b16 %v579
      %v1011 = vunpack.c.h.b16 %v579
      %v1012 = vunpack.c.l.b16 %v580
      %v1013 = vunpack.c.h.b16 %v580
      %v1014 = vunpack.c.l.b16 %v581
      %v1015 = vunpack.c.h.b16 %v581
      %v1016 = vunpack.c.l.b16 %v582
      %v1017 = vunpack.c.h.b16 %v582
      %v1018 = vunpack.c.l.b16 %v583
      %v1019 = vunpack.c.h.b16 %v583
      %v1020 = vunpack.c.l.b16 %v584
      %v1021 = vunpack.c.h.b16 %v584
      %v1022 = vunpack.c.l.b16 %v585
      %v1023 = vunpack.c.h.b16 %v585
      %v1024 = vunpack.c.l.b16 %v586
      %v1025 = vunpack.c.h.b16 %v586
      %v1026 = vunpack.c.l.b16 %v587
      %v1027 = vunpack.c.h.b16 %v587
      %v1028 = vunpack.c.l.b16 %v588
      %v1029 = vunpack.c.h.b16 %v588
      %v1030 = vunpack.c.l.b16 %v589
      %v1031 = vunpack.c.h.b16 %v589
      %v1032 = vunpack.c.l.b16 %v590
      %v1033 = vunpack.c.h.b16 %v590
      %v1034 = vunpack.c.l.b16 %v591
      %v1035 = vunpack.c.h.b16 %v591
      %v1036 = vunpack.c.l.b16 %v592
      %v1037 = vunpack.c.h.b16 %v592
      %v1038 = vunpack.c.l.b16 %v593
      %v1039 = vunpack.c.h.b16 %v593
      %v1040 = vunpack.c.l.b16 %v594
      %v1041 = vunpack.c.h.b16 %v594
      %v1042 = vunpack.c.l.b16 %v595
      %v1043 = vunpack.c.h.b16 %v595
      %v1044 = vunpack.c.l.b16 %v596
      %v1045 = vunpack.c.h.b16 %v596
      %v1046 = vunpack.c.l.b16 %v597
      %v1047 = vunpack.c.h.b16 %v597
      %v1048 = vunpack.c.l.b16 %v598
      %v1049 = vunpack.c.h.b16 %v598
      %v1050 = vunpack.c.l.b16 %v599
      %v1051 = vunpack.c.h.b16 %v599
      %v1052 = vunpack.c.l.b16 %v600
      %v1053 = vunpack.c.h.b16 %v600
      %v1054 = vunpack.c.l.b16 %v601
      %v1055 = vunpack.c.h.b16 %v601
      %v1056 = vunpack.c.l.b16 %v602
      %v1057 = vunpack.c.h.b16 %v602
      %v1058 = vunpack.c.l.b16 %v603
      %v1059 = vunpack.c.h.b16 %v603
      %v1060 = vunpack.c.l.b16 %v604
      %v1061 = vunpack.c.h.b16 %v604
      %v1062 = vunpack.c.l.b16 %v605
      %v1063 = vunpack.c.h.b16 %v605
      %v1064 = vunpack.c.l.b16 %v606
      %v1065 = vunpack.c.h.b16 %v606
      %v1066 = vunpack.c.l.b16 %v607
      %v1067 = vunpack.c.h.b16 %v607
      %v1068 = vunpack.c.l.b16 %v608
      %v1069 = vunpack.c.h.b16 %v608
      %v1070 = vunpack.c.l.b16 %v609
      %v1071 = vunpack.c.h.b16 %v609
      %v1072 = vunpack.c.l.b16 %v610
      %v1073 = vunpack.c.h.b16 %v610
      %v1074 = vunpack.c.l.b16 %v611
      %v1075 = vunpack.c.h.b16 %v611
      %v1076 = vunpack.c.l.b16 %v612
      %v1077 = vunpack.c.h.b16 %v612
      %v1078 = vunpack.c.l.b16 %v613
      %v1079 = vunpack.c.h.b16 %v613
      %v1080 = vunpack.c.l.b16 %v614
      %v1081 = vunpack.c.h.b16 %v614
      %v1082 = vunpack.c.l.b16 %v615
      %v1083 = vunpack.c.h.b16 %v615
      %v1084 = vunpack.c.l.b16 %v616
      %v1085 = vunpack.c.h.b16 %v616
      %v1086 = vunpack.c.l.b16 %v617
      %v1087 = vunpack.c.h.b16 %v617
      %v1088 = vunpack.c.l.b16 %v618
      %v1089 = vunpack.c.h.b16 %v618
      %v1090 = vunpack.c.l.b16 %v619
      %v1091 = vunpack.c.h.b16 %v619
      %v1092 = vunpack.c.l.b16 %v620
      %v1093 = vunpack.c.h.b16 %v620
      %v1094 = vunpack.c.l.b16 %v621
      %v1095 = vunpack.c.h.b16 %v621
      %v1096 = vunpack.c.l.b16 %v622
      %v1097 = vunpack.c.h.b16 %v622
      %v1098 = vunpack.c.l.b16 %v623
      %v1099 = vunpack.c.h.b16 %v623
      %v1100 = vunpack.c.l.b16 %v624
      %v1101 = vunpack.c.h.b16 %v624
      %v1102 = vunpack.c.l.b16 %v625
      %v1103 = vunpack.c.h.b16 %v625
      %v1104 = vunpack.c.l.b16 %v626
      %v1105 = vunpack.c.h.b16 %v626
      %v1106 = vunpack.c.l.b16 %v627
      %v1107 = vunpack.c.h.b16 %v627
      %v1108 = vunpack.c.l.b16 %v628
      %v1109 = vunpack.c.h.b16 %v628
      %v1110 = vunpack.c.l.b16 %v629
      %v1111 = vunpack.c.h.b16 %v629
      %v1112 = vunpack.c.l.b16 %v630
      %v1113 = vunpack.c.h.b16 %v630
      %v1114 = vunpack.c.l.b16 %v631
      %v1115 = vunpack.c.h.b16 %v631
      %v1116 = vunpack.c.l.b16 %v632
      %v1117 = vunpack.c.h.b16 %v632
      %v1118 = vunpack.c.l.b16 %v633
      %v1119 = vunpack.c.h.b16 %v633
      %v1120 = vunpack.c.l.b16 %v634
      %v1121 = vunpack.c.h.b16 %v634
      %v1122 = vunpack.c.l.b16 %v635
      %v1123 = vunpack.c.h.b16 %v635
      %v1124 = vunpack.c.l.b16 %v636
      %v1125 = vunpack.c.h.b16 %v636
      %v1126 = vunpack.c.l.b16 %v637
      %v1127 = vunpack.c.h.b16 %v637
      %v1128 = vunpack.c.l.b16 %v638
      %v1129 = vunpack.c.h.b16 %v638
      %v1130 = vunpack.c.l.b16 %v639
      %v1131 = vunpack.c.h.b16 %v639
      %v1132 = vunpack.c.l.b16 %v640
      %v1133 = vunpack.c.h.b16 %v640
      %v1134 = vunpack.c.l.b16 %v641
      %v1135 = vunpack.c.h.b16 %v641
      %v1136 = vunpack.c.l.b16 %v642
      %v1137 = vunpack.c.h.b16 %v642
      %v1138 = vunpack.c.l.b16 %v643
      %v1139 = vunpack.c.h.b16 %v643
      %v1140 = vunpack.c.l.b16 %v644
      %v1141 = vunpack.c.h.b16 %v644
      %v1142 = vunpack.c.l.b16 %v645
      %v1143 = vunpack.c.h.b16 %v645
      %v1144 = vunpack.c.l.b16 %v646
      %v1145 = vunpack.c.h.b16 %v646
      %v1146 = vunpack.c.l.b16 %v647
      %v1147 = vunpack.c.h.b16 %v647
      %v1148 = vunpack.c.l.b16 %v648
      %v1149 = vunpack.c.h.b16 %v648
      %v1150 = vunpack.c.l.b16 %v649
      %v1151 = vunpack.c.h.b16 %v649
      %v1152 = vunpack.c.l.b16 %v650
      %v1153 = vunpack.c.h.b16 %v650
      %v1154 = vunpack.c.l.b16 %v651
      %v1155 = vunpack.c.h.b16 %v651
      %v1156 = vunpack.c.l.b16 %v652
      %v1157 = vunpack.c.h.b16 %v652
      %v1158 = vunpack.c.l.b16 %v653
      %v1159 = vunpack.c.h.b16 %v653
      %v1160 = vunpack.c.l.b16 %v654
      %v1161 = vunpack.c.h.b16 %v654
      %v1162 = vunpack.c.l.b16 %v655
      %v1163 = vunpack.c.h.b16 %v655
      %v1164 = vunpack.c.l.b16 %v656
      %v1165 = vunpack.c.h.b16 %v656
      %v1166 = vunpack.c.l.b16 %v657
      %v1167 = vunpack.c.h.b16 %v657
      %v1168 = vunpack.c.l.b16 %v658
      %v1169 = vunpack.c.h.b16 %v658
      %v1170 = vunpack.c.l.b16 %v659
      %v1171 = vunpack.c.h.b16 %v659
      %v1172 = vunpack.c.l.b16 %v660
      %v1173 = vunpack.c.h.b16 %v660
      %v1174 = vunpack.c.l.b16 %v661
      %v1175 = vunpack.c.h.b16 %v661
      %v1176 = vunpack.c.l.b16 %v662
      %v1177 = vunpack.c.h.b16 %v662
      %v1178 = vunpack.c.l.b16 %v663
      %v1179 = vunpack.c.h.b16 %v663
      %v1180 = vunpack.c.l.b16 %v664
      %v1181 = vunpack.c.h.b16 %v664
      %v1182 = vunpack.c.l.b16 %v665
      %v1183 = vunpack.c.h.b16 %v665
      %v1184 = vunpack.c.l.b16 %v666
      %v1185 = vunpack.c.h.b16 %v666
      %v1186 = vunpack.c.l.b16 %v667
      %v1187 = vunpack.c.h.b16 %v667
      %v1188 = vunpack.c.l.b16 %v668
      %v1189 = vunpack.c.h.b16 %v668
      %v1190 = vunpack.c.l.b16 %v669
      %v1191 = vunpack.c.h.b16 %v669
      %v1192 = vunpack.c.l.b16 %v670
      %v1193 = vunpack.c.h.b16 %v670
      %v1194 = vunpack.c.l.b16 %v671
      %v1195 = vunpack.c.h.b16 %v671
      %v1196 = vunpack.c.l.b16 %v672
      %v1197 = vunpack.c.h.b16 %v672
      %v1198 = vunpack.c.l.b16 %v673
      %v1199 = vunpack.c.h.b16 %v673
      %v1200 = vunpack.c.l.b16 %v674
      %v1201 = vunpack.c.h.b16 %v674
      %v1202 = vunpack.c.l.b16 %v675
      %v1203 = vunpack.c.h.b16 %v675
      %v1204 = vunpack.c.l.b16 %v676
      %v1205 = vunpack.c.h.b16 %v676
      %v1206 = vunpack.c.l.b16 %v677
      %v1207 = vunpack.c.h.b16 %v677
      %v1208 = vunpack.c.l.b16 %v678
      %v1209 = vunpack.c.h.b16 %v678
      %v1210 = vunpack.c.l.b16 %v679
      %v1211 = vunpack.c.h.b16 %v679
      %v1212 = vunpack.c.l.b16 %v680
      %v1213 = vunpack.c.h.b16 %v680
      %v1214 = vunpack.c.l.b16 %v681
      %v1215 = vunpack.c.h.b16 %v681
      %v1216 = vunpack.c.l.b16 %v682
      %v1217 = vunpack.c.h.b16 %v682
      %v1218 = vunpack.c.l.b16 %v683
      %v1219 = vunpack.c.h.b16 %v683
      %v1220 = vunpack.c.l.b16 %v684
      %v1221 = vunpack.c.h.b16 %v684
      %v1222 = vunpack.c.l.b16 %v685
      %v1223 = vunpack.c.h.b16 %v685
      %v1224 = vunpack.c.l.b16 %v686
      %v1225 = vunpack.c.h.b16 %v686
      %v1226 = vunpack.c.l.b16 %v687
      %v1227 = vunpack.c.h.b16 %v687
      %v1228 = vunpack.c.l.b16 %v688
      %v1229 = vunpack.c.h.b16 %v688
      %v1230 = vunpack.c.l.b16 %v689
      %v1231 = vunpack.c.h.b16 %v689
      %v1232 = vunpack.c.l.b16 %v690
      %v1233 = vunpack.c.h.b16 %v690
      %v1234 = vunpack.c.l.b16 %v691
      %v1235 = vunpack.c.h.b16 %v691
      %v1236 = vunpack.c.l.b16 %v692
      %v1237 = vunpack.c.h.b16 %v692
      %v1238 = vunpack.c.l.b16 %v693
      %v1239 = vunpack.c.h.b16 %v693
      %v1240 = vunpack.c.l.b16 %v694
      %v1241 = vunpack.c.h.b16 %v694
      %v1242 = vunpack.c.l.b16 %v695
      %v1243 = vunpack.c.h.b16 %v695
      %v1244 = vunpack.c.l.b16 %v696
      %v1245 = vunpack.c.h.b16 %v696
      %v1246 = vunpack.c.l.b16 %v697
      %v1247 = vunpack.c.h.b16 %v697
      %v1248 = vunpack.c.l.b16 %v698
      %v1249 = vunpack.c.h.b16 %v698
      %v1250 = vunpack.c.l.b16 %v699
      %v1251 = vunpack.c.h.b16 %v699
      %v1252 = vunpack.c.l.b16 %v700
      %v1253 = vunpack.c.h.b16 %v700
      %v1254 = vunpack.c.l.b16 %v701
      %v1255 = vunpack.c.h.b16 %v701
      %v1256 = vunpack.c.l.b16 %v702
      %v1257 = vunpack.c.h.b16 %v702
      %v1258 = vunpack.c.l.b16 %v703
      %v1259 = vunpack.c.h.b16 %v703
      %v1260 = vunpack.c.l.b16 %v704
      %v1261 = vunpack.c.h.b16 %v704
      %v1262 = vunpack.c.l.b16 %v705
      %v1263 = vunpack.c.h.b16 %v705
      %v1264 = vunpack.c.l.b16 %v706
      %v1265 = vunpack.c.h.b16 %v706
      %v1266 = vunpack.c.l.b16 %v707
      %v1267 = vunpack.c.h.b16 %v707
      %v1268 = vunpack.c.l.b16 %v708
      %v1269 = vunpack.c.h.b16 %v708
      %v1270 = vunpack.c.l.b16 %v709
      %v1271 = vunpack.c.h.b16 %v709
      %v1272 = vunpack.c.l.b16 %v710
      %v1273 = vunpack.c.h.b16 %v710
      %v1274 = vunpack.c.l.b16 %v711
      %v1275 = vunpack.c.h.b16 %v711
      %v1276 = vunpack.c.l.b16 %v712
      %v1277 = vunpack.c.h.b16 %v712
      %v1278 = vunpack.c.l.b16 %v713
      %v1279 = vunpack.c.h.b16 %v713
      %v1280 = vunpack.c.l.b16 %v714
      %v1281 = vunpack.c.h.b16 %v714
      %v1282 = vunpack.c.l.b16 %v715
      %v1283 = vunpack.c.h.b16 %v715
      %v1284 = vunpack.c.l.b16 %v716
      %v1285 = vunpack.c.h.b16 %v716
      %v1286 = vunpack.c.l.b16 %v717
      %v1287 = vunpack.c.h.b16 %v717
      %v1288 = vunpack.c.l.b16 %v718
      %v1289 = vunpack.c.h.b16 %v718
      %v1290 = vunpack.c.l.b16 %v719
      %v1291 = vunpack.c.h.b16 %v719
      %v1292 = vunpack.c.l.b16 %v720
      %v1293 = vunpack.c.h.b16 %v720
      %v1294 = vunpack.c.l.b16 %v721
      %v1295 = vunpack.c.h.b16 %v721
      %v1296 = vunpack.c.l.b16 %v722
      %v1297 = vunpack.c.h.b16 %v722
      %v1298 = vunpack.c.l.b16 %v723
      %v1299 = vunpack.c.h.b16 %v723
      %v1300 = vunpack.c.l.b16 %v724
      %v1301 = vunpack.c.h.b16 %v724
      %v1302 = vunpack.c.l.b16 %v725
      %v1303 = vunpack.c.h.b16 %v725
      %v1304 = vunpack.c.l.b16 %v726
      %v1305 = vunpack.c.h.b16 %v726
      %v1306 = vunpack.c.l.b16 %v727
      %v1307 = vunpack.c.h.b16 %v727
      %v1308 = vunpack.c.l.b16 %v728
      %v1309 = vunpack.c.h.b16 %v728
      %v1310 = vunpack.c.l.b16 %v729
      %v1311 = vunpack.c.h.b16 %v729
      %v1312 = vunpack.c.l.b16 %v730
      %v1313 = vunpack.c.h.b16 %v730
      %v1314 = vunpack.c.l.b16 %v731
      %v1315 = vunpack.c.h.b16 %v731
      %v1316 = vunpack.c.l.b16 %v732
      %v1317 = vunpack.c.h.b16 %v732
      %v1318 = vunpack.c.l.b16 %v733
      %v1319 = vunpack.c.h.b16 %v733
      %v1320 = vunpack.c.l.b16 %v734
      %v1321 = vunpack.c.h.b16 %v734
      %v1322 = vunpack.c.l.b16 %v735
      %v1323 = vunpack.c.h.b16 %v735
      %v1324 = vunpack.c.l.b16 %v736
      %v1325 = vunpack.c.h.b16 %v736
      %v1326 = vunpack.c.l.b16 %v737
      %v1327 = vunpack.c.h.b16 %v737
      %v1328 = vunpack.c.l.b16 %v738
      %v1329 = vunpack.c.h.b16 %v738
      %v1330 = vunpack.c.l.b16 %v739
      %v1331 = vunpack.c.h.b16 %v739
      %v1332 = vunpack.c.l.b16 %v740
      %v1333 = vunpack.c.h.b16 %v740
      %v1334 = vunpack.c.l.b16 %v741
      %v1335 = vunpack.c.h.b16 %v741
      %v1336 = vunpack.c.l.b16 %v742
      %v1337 = vunpack.c.h.b16 %v742
      %v1338 = vunpack.c.l.b16 %v743
      %v1339 = vunpack.c.h.b16 %v743
      %v1340 = vunpack.c.l.b16 %v744
      %v1341 = vunpack.c.h.b16 %v744
      %v1342 = vunpack.c.l.b16 %v745
      %v1343 = vunpack.c.h.b16 %v745
      %v1344 = vunpack.c.l.b16 %v746
      %v1345 = vunpack.c.h.b16 %v746
      %v1346 = vunpack.c.l.b16 %v747
      %v1347 = vunpack.c.h.b16 %v747
      %v1348 = vunpack.c.l.b16 %v748
      %v1349 = vunpack.c.h.b16 %v748
      %v1350 = vunpack.c.l.b16 %v749
      %v1351 = vunpack.c.h.b16 %v749
      %v1352 = vunpack.c.l.b16 %v750
      %v1353 = vunpack.c.h.b16 %v750
      %v1354 = vunpack.c.l.b16 %v751
      %v1355 = vunpack.c.h.b16 %v751
      %v1356 = vunpack.c.l.b16 %v752
      %v1357 = vunpack.c.h.b16 %v752
      %v1358 = vunpack.c.l.b16 %v753
      %v1359 = vunpack.c.h.b16 %v753
      %v1360 = vunpack.c.l.b16 %v754
      %v1361 = vunpack.c.h.b16 %v754
      %v1362 = vunpack.c.l.b16 %v755
      %v1363 = vunpack.c.h.b16 %v755
      %v1364 = vunpack.c.l.b16 %v756
      %v1365 = vunpack.c.h.b16 %v756
      %v1366 = vunpack.c.l.b16 %v757
      %v1367 = vunpack.c.h.b16 %v757
      %v1368 = vpack.c.b16 %v980, %v976
      %v1369 = vpack.c.b16 %v981, %v977
      %v1370 = vpack.c.b16 %v982, %v978
      %v1371 = vpack.c.b16 %v983, %v979
      %v1372 = vpack.c.b16 %v988, %v984
      %v1373 = vpack.c.b16 %v989, %v985
      %v1374 = vpack.c.b16 %v990, %v986
      %v1375 = vpack.c.b16 %v991, %v987
      %v1376 = vpack.c.b16 %v996, %v992
      %v1377 = vpack.c.b16 %v997, %v993
      %v1378 = vpack.c.b16 %v998, %v994
      %v1379 = vpack.c.b16 %v999, %v995
      %v1380 = vpack.c.b16 %v1004, %v1000
      %v1381 = vpack.c.b16 %v1005, %v1001
      %v1382 = vpack.c.b16 %v1006, %v1002
      %v1383 = vpack.c.b16 %v1007, %v1003
      %v1384 = vpack.c.b16 %v1012, %v1008
      %v1385 = vpack.c.b16 %v1013, %v1009
      %v1386 = vpack.c.b16 %v1014, %v1010
      %v1387 = vpack.c.b16 %v1015, %v1011
      %v1388 = vpack.c.b16 %v1020, %v1016
      %v1389 = vpack.c.b16 %v1021, %v1017
      %v1390 = vpack.c.b16 %v1022, %v1018
      %v1391 = vpack.c.b16 %v1023, %v1019
      %v1392 = vpack.c.b16 %v1028, %v1024
      %v1393 = vpack.c.b16 %v1029, %v1025
      %v1394 = vpack.c.b16 %v1030, %v1026
      %v1395 = vpack.c.b16 %v1031, %v1027
      %v1396 = vpack.c.b16 %v1036, %v1032
      %v1397 = vpack.c.b16 %v1037, %v1033
      %v1398 = vpack.c.b16 %v1038, %v1034
      %v1399 = vpack.c.b16 %v1039, %v1035
      %v1400 = vpack.c.b16 %v1044, %v1040
      %v1401 = vpack.c.b16 %v1045, %v1041
      %v1402 = vpack.c.b16 %v1046, %v1042
      %v1403 = vpack.c.b16 %v1047, %v1043
      %v1404 = vpack.c.b16 %v1052, %v1048
      %v1405 = vpack.c.b16 %v1053, %v1049
      %v1406 = vpack.c.b16 %v1054, %v1050
      %v1407 = vpack.c.b16 %v1055, %v1051
      %v1408 = vpack.c.b16 %v1060, %v1056
      %v1409 = vpack.c.b16 %v1061, %v1057
      %v1410 = vpack.c.b16 %v1062, %v1058
      %v1411 = vpack.c.b16 %v1063, %v1059
      %v1412 = vpack.c.b16 %v1068, %v1064
      %v1413 = vpack.c.b16 %v1069, %v1065
      %v1414 = vpack.c.b16 %v1070, %v1066
      %v1415 = vpack.c.b16 %v1071, %v1067
      %v1416 = vpack.c.b16 %v1076, %v1072
      %v1417 = vpack.c.b16 %v1077, %v1073
      %v1418 = vpack.c.b16 %v1078, %v1074
      %v1419 = vpack.c.b16 %v1079, %v1075
      %v1420 = vpack.c.b16 %v1084, %v1080
      %v1421 = vpack.c.b16 %v1085, %v1081
      %v1422 = vpack.c.b16 %v1086, %v1082
      %v1423 = vpack.c.b16 %v1087, %v1083
      %v1424 = vpack.c.b16 %v1092, %v1088
      %v1425 = vpack.c.b16 %v1093, %v1089
      %v1426 = vpack.c.b16 %v1094, %v1090
      %v1427 = vpack.c.b16 %v1095, %v1091
      %v1428 = vpack.c.b16 %v1100, %v1096
      %v1429 = vpack.c.b16 %v1101, %v1097
      %v1430 = vpack.c.b16 %v1102, %v1098
      %v1431 = vpack.c.b16 %v1103, %v1099
      %v1432 = vpack.c.b16 %v1108, %v1104
      %v1433 = vpack.c.b16 %v1109, %v1105
      %v1434 = vpack.c.b16 %v1110, %v1106
      %v1435 = vpack.c.b16 %v1111, %v1107
      %v1436 = vpack.c.b16 %v1116, %v1112
      %v1437 = vpack.c.b16 %v1117, %v1113
      %v1438 = vpack.c.b16 %v1118, %v1114
      %v1439 = vpack.c.b16 %v1119, %v1115
      %v1440 = vpack.c.b16 %v1124, %v1120
      %v1441 = vpack.c.b16 %v1125, %v1121
      %v1442 = vpack.c.b16 %v1126, %v1122
      %v1443 = vpack.c.b16 %v1127, %v1123
      %v1444 = vpack.c.b16 %v1132, %v1128
      %v1445 = vpack.c.b16 %v1133, %v1129
      %v1446 = vpack.c.b16 %v1134, %v1130
      %v1447 = vpack.c.b16 %v1135, %v1131
      %v1448 = vpack.c.b16 %v1140, %v1136
      %v1449 = vpack.c.b16 %v1141, %v1137
      %v1450 = vpack.c.b16 %v1142, %v1138
      %v1451 = vpack.c.b16 %v1143, %v1139
      %v1452 = vpack.c.b16 %v1148, %v1144
      %v1453 = vpack.c.b16 %v1149, %v1145
      %v1454 = vpack.c.b16 %v1150, %v1146
      %v1455 = vpack.c.b16 %v1151, %v1147
      %v1456 = vpack.c.b16 %v1156, %v1152
      %v1457 = vpack.c.b16 %v1157, %v1153
      %v1458 = vpack.c.b16 %v1158, %v1154
      %v1459 = vpack.c.b16 %v1159, %v1155
      %v1460 = vpack.c.b16 %v1164, %v1160
      %v1461 = vpack.c.b16 %v1165, %v1161
      %v1462 = vpack.c.b16 %v1166, %v1162
      %v1463 = vpack.c.b16 %v1167, %v1163
      %v1464 = vpack.c.b16 %v1172, %v1168
      %v1465 = vpack.c.b16 %v1173, %v1169
      %v1466 = vpack.c.b16 %v1174, %v1170
      %v1467 = vpack.c.b16 %v1175, %v1171
      %v1468 = vpack.c.b16 %v1180, %v1176
      %v1469 = vpack.c.b16 %v1181, %v1177
      %v1470 = vpack.c.b16 %v1182, %v1178
      %v1471 = vpack.c.b16 %v1183, %v1179
      %v1472 = vpack.c.b16 %v1188, %v1184
      %v1473 = vpack.c.b16 %v1189, %v1185
      %v1474 = vpack.c.b16 %v1190, %v1186
      %v1475 = vpack.c.b16 %v1191, %v1187
      %v1476 = vpack.c.b16 %v1196, %v1192
      %v1477 = vpack.c.b16 %v1197, %v1193
      %v1478 = vpack.c.b16 %v1198, %v1194
      %v1479 = vpack.c.b16 %v1199, %v1195
      %v1480 = vpack.c.b16 %v1204, %v1200
      %v1481 = vpack.c.b16 %v1205, %v1201
      %v1482 = vpack.c.b16 %v1206, %v1202
      %v1483 = vpack.c.b16 %v1207, %v1203
      %v1484 = vpack.c.b16 %v1212, %v1208
      %v1485 = vpack.c.b16 %v1213, %v1209
      %v1486 = vpack.c.b16 %v1214, %v1210
      %v1487 = vpack.c.b16 %v1215, %v1211
      %v1488 = vpack.c.b16 %v1220, %v1216
      %v1489 = vpack.c.b16 %v1221, %v1217
      %v1490 = vpack.c.b16 %v1222, %v1218
      %v1491 = vpack.c.b16 %v1223, %v1219
      %v1492 = vpack.c.b16 %v1228, %v1224
      %v1493 = vpack.c.b16 %v1229, %v1225
      %v1494 = vpack.c.b16 %v1230, %v1226
      %v1495 = vpack.c.b16 %v1231, %v1227
      %v1496 = vpack.c.b16 %v1236, %v1232
      %v1497 = vpack.c.b16 %v1237, %v1233
      %v1498 = vpack.c.b16 %v1238, %v1234
      %v1499 = vpack.c.b16 %v1239, %v1235
      %v1500 = vpack.c.b16 %v1244, %v1240
      %v1501 = vpack.c.b16 %v1245, %v1241
      %v1502 = vpack.c.b16 %v1246, %v1242
      %v1503 = vpack.c.b16 %v1247, %v1243
      %v1504 = vpack.c.b16 %v1252, %v1248
      %v1505 = vpack.c.b16 %v1253, %v1249
      %v1506 = vpack.c.b16 %v1254, %v1250
      %v1507 = vpack.c.b16 %v1255, %v1251
      %v1508 = vpack.c.b16 %v1260, %v1256
      %v1509 = vpack.c.b16 %v1261, %v1257
      %v1510 = vpack.c.b16 %v1262, %v1258
      %v1511 = vpack.c.b16 %v1263, %v1259
      %v1512 = vpack.c.b16 %v1268, %v1264
      %v1513 = vpack.c.b16 %v1269, %v1265
      %v1514 = vpack.c.b16 %v1270, %v1266
      %v1515 = vpack.c.b16 %v1271, %v1267
      %v1516 = vpack.c.b16 %v1276, %v1272
      %v1517 = vpack.c.b16 %v1277, %v1273
      %v1518 = vpack.c.b16 %v1278, %v1274
      %v1519 = vpack.c.b16 %v1279, %v1275
      %v1520 = vpack.c.b16 %v1284, %v1280
      %v1521 = vpack.c.b16 %v1285, %v1281
      %v1522 = vpack.c.b16 %v1286, %v1282
      %v1523 = vpack.c.b16 %v1287, %v1283
      %v1524 = vpack.c.b16 %v1292, %v1288
      %v1525 = vpack.c.b16 %v1293, %v1289
      %v1526 = vpack.c.b16 %v1294, %v1290
      %v1527 = vpack.c.b16 %v1295, %v1291
      %v1528 = vpack.c.b16 %v1300, %v1296
      %v1529 = vpack.c.b16 %v1301, %v1297
      %v1530 = vpack.c.b16 %v1302, %v1298
      %v1531 = vpack.c.b16 %v1303, %v1299
      %v1532 = vpack.c.b16 %v1308, %v1304
      %v1533 = vpack.c.b16 %v1309, %v1305
      %v1534 = vpack.c.b16 %v1310, %v1306
      %v1535 = vpack.c.b16 %v1311, %v1307
      %v1536 = vpack.c.b16 %v1316, %v1312
      %v1537 = vpack.c.b16 %v1317, %v1313
      %v1538 = vpack.c.b16 %v1318, %v1314
      %v1539 = vpack.c.b16 %v1319, %v1315
      %v1540 = vpack.c.b16 %v1324, %v1320
      %v1541 = vpack.c.b16 %v1325, %v1321
      %v1542 = vpack.c.b16 %v1326, %v1322
      %v1543 = vpack.c.b16 %v1327, %v1323
      %v1544 = vpack.c.b16 %v1332, %v1328
      %v1545 = vpack.c.b16 %v1333, %v1329
      %v1546 = vpack.c.b16 %v1334, %v1330
      %v1547 = vpack.c.b16 %v1335, %v1331
      %v1548 = vpack.c.b16 %v1340, %v1336
      %v1549 = vpack.c.b16 %v1341, %v1337
      %v1550 = vpack.c.b16 %v1342, %v1338
      %v1551 = vpack.c.b16 %v1343, %v1339
      %v1552 = vpack.c.b16 %v1348, %v1344
      %v1553 = vpack.c.b16 %v1349, %v1345
      %v1554 = vpack.c.b16 %v1350, %v1346
      %v1555 = vpack.c.b16 %v1351, %v1347
      %v1556 = vpack.c.b16 %v1356, %v1352
      %v1557 = vpack.c.b16 %v1357, %v1353
      %v1558 = vpack.c.b16 %v1358, %v1354
      %v1559 = vpack.c.b16 %v1359, %v1355
      %v1560 = vpack.c.b16 %v1364, %v1360
      %v1561 = vpack.c.b16 %v1365, %v1361
      %v1562 = vpack.c.b16 %v1366, %v1362
      %v1563 = vpack.c.b16 %v1367, %v1363
      %vm1760 = vcmask 130048
      %v1762 = vsel %vm1760, %v512, 0
      %v1765 = vsel %vm1760, %v519, 0
      %v1768 = vsel %vm1760, %v526, 0
      %v1771 = vsel %vm1760, %v533, 0
      %v1774 = vsel %vm1760, %v540, 0
      %v1777 = vsel %vm1760, %v547, 0
      %v1780 = vsel %vm1760, %v554, 0
      %v1783 = vsel %vm1760, %v561, 0
      %1785 = vmatprep.subr.bf16.mxu0 %v1369
      %1786 = vmatpush1.bf16.msra.mxu0 %v1368
      %1787 = vmatprep.subr.bf16.mxu0 %v1373
      %1788 = vmatpush1.bf16.msra.mxu0 %v1372
      %1789 = vmatprep.subr.bf16.mxu0 %v1377
      %1790 = vmatpush1.bf16.msra.mxu0 %v1376
      %1791 = vmatprep.subr.bf16.mxu0 %v1381
      %1792 = vmatpush1.bf16.msra.mxu0 %v1380
      %1793 = vmatprep.subr.bf16.mxu0 %v1385
      %1794 = vmatpush1.bf16.msra.mxu0 %v1384
      %1795 = vmatprep.subr.bf16.mxu0 %v1389
      %1796 = vmatpush1.bf16.msra.mxu0 %v1388
      %1797 = vmatprep.subr.bf16.mxu0 %v1393
      %1798 = vmatpush1.bf16.msra.mxu0 %v1392
      %1799 = vmatprep.subr.bf16.mxu0 %v1397
      %1800 = vmatpush1.bf16.msra.mxu0 %v1396
      %1801 = vmatprep.subr.bf16.mxu0 %v1401
      %1802 = vmatpush1.bf16.msra.mxu0 %v1400
      %1803 = vmatprep.subr.bf16.mxu0 %v1405
      %1804 = vmatpush1.bf16.msra.mxu0 %v1404
      %1805 = vmatprep.subr.bf16.mxu0 %v1409
      %1806 = vmatpush1.bf16.msra.mxu0 %v1408
      %1807 = vmatprep.subr.bf16.mxu0 %v1413
      %1808 = vmatpush1.bf16.msra.mxu0 %v1412
      %1809 = vmatprep.subr.bf16.mxu0 %v1417
      %1810 = vmatpush1.bf16.msra.mxu0 %v1416
      %1811 = vmatprep.subr.bf16.mxu0 %v1421
      %1812 = vmatpush1.bf16.msra.mxu0 %v1420
      %1813 = vmatprep.subr.bf16.mxu0 %v1425
      %1814 = vmatpush1.bf16.msra.mxu0 %v1424
      %1815 = vmatprep.subr.bf16.mxu0 %v1429
      %1816 = vmatpush1.bf16.msra.mxu0 %v1428
      %1817 = vmatprep.mubr.bf16.mxu0 %v507
      %1818 = vmatmul.mubr.bf16.gmra.mrb[0].mxu0 %v506
      %v1819 = vpop.f32.mrb[0].mxu0
      %v1820 = vadd.f32 %v763, %v1819
      %v1821 = vpop.f32.mrb[0].mxu0
      %v1822 = vadd.f32 %v767, %v1821
      %v1823 = vpop.f32.mrb[0].mxu0
      %v1824 = vadd.f32 %v763, %v1823
      %v1825 = vpop.f32.mrb[0].mxu0
      %v1826 = vadd.f32 %v767, %v1825
      %1827 = vmatprep.mubr.bf16.mxu0 %v514
      %1828 = vmatmul.mubr.bf16.gmra.mrb[0].mxu0 %v513
      %v1829 = vpop.f32.mrb[0].mxu0
      %v1830 = vadd.f32 %v763, %v1829
      %v1831 = vpop.f32.mrb[0].mxu0
      %v1832 = vadd.f32 %v767, %v1831
      %v1833 = vpop.f32.mrb[0].mxu0
      %v1834 = vadd.f32 %v763, %v1833
      %v1835 = vpop.f32.mrb[0].mxu0
      %v1836 = vadd.f32 %v767, %v1835
      %1837 = vmatprep.mubr.bf16.mxu0 %v521
      %1838 = vmatmul.mubr.bf16.gmra.mrb[0].mxu0 %v520
      %v1839 = vpop.f32.mrb[0].mxu0
      %v1840 = vadd.f32 %v763, %v1839
      %v1841 = vpop.f32.mrb[0].mxu0
      %v1842 = vadd.f32 %v767, %v1841
      %v1843 = vpop.f32.mrb[0].mxu0
      %v1844 = vadd.f32 %v763, %v1843
      %v1845 = vpop.f32.mrb[0].mxu0
      %v1846 = vadd.f32 %v767, %v1845
      %1847 = vmatprep.mubr.bf16.mxu0 %v528
      %1848 = vmatmul.mubr.bf16.gmra.mrb[0].mxu0 %v527
      %v1849 = vpop.f32.mrb[0].mxu0
      %v1850 = vadd.f32 %v763, %v1849
      %v1851 = vpop.f32.mrb[0].mxu0
      %v1852 = vadd.f32 %v767, %v1851
      %v1853 = vpop.f32.mrb[0].mxu0
      %v1854 = vadd.f32 %v763, %v1853
      %v1855 = vpop.f32.mrb[0].mxu0
      %v1856 = vadd.f32 %v767, %v1855
      %1857 = vmatprep.mubr.bf16.mxu0 %v535
      %1858 = vmatmul.mubr.bf16.gmra.mrb[0].mxu0 %v534
      %v1859 = vpop.f32.mrb[0].mxu0
      %v1860 = vadd.f32 %v763, %v1859
      %v1861 = vpop.f32.mrb[0].mxu0
      %v1862 = vadd.f32 %v767, %v1861
      %v1863 = vpop.f32.mrb[0].mxu0
      %v1864 = vadd.f32 %v763, %v1863
      %v1865 = vpop.f32.mrb[0].mxu0
      %v1866 = vadd.f32 %v767, %v1865
      %1867 = vmatprep.mubr.bf16.mxu0 %v542
      %1868 = vmatmul.mubr.bf16.gmra.mrb[0].mxu0 %v541
      %v1869 = vpop.f32.mrb[0].mxu0
      %v1870 = vadd.f32 %v763, %v1869
      %v1871 = vpop.f32.mrb[0].mxu0
      %v1872 = vadd.f32 %v767, %v1871
      %v1873 = vpop.f32.mrb[0].mxu0
      %v1874 = vadd.f32 %v763, %v1873
      %v1875 = vpop.f32.mrb[0].mxu0
      %v1876 = vadd.f32 %v767, %v1875
      %1877 = vmatprep.mubr.bf16.mxu0 %v549
      %1878 = vmatmul.mubr.bf16.gmra.mrb[0].mxu0 %v548
      %v1879 = vpop.f32.mrb[0].mxu0
      %v1880 = vadd.f32 %v763, %v1879
      %v1881 = vpop.f32.mrb[0].mxu0
      %v1882 = vadd.f32 %v767, %v1881
      %v1883 = vpop.f32.mrb[0].mxu0
      %v1884 = vadd.f32 %v763, %v1883
      %v1885 = vpop.f32.mrb[0].mxu0
      %v1886 = vadd.f32 %v767, %v1885
      %1887 = vmatprep.mubr.bf16.mxu0 %v556
      %1888 = vmatmul.mubr.bf16.gmra.mrb[0].mxu0 %v555
      %v1889 = vpop.f32.mrb[0].mxu0
      %v1890 = vadd.f32 %v763, %v1889
      %v1891 = vpop.f32.mrb[0].mxu0
      %v1892 = vadd.f32 %v767, %v1891
      %v1893 = vpop.f32.mrb[0].mxu0
      %v1894 = vadd.f32 %v763, %v1893
      %v1895 = vpop.f32.mrb[0].mxu0
      %v1896 = vadd.f32 %v767, %v1895
      %1897 = vdwg.mxu0
      %1898 = vmatprep.subr.bf16.mxu0 %v1433
      %1899 = vmatpush1.bf16.msra.mxu0 %v1432
      %1900 = vmatprep.subr.bf16.mxu0 %v1437
      %1901 = vmatpush1.bf16.msra.mxu0 %v1436
      %1902 = vmatprep.subr.bf16.mxu0 %v1441
      %1903 = vmatpush1.bf16.msra.mxu0 %v1440
      %1904 = vmatprep.subr.bf16.mxu0 %v1445
      %1905 = vmatpush1.bf16.msra.mxu0 %v1444
      %1906 = vmatprep.subr.bf16.mxu0 %v1449
      %1907 = vmatpush1.bf16.msra.mxu0 %v1448
      %1908 = vmatprep.subr.bf16.mxu0 %v1453
      %1909 = vmatpush1.bf16.msra.mxu0 %v1452
      %1910 = vmatprep.subr.bf16.mxu0 %v1457
      %1911 = vmatpush1.bf16.msra.mxu0 %v1456
      %1912 = vmatprep.subr.bf16.mxu0 %v1461
      %1913 = vmatpush1.bf16.msra.mxu0 %v1460
      %1914 = vmatprep.subr.bf16.mxu0 %v1465
      %1915 = vmatpush1.bf16.msra.mxu0 %v1464
      %1916 = vmatprep.subr.bf16.mxu0 %v1469
      %1917 = vmatpush1.bf16.msra.mxu0 %v1468
      %1918 = vmatprep.subr.bf16.mxu0 %v1473
      %1919 = vmatpush1.bf16.msra.mxu0 %v1472
      %1920 = vmatprep.subr.bf16.mxu0 %v1477
      %1921 = vmatpush1.bf16.msra.mxu0 %v1476
      %1922 = vmatprep.subr.bf16.mxu0 %v1481
      %1923 = vmatpush1.bf16.msra.mxu0 %v1480
      %1924 = vmatprep.subr.bf16.mxu0 %v1485
      %1925 = vmatpush1.bf16.msra.mxu0 %v1484
      %1926 = vmatprep.subr.bf16.mxu0 %v1489
      %1927 = vmatpush1.bf16.msra.mxu0 %v1488
      %1928 = vmatprep.subr.bf16.mxu0 %v1493
      %1929 = vmatpush1.bf16.msra.mxu0 %v1492
      %1930 = vmatprep.mubr.bf16.mxu0 %v509
      %1931 = vmatmul.mubr.bf16.gmra.mrb[0].mxu0 %v508
      %v1932 = vpop.f32.mrb[0].mxu0
      %v1933 = vadd.f32 %v1820, %v1932
      %v1934 = vpop.f32.mrb[0].mxu0
      %v1935 = vadd.f32 %v1822, %v1934
      %v1936 = vpop.f32.mrb[0].mxu0
      %v1937 = vadd.f32 %v1824, %v1936
      %v1938 = vpop.f32.mrb[0].mxu0
      %v1939 = vadd.f32 %v1826, %v1938
      %1940 = vmatprep.mubr.bf16.mxu0 %v516
      %1941 = vmatmul.mubr.bf16.gmra.mrb[0].mxu0 %v515
      %v1942 = vpop.f32.mrb[0].mxu0
      %v1943 = vadd.f32 %v1830, %v1942
      %v1944 = vpop.f32.mrb[0].mxu0
      %v1945 = vadd.f32 %v1832, %v1944
      %v1946 = vpop.f32.mrb[0].mxu0
      %v1947 = vadd.f32 %v1834, %v1946
      %v1948 = vpop.f32.mrb[0].mxu0
      %v1949 = vadd.f32 %v1836, %v1948
      %1950 = vmatprep.mubr.bf16.mxu0 %v523
      %1951 = vmatmul.mubr.bf16.gmra.mrb[0].mxu0 %v522
      %v1952 = vpop.f32.mrb[0].mxu0
      %v1953 = vadd.f32 %v1840, %v1952
      %v1954 = vpop.f32.mrb[0].mxu0
      %v1955 = vadd.f32 %v1842, %v1954
      %v1956 = vpop.f32.mrb[0].mxu0
      %v1957 = vadd.f32 %v1844, %v1956
      %v1958 = vpop.f32.mrb[0].mxu0
      %v1959 = vadd.f32 %v1846, %v1958
      %1960 = vmatprep.mubr.bf16.mxu0 %v530
      %1961 = vmatmul.mubr.bf16.gmra.mrb[0].mxu0 %v529
      %v1962 = vpop.f32.mrb[0].mxu0
      %v1963 = vadd.f32 %v1850, %v1962
      %v1964 = vpop.f32.mrb[0].mxu0
      %v1965 = vadd.f32 %v1852, %v1964
      %v1966 = vpop.f32.mrb[0].mxu0
      %v1967 = vadd.f32 %v1854, %v1966
      %v1968 = vpop.f32.mrb[0].mxu0
      %v1969 = vadd.f32 %v1856, %v1968
      %1970 = vmatprep.mubr.bf16.mxu0 %v537
      %1971 = vmatmul.mubr.bf16.gmra.mrb[0].mxu0 %v536
      %v1972 = vpop.f32.mrb[0].mxu0
      %v1973 = vadd.f32 %v1860, %v1972
      %v1974 = vpop.f32.mrb[0].mxu0
      %v1975 = vadd.f32 %v1862, %v1974
      %v1976 = vpop.f32.mrb[0].mxu0
      %v1977 = vadd.f32 %v1864, %v1976
      %v1978 = vpop.f32.mrb[0].mxu0
      %v1979 = vadd.f32 %v1866, %v1978
      %1980 = vmatprep.mubr.bf16.mxu0 %v544
      %1981 = vmatmul.mubr.bf16.gmra.mrb[0].mxu0 %v543
      %v1982 = vpop.f32.mrb[0].mxu0
      %v1983 = vadd.f32 %v1870, %v1982
      %v1984 = vpop.f32.mrb[0].mxu0
      %v1985 = vadd.f32 %v1872, %v1984
      %v1986 = vpop.f32.mrb[0].mxu0
      %v1987 = vadd.f32 %v1874, %v1986
      %v1988 = vpop.f32.mrb[0].mxu0
      %v1989 = vadd.f32 %v1876, %v1988
      %1990 = vmatprep.mubr.bf16.mxu0 %v551
      %1991 = vmatmul.mubr.bf16.gmra.mrb[0].mxu0 %v550
      %v1992 = vpop.f32.mrb[0].mxu0
      %v1993 = vadd.f32 %v1880, %v1992
      %v1994 = vpop.f32.mrb[0].mxu0
      %v1995 = vadd.f32 %v1882, %v1994
      %v1996 = vpop.f32.mrb[0].mxu0
      %v1997 = vadd.f32 %v1884, %v1996
      %v1998 = vpop.f32.mrb[0].mxu0
      %v1999 = vadd.f32 %v1886, %v1998
      %2000 = vmatprep.mubr.bf16.mxu0 %v558
      %2001 = vmatmul.mubr.bf16.gmra.mrb[0].mxu0 %v557
      %v2002 = vpop.f32.mrb[0].mxu0
      %v2003 = vadd.f32 %v1890, %v2002
      %v2004 = vpop.f32.mrb[0].mxu0
      %v2005 = vadd.f32 %v1892, %v2004
      %v2006 = vpop.f32.mrb[0].mxu0
      %v2007 = vadd.f32 %v1894, %v2006
      %v2008 = vpop.f32.mrb[0].mxu0
      %v2009 = vadd.f32 %v1896, %v2008
      %2010 = vdwg.mxu0
      %2011 = vmatprep.subr.bf16.mxu0 %v1497
      %2012 = vmatpush1.bf16.msra.mxu0 %v1496
      %2013 = vmatprep.subr.bf16.mxu0 %v1501
      %2014 = vmatpush1.bf16.msra.mxu0 %v1500
      %2015 = vmatprep.subr.bf16.mxu0 %v1505
      %2016 = vmatpush1.bf16.msra.mxu0 %v1504
      %2017 = vmatprep.subr.bf16.mxu0 %v1509
      %2018 = vmatpush1.bf16.msra.mxu0 %v1508
      %2019 = vmatprep.subr.bf16.mxu0 %v1513
      %2020 = vmatpush1.bf16.msra.mxu0 %v1512
      %2021 = vmatprep.subr.bf16.mxu0 %v1517
      %2022 = vmatpush1.bf16.msra.mxu0 %v1516
      %2023 = vmatprep.subr.bf16.mxu0 %v1521
      %2024 = vmatpush1.bf16.msra.mxu0 %v1520
      %2025 = vmatprep.subr.bf16.mxu0 %v1525
      %2026 = vmatpush1.bf16.msra.mxu0 %v1524
      %2027 = vmatprep.subr.bf16.mxu0 %v1529
      %2028 = vmatpush1.bf16.msra.mxu0 %v1528
      %2029 = vmatprep.subr.bf16.mxu0 %v1533
      %2030 = vmatpush1.bf16.msra.mxu0 %v1532
      %2031 = vmatprep.subr.bf16.mxu0 %v1537
      %2032 = vmatpush1.bf16.msra.mxu0 %v1536
      %2033 = vmatprep.subr.bf16.mxu0 %v1541
      %2034 = vmatpush1.bf16.msra.mxu0 %v1540
      %2035 = vmatprep.subr.bf16.mxu0 %v1545
      %2036 = vmatpush1.bf16.msra.mxu0 %v1544
      %2037 = vmatprep.subr.bf16.mxu0 %v1549
      %2038 = vmatpush1.bf16.msra.mxu0 %v1548
      %2039 = vmatprep.subr.bf16.mxu0 %v1553
      %2040 = vmatpush1.bf16.msra.mxu0 %v1552
      %2041 = vmatprep.subr.bf16.mxu0 %v1557
      %2042 = vmatpush1.bf16.msra.mxu0 %v1556
      %2043 = vmatprep.mubr.bf16.mxu0 %v511
      %2044 = vmatmul.mubr.bf16.gmra.mrb[0].mxu0 %v510
      %v2045 = vpop.f32.mrb[0].mxu0
      %v2046 = vadd.f32 %v1933, %v2045
      %v2047 = vpop.f32.mrb[0].mxu0
      %v2048 = vadd.f32 %v1935, %v2047
      %v2049 = vpop.f32.mrb[0].mxu0
      %v2050 = vadd.f32 %v1937, %v2049
      %v2051 = vpop.f32.mrb[0].mxu0
      %v2052 = vadd.f32 %v1939, %v2051
      %2053 = vmatprep.mubr.bf16.mxu0 %v518
      %2054 = vmatmul.mubr.bf16.gmra.mrb[0].mxu0 %v517
      %v2055 = vpop.f32.mrb[0].mxu0
      %v2056 = vadd.f32 %v1943, %v2055
      %v2057 = vpop.f32.mrb[0].mxu0
      %v2058 = vadd.f32 %v1945, %v2057
      %v2059 = vpop.f32.mrb[0].mxu0
      %v2060 = vadd.f32 %v1947, %v2059
      %v2061 = vpop.f32.mrb[0].mxu0
      %v2062 = vadd.f32 %v1949, %v2061
      %2063 = vmatprep.mubr.bf16.mxu0 %v525
      %2064 = vmatmul.mubr.bf16.gmra.mrb[0].mxu0 %v524
      %v2065 = vpop.f32.mrb[0].mxu0
      %v2066 = vadd.f32 %v1953, %v2065
      %v2067 = vpop.f32.mrb[0].mxu0
      %v2068 = vadd.f32 %v1955, %v2067
      %v2069 = vpop.f32.mrb[0].mxu0
      %v2070 = vadd.f32 %v1957, %v2069
      %v2071 = vpop.f32.mrb[0].mxu0
      %v2072 = vadd.f32 %v1959, %v2071
      %2073 = vmatprep.mubr.bf16.mxu0 %v532
      %2074 = vmatmul.mubr.bf16.gmra.mrb[0].mxu0 %v531
      %v2075 = vpop.f32.mrb[0].mxu0
      %v2076 = vadd.f32 %v1963, %v2075
      %v2077 = vpop.f32.mrb[0].mxu0
      %v2078 = vadd.f32 %v1965, %v2077
      %v2079 = vpop.f32.mrb[0].mxu0
      %v2080 = vadd.f32 %v1967, %v2079
      %v2081 = vpop.f32.mrb[0].mxu0
      %v2082 = vadd.f32 %v1969, %v2081
      %2083 = vmatprep.mubr.bf16.mxu0 %v539
      %2084 = vmatmul.mubr.bf16.gmra.mrb[0].mxu0 %v538
      %v2085 = vpop.f32.mrb[0].mxu0
      %v2086 = vadd.f32 %v1973, %v2085
      %v2087 = vpop.f32.mrb[0].mxu0
      %v2088 = vadd.f32 %v1975, %v2087
      %v2089 = vpop.f32.mrb[0].mxu0
      %v2090 = vadd.f32 %v1977, %v2089
      %v2091 = vpop.f32.mrb[0].mxu0
      %v2092 = vadd.f32 %v1979, %v2091
      %2093 = vmatprep.mubr.bf16.mxu0 %v546
      %2094 = vmatmul.mubr.bf16.gmra.mrb[0].mxu0 %v545
      %v2095 = vpop.f32.mrb[0].mxu0
      %v2096 = vadd.f32 %v1983, %v2095
      %v2097 = vpop.f32.mrb[0].mxu0
      %v2098 = vadd.f32 %v1985, %v2097
      %v2099 = vpop.f32.mrb[0].mxu0
      %v2100 = vadd.f32 %v1987, %v2099
      %v2101 = vpop.f32.mrb[0].mxu0
      %v2102 = vadd.f32 %v1989, %v2101
      %2103 = vmatprep.mubr.bf16.mxu0 %v553
      %2104 = vmatmul.mubr.bf16.gmra.mrb[0].mxu0 %v552
      %v2105 = vpop.f32.mrb[0].mxu0
      %v2106 = vadd.f32 %v1993, %v2105
      %v2107 = vpop.f32.mrb[0].mxu0
      %v2108 = vadd.f32 %v1995, %v2107
      %v2109 = vpop.f32.mrb[0].mxu0
      %v2110 = vadd.f32 %v1997, %v2109
      %v2111 = vpop.f32.mrb[0].mxu0
      %v2112 = vadd.f32 %v1999, %v2111
      %2113 = vmatprep.mubr.bf16.mxu0 %v560
      %2114 = vmatmul.mubr.bf16.gmra.mrb[0].mxu0 %v559
      %v2115 = vpop.f32.mrb[0].mxu0
      %v2116 = vadd.f32 %v2003, %v2115
      %v2117 = vpop.f32.mrb[0].mxu0
      %v2118 = vadd.f32 %v2005, %v2117
      %v2119 = vpop.f32.mrb[0].mxu0
      %v2120 = vadd.f32 %v2007, %v2119
      %v2121 = vpop.f32.mrb[0].mxu0
      %v2122 = vadd.f32 %v2009, %v2121
      %2123 = vdwg.mxu0
      %2124 = vmatprep.subr.bf16.mxu0 %v1561
      %2125 = vmatpush1.bf16.msra.mxu0 %v1560
      %2126 = vmatprep.subr.bf16.mxu0 0
      %2127 = vmatpush1.bf16.msra.mxu0 0
      %2128 = vmatprep.subr.bf16.mxu0 0
      %2129 = vmatpush1.bf16.msra.mxu0 0
      %2130 = vmatprep.subr.bf16.mxu0 0
      %2131 = vmatpush1.bf16.msra.mxu0 0
      %2132 = vmatprep.subr.bf16.mxu0 0
      %2133 = vmatpush1.bf16.msra.mxu0 0
      %2134 = vmatprep.subr.bf16.mxu0 0
      %2135 = vmatpush1.bf16.msra.mxu0 0
      %2136 = vmatprep.subr.bf16.mxu0 0
      %2137 = vmatpush1.bf16.msra.mxu0 0
      %2138 = vmatprep.subr.bf16.mxu0 0
      %2139 = vmatpush1.bf16.msra.mxu0 0
      %2140 = vmatprep.subr.bf16.mxu0 0
      %2141 = vmatpush1.bf16.msra.mxu0 0
      %2142 = vmatprep.subr.bf16.mxu0 0
      %2143 = vmatpush1.bf16.msra.mxu0 0
      %2144 = vmatprep.subr.bf16.mxu0 0
      %2145 = vmatpush1.bf16.msra.mxu0 0
      %2146 = vmatprep.subr.bf16.mxu0 0
      %2147 = vmatpush1.bf16.msra.mxu0 0
      %2148 = vmatprep.subr.bf16.mxu0 0
      %2149 = vmatpush1.bf16.msra.mxu0 0
      %2150 = vmatprep.subr.bf16.mxu0 0
      %2151 = vmatpush1.bf16.msra.mxu0 0
      %2152 = vmatprep.subr.bf16.mxu0 0
      %2153 = vmatpush1.bf16.msra.mxu0 0
      %2154 = vmatprep.subr.bf16.mxu0 0
      %2155 = vmatpush1.bf16.msra.mxu0 0
      %2156 = vmatprep.mubr.bf16.mxu0 0
      %2157 = vmatmul.mubr.bf16.gmra.mrb[0].mxu0 %v1762
      %v2158 = vpop.f32.mrb[0].mxu0
      %v2159 = vadd.f32 %v2046, %v2158
      %v2160 = vpop.f32.mrb[0].mxu0
      %v2161 = vadd.f32 %v2048, %v2160
      %v2162 = vpop.f32.mrb[0].mxu0
      %v2163 = vadd.f32 %v2050, %v2162
      %v2164 = vpop.f32.mrb[0].mxu0
      %v2165 = vadd.f32 %v2052, %v2164
      %2166 = vmatprep.mubr.bf16.mxu0 0
      %2167 = vmatmul.mubr.bf16.gmra.mrb[0].mxu0 %v1765
      %v2168 = vpop.f32.mrb[0].mxu0
      %v2169 = vadd.f32 %v2056, %v2168
      %v2170 = vpop.f32.mrb[0].mxu0
      %v2171 = vadd.f32 %v2058, %v2170
      %v2172 = vpop.f32.mrb[0].mxu0
      %v2173 = vadd.f32 %v2060, %v2172
      %v2174 = vpop.f32.mrb[0].mxu0
      %v2175 = vadd.f32 %v2062, %v2174
      %2176 = vmatprep.mubr.bf16.mxu0 0
      %2177 = vmatmul.mubr.bf16.gmra.mrb[0].mxu0 %v1768
      %v2178 = vpop.f32.mrb[0].mxu0
      %v2179 = vadd.f32 %v2066, %v2178
      %v2180 = vpop.f32.mrb[0].mxu0
      %v2181 = vadd.f32 %v2068, %v2180
      %v2182 = vpop.f32.mrb[0].mxu0
      %v2183 = vadd.f32 %v2070, %v2182
      %v2184 = vpop.f32.mrb[0].mxu0
      %v2185 = vadd.f32 %v2072, %v2184
      %2186 = vmatprep.mubr.bf16.mxu0 0
      %2187 = vmatmul.mubr.bf16.gmra.mrb[0].mxu0 %v1771
      %v2188 = vpop.f32.mrb[0].mxu0
      %v2189 = vadd.f32 %v2076, %v2188
      %v2190 = vpop.f32.mrb[0].mxu0
      %v2191 = vadd.f32 %v2078, %v2190
      %v2192 = vpop.f32.mrb[0].mxu0
      %v2193 = vadd.f32 %v2080, %v2192
      %v2194 = vpop.f32.mrb[0].mxu0
      %v2195 = vadd.f32 %v2082, %v2194
      %2196 = vmatprep.mubr.bf16.mxu0 0
      %2197 = vmatmul.mubr.bf16.gmra.mrb[0].mxu0 %v1774
      %v2198 = vpop.f32.mrb[0].mxu0
      %v2199 = vadd.f32 %v2086, %v2198
      %v2200 = vpop.f32.mrb[0].mxu0
      %v2201 = vadd.f32 %v2088, %v2200
      %v2202 = vpop.f32.mrb[0].mxu0
      %v2203 = vadd.f32 %v2090, %v2202
      %v2204 = vpop.f32.mrb[0].mxu0
      %v2205 = vadd.f32 %v2092, %v2204
      %2206 = vmatprep.mubr.bf16.mxu0 0
      %2207 = vmatmul.mubr.bf16.gmra.mrb[0].mxu0 %v1777
      %v2208 = vpop.f32.mrb[0].mxu0
      %v2209 = vadd.f32 %v2096, %v2208
      %v2210 = vpop.f32.mrb[0].mxu0
      %v2211 = vadd.f32 %v2098, %v2210
      %v2212 = vpop.f32.mrb[0].mxu0
      %v2213 = vadd.f32 %v2100, %v2212
      %v2214 = vpop.f32.mrb[0].mxu0
      %v2215 = vadd.f32 %v2102, %v2214
      %2216 = vmatprep.mubr.bf16.mxu0 0
      %2217 = vmatmul.mubr.bf16.gmra.mrb[0].mxu0 %v1780
      %v2218 = vpop.f32.mrb[0].mxu0
      %v2219 = vadd.f32 %v2106, %v2218
      %v2220 = vpop.f32.mrb[0].mxu0
      %v2221 = vadd.f32 %v2108, %v2220
      %v2222 = vpop.f32.mrb[0].mxu0
      %v2223 = vadd.f32 %v2110, %v2222
      %v2224 = vpop.f32.mrb[0].mxu0
      %v2225 = vadd.f32 %v2112, %v2224
      %2226 = vmatprep.mubr.bf16.mxu0 0
      %2227 = vmatmul.mubr.bf16.gmra.mrb[0].mxu0 %v1783
      %v2228 = vpop.f32.mrb[0].mxu0
      %v2229 = vadd.f32 %v2116, %v2228
      %v2230 = vpop.f32.mrb[0].mxu0
      %v2231 = vadd.f32 %v2118, %v2230
      %v2232 = vpop.f32.mrb[0].mxu0
      %v2233 = vadd.f32 %v2120, %v2232
      %v2234 = vpop.f32.mrb[0].mxu0
      %v2235 = vadd.f32 %v2122, %v2234
      %2236 = vdwg.mxu0
      %2237 = vmatprep.subr.bf16.mxu0 %v1371
      %2238 = vmatpush1.bf16.msra.mxu0 %v1370
      %2239 = vmatprep.subr.bf16.mxu0 %v1375
      %2240 = vmatpush1.bf16.msra.mxu0 %v1374
      %2241 = vmatprep.subr.bf16.mxu0 %v1379
      %2242 = vmatpush1.bf16.msra.mxu0 %v1378
      %2243 = vmatprep.subr.bf16.mxu0 %v1383
      %2244 = vmatpush1.bf16.msra.mxu0 %v1382
      %2245 = vmatprep.subr.bf16.mxu0 %v1387
      %2246 = vmatpush1.bf16.msra.mxu0 %v1386
      %2247 = vmatprep.subr.bf16.mxu0 %v1391
      %2248 = vmatpush1.bf16.msra.mxu0 %v1390
      %2249 = vmatprep.subr.bf16.mxu0 %v1395
      %2250 = vmatpush1.bf16.msra.mxu0 %v1394
      %2251 = vmatprep.subr.bf16.mxu0 %v1399
      %2252 = vmatpush1.bf16.msra.mxu0 %v1398
      %2253 = vmatprep.subr.bf16.mxu0 %v1403
      %2254 = vmatpush1.bf16.msra.mxu0 %v1402
      %2255 = vmatprep.subr.bf16.mxu0 %v1407
      %2256 = vmatpush1.bf16.msra.mxu0 %v1406
      %2257 = vmatprep.subr.bf16.mxu0 %v1411
      %2258 = vmatpush1.bf16.msra.mxu0 %v1410
      %2259 = vmatprep.subr.bf16.mxu0 %v1415
      %2260 = vmatpush1.bf16.msra.mxu0 %v1414
      %2261 = vmatprep.subr.bf16.mxu0 %v1419
      %2262 = vmatpush1.bf16.msra.mxu0 %v1418
      %2263 = vmatprep.subr.bf16.mxu0 %v1423
      %2264 = vmatpush1.bf16.msra.mxu0 %v1422
      %2265 = vmatprep.subr.bf16.mxu0 %v1427
      %2266 = vmatpush1.bf16.msra.mxu0 %v1426
      %2267 = vmatprep.subr.bf16.mxu0 %v1431
      %2268 = vmatpush1.bf16.msra.mxu0 %v1430
      %2269 = vmatprep.mubr.bf16.mxu0 %v507
      %2270 = vmatmul.mubr.bf16.gmra.mrb[0].mxu0 %v506
      %v2271 = vpop.f32.mrb[0].mxu0
      %v2272 = vadd.f32 %v771, %v2271
      %v2273 = vpop.f32.mrb[0].mxu0
      %v2274 = vadd.f32 %v775, %v2273
      %v2275 = vpop.f32.mrb[0].mxu0
      %v2276 = vadd.f32 %v771, %v2275
      %v2277 = vpop.f32.mrb[0].mxu0
      %v2278 = vadd.f32 %v775, %v2277
      %2279 = vmatprep.mubr.bf16.mxu0 %v514
      %2280 = vmatmul.mubr.bf16.gmra.mrb[0].mxu0 %v513
      %v2281 = vpop.f32.mrb[0].mxu0
      %v2282 = vadd.f32 %v771, %v2281
      %v2283 = vpop.f32.mrb[0].mxu0
      %v2284 = vadd.f32 %v775, %v2283
      %v2285 = vpop.f32.mrb[0].mxu0
      %v2286 = vadd.f32 %v771, %v2285
      %v2287 = vpop.f32.mrb[0].mxu0
      %v2288 = vadd.f32 %v775, %v2287
      %2289 = vmatprep.mubr.bf16.mxu0 %v521
      %2290 = vmatmul.mubr.bf16.gmra.mrb[0].mxu0 %v520
      %v2291 = vpop.f32.mrb[0].mxu0
      %v2292 = vadd.f32 %v771, %v2291
      %v2293 = vpop.f32.mrb[0].mxu0
      %v2294 = vadd.f32 %v775, %v2293
      %v2295 = vpop.f32.mrb[0].mxu0
      %v2296 = vadd.f32 %v771, %v2295
      %v2297 = vpop.f32.mrb[0].mxu0
      %v2298 = vadd.f32 %v775, %v2297
      %2299 = vmatprep.mubr.bf16.mxu0 %v528
      %2300 = vmatmul.mubr.bf16.gmra.mrb[0].mxu0 %v527
      %v2301 = vpop.f32.mrb[0].mxu0
      %v2302 = vadd.f32 %v771, %v2301
      %v2303 = vpop.f32.mrb[0].mxu0
      %v2304 = vadd.f32 %v775, %v2303
      %v2305 = vpop.f32.mrb[0].mxu0
      %v2306 = vadd.f32 %v771, %v2305
      %v2307 = vpop.f32.mrb[0].mxu0
      %v2308 = vadd.f32 %v775, %v2307
      %2309 = vmatprep.mubr.bf16.mxu0 %v535
      %2310 = vmatmul.mubr.bf16.gmra.mrb[0].mxu0 %v534
      %v2311 = vpop.f32.mrb[0].mxu0
      %v2312 = vadd.f32 %v771, %v2311
      %v2313 = vpop.f32.mrb[0].mxu0
      %v2314 = vadd.f32 %v775, %v2313
      %v2315 = vpop.f32.mrb[0].mxu0
      %v2316 = vadd.f32 %v771, %v2315
      %v2317 = vpop.f32.mrb[0].mxu0
      %v2318 = vadd.f32 %v775, %v2317
      %2319 = vmatprep.mubr.bf16.mxu0 %v542
      %2320 = vmatmul.mubr.bf16.gmra.mrb[0].mxu0 %v541
      %v2321 = vpop.f32.mrb[0].mxu0
      %v2322 = vadd.f32 %v771, %v2321
      %v2323 = vpop.f32.mrb[0].mxu0
      %v2324 = vadd.f32 %v775, %v2323
      %v2325 = vpop.f32.mrb[0].mxu0
      %v2326 = vadd.f32 %v771, %v2325
      %v2327 = vpop.f32.mrb[0].mxu0
      %v2328 = vadd.f32 %v775, %v2327
      %2329 = vmatprep.mubr.bf16.mxu0 %v549
      %2330 = vmatmul.mubr.bf16.gmra.mrb[0].mxu0 %v548
      %v2331 = vpop.f32.mrb[0].mxu0
      %v2332 = vadd.f32 %v771, %v2331
      %v2333 = vpop.f32.mrb[0].mxu0
      %v2334 = vadd.f32 %v775, %v2333
      %v2335 = vpop.f32.mrb[0].mxu0
      %v2336 = vadd.f32 %v771, %v2335
      %v2337 = vpop.f32.mrb[0].mxu0
      %v2338 = vadd.f32 %v775, %v2337
      %2339 = vmatprep.mubr.bf16.mxu0 %v556
      %2340 = vmatmul.mubr.bf16.gmra.mrb[0].mxu0 %v555
      %v2341 = vpop.f32.mrb[0].mxu0
      %v2342 = vadd.f32 %v771, %v2341
      %v2343 = vpop.f32.mrb[0].mxu0
      %v2344 = vadd.f32 %v775, %v2343
      %v2345 = vpop.f32.mrb[0].mxu0
      %v2346 = vadd.f32 %v771, %v2345
      %v2347 = vpop.f32.mrb[0].mxu0
      %v2348 = vadd.f32 %v775, %v2347
      %2349 = vdwg.mxu0
      %2350 = vmatprep.subr.bf16.mxu0 %v1435
      %2351 = vmatpush1.bf16.msra.mxu0 %v1434
      %2352 = vmatprep.subr.bf16.mxu0 %v1439
      %2353 = vmatpush1.bf16.msra.mxu0 %v1438
      %2354 = vmatprep.subr.bf16.mxu0 %v1443
      %2355 = vmatpush1.bf16.msra.mxu0 %v1442
      %2356 = vmatprep.subr.bf16.mxu0 %v1447
      %2357 = vmatpush1.bf16.msra.mxu0 %v1446
      %2358 = vmatprep.subr.bf16.mxu0 %v1451
      %2359 = vmatpush1.bf16.msra.mxu0 %v1450
      %2360 = vmatprep.subr.bf16.mxu0 %v1455
      %2361 = vmatpush1.bf16.msra.mxu0 %v1454
      %2362 = vmatprep.subr.bf16.mxu0 %v1459
      %2363 = vmatpush1.bf16.msra.mxu0 %v1458
      %2364 = vmatprep.subr.bf16.mxu0 %v1463
      %2365 = vmatpush1.bf16.msra.mxu0 %v1462
      %2366 = vmatprep.subr.bf16.mxu0 %v1467
      %2367 = vmatpush1.bf16.msra.mxu0 %v1466
      %2368 = vmatprep.subr.bf16.mxu0 %v1471
      %2369 = vmatpush1.bf16.msra.mxu0 %v1470
      %2370 = vmatprep.subr.bf16.mxu0 %v1475
      %2371 = vmatpush1.bf16.msra.mxu0 %v1474
      %2372 = vmatprep.subr.bf16.mxu0 %v1479
      %2373 = vmatpush1.bf16.msra.mxu0 %v1478
      %2374 = vmatprep.subr.bf16.mxu0 %v1483
      %2375 = vmatpush1.bf16.msra.mxu0 %v1482
      %2376 = vmatprep.subr.bf16.mxu0 %v1487
      %2377 = vmatpush1.bf16.msra.mxu0 %v1486
      %2378 = vmatprep.subr.bf16.mxu0 %v1491
      %2379 = vmatpush1.bf16.msra.mxu0 %v1490
      %2380 = vmatprep.subr.bf16.mxu0 %v1495
      %2381 = vmatpush1.bf16.msra.mxu0 %v1494
      %2382 = vmatprep.mubr.bf16.mxu0 %v509
      %2383 = vmatmul.mubr.bf16.gmra.mrb[0].mxu0 %v508
      %v2384 = vpop.f32.mrb[0].mxu0
      %v2385 = vadd.f32 %v2272, %v2384
      %v2386 = vpop.f32.mrb[0].mxu0
      %v2387 = vadd.f32 %v2274, %v2386
      %v2388 = vpop.f32.mrb[0].mxu0
      %v2389 = vadd.f32 %v2276, %v2388
      %v2390 = vpop.f32.mrb[0].mxu0
      %v2391 = vadd.f32 %v2278, %v2390
      %2392 = vmatprep.mubr.bf16.mxu0 %v516
      %2393 = vmatmul.mubr.bf16.gmra.mrb[0].mxu0 %v515
      %v2394 = vpop.f32.mrb[0].mxu0
      %v2395 = vadd.f32 %v2282, %v2394
      %v2396 = vpop.f32.mrb[0].mxu0
      %v2397 = vadd.f32 %v2284, %v2396
      %v2398 = vpop.f32.mrb[0].mxu0
      %v2399 = vadd.f32 %v2286, %v2398
      %v2400 = vpop.f32.mrb[0].mxu0
      %v2401 = vadd.f32 %v2288, %v2400
      %2402 = vmatprep.mubr.bf16.mxu0 %v523
      %2403 = vmatmul.mubr.bf16.gmra.mrb[0].mxu0 %v522
      %v2404 = vpop.f32.mrb[0].mxu0
      %v2405 = vadd.f32 %v2292, %v2404
      %v2406 = vpop.f32.mrb[0].mxu0
      %v2407 = vadd.f32 %v2294, %v2406
      %v2408 = vpop.f32.mrb[0].mxu0
      %v2409 = vadd.f32 %v2296, %v2408
      %v2410 = vpop.f32.mrb[0].mxu0
      %v2411 = vadd.f32 %v2298, %v2410
      %2412 = vmatprep.mubr.bf16.mxu0 %v530
      %2413 = vmatmul.mubr.bf16.gmra.mrb[0].mxu0 %v529
      %v2414 = vpop.f32.mrb[0].mxu0
      %v2415 = vadd.f32 %v2302, %v2414
      %v2416 = vpop.f32.mrb[0].mxu0
      %v2417 = vadd.f32 %v2304, %v2416
      %v2418 = vpop.f32.mrb[0].mxu0
      %v2419 = vadd.f32 %v2306, %v2418
      %v2420 = vpop.f32.mrb[0].mxu0
      %v2421 = vadd.f32 %v2308, %v2420
      %2422 = vmatprep.mubr.bf16.mxu0 %v537
      %2423 = vmatmul.mubr.bf16.gmra.mrb[0].mxu0 %v536
      %v2424 = vpop.f32.mrb[0].mxu0
      %v2425 = vadd.f32 %v2312, %v2424
      %v2426 = vpop.f32.mrb[0].mxu0
      %v2427 = vadd.f32 %v2314, %v2426
      %v2428 = vpop.f32.mrb[0].mxu0
      %v2429 = vadd.f32 %v2316, %v2428
      %v2430 = vpop.f32.mrb[0].mxu0
      %v2431 = vadd.f32 %v2318, %v2430
      %2432 = vmatprep.mubr.bf16.mxu0 %v544
      %2433 = vmatmul.mubr.bf16.gmra.mrb[0].mxu0 %v543
      %v2434 = vpop.f32.mrb[0].mxu0
      %v2435 = vadd.f32 %v2322, %v2434
      %v2436 = vpop.f32.mrb[0].mxu0
      %v2437 = vadd.f32 %v2324, %v2436
      %v2438 = vpop.f32.mrb[0].mxu0
      %v2439 = vadd.f32 %v2326, %v2438
      %v2440 = vpop.f32.mrb[0].mxu0
      %v2441 = vadd.f32 %v2328, %v2440
      %2442 = vmatprep.mubr.bf16.mxu0 %v551
      %2443 = vmatmul.mubr.bf16.gmra.mrb[0].mxu0 %v550
      %v2444 = vpop.f32.mrb[0].mxu0
      %v2445 = vadd.f32 %v2332, %v2444
      %v2446 = vpop.f32.mrb[0].mxu0
      %v2447 = vadd.f32 %v2334, %v2446
      %v2448 = vpop.f32.mrb[0].mxu0
      %v2449 = vadd.f32 %v2336, %v2448
      %v2450 = vpop.f32.mrb[0].mxu0
      %v2451 = vadd.f32 %v2338, %v2450
      %2452 = vmatprep.mubr.bf16.mxu0 %v558
      %2453 = vmatmul.mubr.bf16.gmra.mrb[0].mxu0 %v557
      %v2454 = vpop.f32.mrb[0].mxu0
      %v2455 = vadd.f32 %v2342, %v2454
      %v2456 = vpop.f32.mrb[0].mxu0
      %v2457 = vadd.f32 %v2344, %v2456
      %v2458 = vpop.f32.mrb[0].mxu0
      %v2459 = vadd.f32 %v2346, %v2458
      %v2460 = vpop.f32.mrb[0].mxu0
      %v2461 = vadd.f32 %v2348, %v2460
      %2462 = vdwg.mxu0
      %2463 = vmatprep.subr.bf16.mxu0 %v1499
      %2464 = vmatpush1.bf16.msra.mxu0 %v1498
      %2465 = vmatprep.subr.bf16.mxu0 %v1503
      %2466 = vmatpush1.bf16.msra.mxu0 %v1502
      %2467 = vmatprep.subr.bf16.mxu0 %v1507
      %2468 = vmatpush1.bf16.msra.mxu0 %v1506
      %2469 = vmatprep.subr.bf16.mxu0 %v1511
      %2470 = vmatpush1.bf16.msra.mxu0 %v1510
      %2471 = vmatprep.subr.bf16.mxu0 %v1515
      %2472 = vmatpush1.bf16.msra.mxu0 %v1514
      %2473 = vmatprep.subr.bf16.mxu0 %v1519
      %2474 = vmatpush1.bf16.msra.mxu0 %v1518
      %2475 = vmatprep.subr.bf16.mxu0 %v1523
      %2476 = vmatpush1.bf16.msra.mxu0 %v1522
      %2477 = vmatprep.subr.bf16.mxu0 %v1527
      %2478 = vmatpush1.bf16.msra.mxu0 %v1526
      %2479 = vmatprep.subr.bf16.mxu0 %v1531
      %2480 = vmatpush1.bf16.msra.mxu0 %v1530
      %2481 = vmatprep.subr.bf16.mxu0 %v1535
      %2482 = vmatpush1.bf16.msra.mxu0 %v1534
      %2483 = vmatprep.subr.bf16.mxu0 %v1539
      %2484 = vmatpush1.bf16.msra.mxu0 %v1538
      %2485 = vmatprep.subr.bf16.mxu0 %v1543
      %2486 = vmatpush1.bf16.msra.mxu0 %v1542
      %2487 = vmatprep.subr.bf16.mxu0 %v1547
      %2488 = vmatpush1.bf16.msra.mxu0 %v1546
      %2489 = vmatprep.subr.bf16.mxu0 %v1551
      %2490 = vmatpush1.bf16.msra.mxu0 %v1550
      %2491 = vmatprep.subr.bf16.mxu0 %v1555
      %2492 = vmatpush1.bf16.msra.mxu0 %v1554
      %2493 = vmatprep.subr.bf16.mxu0 %v1559
      %2494 = vmatpush1.bf16.msra.mxu0 %v1558
      %2495 = vmatprep.mubr.bf16.mxu0 %v511
      %2496 = vmatmul.mubr.bf16.gmra.mrb[0].mxu0 %v510
      %v2497 = vpop.f32.mrb[0].mxu0
      %v2498 = vadd.f32 %v2385, %v2497
      %v2499 = vpop.f32.mrb[0].mxu0
      %v2500 = vadd.f32 %v2387, %v2499
      %v2501 = vpop.f32.mrb[0].mxu0
      %v2502 = vadd.f32 %v2389, %v2501
      %v2503 = vpop.f32.mrb[0].mxu0
      %v2504 = vadd.f32 %v2391, %v2503
      %2505 = vmatprep.mubr.bf16.mxu0 %v518
      %2506 = vmatmul.mubr.bf16.gmra.mrb[0].mxu0 %v517
      %v2507 = vpop.f32.mrb[0].mxu0
      %v2508 = vadd.f32 %v2395, %v2507
      %v2509 = vpop.f32.mrb[0].mxu0
      %v2510 = vadd.f32 %v2397, %v2509
      %v2511 = vpop.f32.mrb[0].mxu0
      %v2512 = vadd.f32 %v2399, %v2511
      %v2513 = vpop.f32.mrb[0].mxu0
      %v2514 = vadd.f32 %v2401, %v2513
      %2515 = vmatprep.mubr.bf16.mxu0 %v525
      %2516 = vmatmul.mubr.bf16.gmra.mrb[0].mxu0 %v524
      %v2517 = vpop.f32.mrb[0].mxu0
      %v2518 = vadd.f32 %v2405, %v2517
      %v2519 = vpop.f32.mrb[0].mxu0
      %v2520 = vadd.f32 %v2407, %v2519
      %v2521 = vpop.f32.mrb[0].mxu0
      %v2522 = vadd.f32 %v2409, %v2521
      %v2523 = vpop.f32.mrb[0].mxu0
      %v2524 = vadd.f32 %v2411, %v2523
      %2525 = vmatprep.mubr.bf16.mxu0 %v532
      %2526 = vmatmul.mubr.bf16.gmra.mrb[0].mxu0 %v531
      %v2527 = vpop.f32.mrb[0].mxu0
      %v2528 = vadd.f32 %v2415, %v2527
      %v2529 = vpop.f32.mrb[0].mxu0
      %v2530 = vadd.f32 %v2417, %v2529
      %v2531 = vpop.f32.mrb[0].mxu0
      %v2532 = vadd.f32 %v2419, %v2531
      %v2533 = vpop.f32.mrb[0].mxu0
      %v2534 = vadd.f32 %v2421, %v2533
      %2535 = vmatprep.mubr.bf16.mxu0 %v539
      %2536 = vmatmul.mubr.bf16.gmra.mrb[0].mxu0 %v538
      %v2537 = vpop.f32.mrb[0].mxu0
      %v2538 = vadd.f32 %v2425, %v2537
      %v2539 = vpop.f32.mrb[0].mxu0
      %v2540 = vadd.f32 %v2427, %v2539
      %v2541 = vpop.f32.mrb[0].mxu0
      %v2542 = vadd.f32 %v2429, %v2541
      %v2543 = vpop.f32.mrb[0].mxu0
      %v2544 = vadd.f32 %v2431, %v2543
      %2545 = vmatprep.mubr.bf16.mxu0 %v546
      %2546 = vmatmul.mubr.bf16.gmra.mrb[0].mxu0 %v545
      %v2547 = vpop.f32.mrb[0].mxu0
      %v2548 = vadd.f32 %v2435, %v2547
      %v2549 = vpop.f32.mrb[0].mxu0
      %v2550 = vadd.f32 %v2437, %v2549
      %v2551 = vpop.f32.mrb[0].mxu0
      %v2552 = vadd.f32 %v2439, %v2551
      %v2553 = vpop.f32.mrb[0].mxu0
      %v2554 = vadd.f32 %v2441, %v2553
      %2555 = vmatprep.mubr.bf16.mxu0 %v553
      %2556 = vmatmul.mubr.bf16.gmra.mrb[0].mxu0 %v552
      %v2557 = vpop.f32.mrb[0].mxu0
      %v2558 = vadd.f32 %v2445, %v2557
      %v2559 = vpop.f32.mrb[0].mxu0
      %v2560 = vadd.f32 %v2447, %v2559
      %v2561 = vpop.f32.mrb[0].mxu0
      %v2562 = vadd.f32 %v2449, %v2561
      %v2563 = vpop.f32.mrb[0].mxu0
      %v2564 = vadd.f32 %v2451, %v2563
      %2565 = vmatprep.mubr.bf16.mxu0 %v560
      %2566 = vmatmul.mubr.bf16.gmra.mrb[0].mxu0 %v559
      %v2567 = vpop.f32.mrb[0].mxu0
      %v2568 = vadd.f32 %v2455, %v2567
      %v2569 = vpop.f32.mrb[0].mxu0
      %v2570 = vadd.f32 %v2457, %v2569
      %v2571 = vpop.f32.mrb[0].mxu0
      %v2572 = vadd.f32 %v2459, %v2571
      %v2573 = vpop.f32.mrb[0].mxu0
      %v2574 = vadd.f32 %v2461, %v2573
      %2575 = vdwg.mxu0
      %2576 = vmatprep.subr.bf16.mxu0 %v1563
      %2577 = vmatpush1.bf16.msra.mxu0 %v1562
      %2578 = vmatprep.subr.bf16.mxu0 0
      %2579 = vmatpush1.bf16.msra.mxu0 0
      %2580 = vmatprep.subr.bf16.mxu0 0
      %2581 = vmatpush1.bf16.msra.mxu0 0
      %2582 = vmatprep.subr.bf16.mxu0 0
      %2583 = vmatpush1.bf16.msra.mxu0 0
      %2584 = vmatprep.subr.bf16.mxu0 0
      %2585 = vmatpush1.bf16.msra.mxu0 0
      %2586 = vmatprep.subr.bf16.mxu0 0
      %2587 = vmatpush1.bf16.msra.mxu0 0
      %2588 = vmatprep.subr.bf16.mxu0 0
      %2589 = vmatpush1.bf16.msra.mxu0 0
      %2590 = vmatprep.subr.bf16.mxu0 0
      %2591 = vmatpush1.bf16.msra.mxu0 0
      %2592 = vmatprep.subr.bf16.mxu0 0
      %2593 = vmatpush1.bf16.msra.mxu0 0
      %2594 = vmatprep.subr.bf16.mxu0 0
      %2595 = vmatpush1.bf16.msra.mxu0 0
      %2596 = vmatprep.subr.bf16.mxu0 0
      %2597 = vmatpush1.bf16.msra.mxu0 0
      %2598 = vmatprep.subr.bf16.mxu0 0
      %2599 = vmatpush1.bf16.msra.mxu0 0
      %2600 = vmatprep.subr.bf16.mxu0 0
      %2601 = vmatpush1.bf16.msra.mxu0 0
      %2602 = vmatprep.subr.bf16.mxu0 0
      %2603 = vmatpush1.bf16.msra.mxu0 0
      %2604 = vmatprep.subr.bf16.mxu0 0
      %2605 = vmatpush1.bf16.msra.mxu0 0
      %2606 = vmatprep.subr.bf16.mxu0 0
      %2607 = vmatpush1.bf16.msra.mxu0 0
      %2608 = vmatprep.mubr.bf16.mxu0 0
      %2609 = vmatmul.mubr.bf16.gmra.mrb[0].mxu0 %v1762
      %v2610 = vpop.f32.mrb[0].mxu0
      %v2611 = vadd.f32 %v2498, %v2610
      %v2612 = vpop.f32.mrb[0].mxu0
      %v2613 = vadd.f32 %v2500, %v2612
      %v2614 = vpop.f32.mrb[0].mxu0
      %v2615 = vadd.f32 %v2502, %v2614
      %v2616 = vpop.f32.mrb[0].mxu0
      %v2617 = vadd.f32 %v2504, %v2616
      %2618 = vmatprep.mubr.bf16.mxu0 0
      %2619 = vmatmul.mubr.bf16.gmra.mrb[0].mxu0 %v1765
      %v2620 = vpop.f32.mrb[0].mxu0
      %v2621 = vadd.f32 %v2508, %v2620
      %v2622 = vpop.f32.mrb[0].mxu0
      %v2623 = vadd.f32 %v2510, %v2622
      %v2624 = vpop.f32.mrb[0].mxu0
      %v2625 = vadd.f32 %v2512, %v2624
      %v2626 = vpop.f32.mrb[0].mxu0
      %v2627 = vadd.f32 %v2514, %v2626
      %2628 = vmatprep.mubr.bf16.mxu0 0
      %2629 = vmatmul.mubr.bf16.gmra.mrb[0].mxu0 %v1768
      %v2630 = vpop.f32.mrb[0].mxu0
      %v2631 = vadd.f32 %v2518, %v2630
      %v2632 = vpop.f32.mrb[0].mxu0
      %v2633 = vadd.f32 %v2520, %v2632
      %v2634 = vpop.f32.mrb[0].mxu0
      %v2635 = vadd.f32 %v2522, %v2634
      %v2636 = vpop.f32.mrb[0].mxu0
      %v2637 = vadd.f32 %v2524, %v2636
      %2638 = vmatprep.mubr.bf16.mxu0 0
      %2639 = vmatmul.mubr.bf16.gmra.mrb[0].mxu0 %v1771
      %v2640 = vpop.f32.mrb[0].mxu0
      %v2641 = vadd.f32 %v2528, %v2640
      %v2642 = vpop.f32.mrb[0].mxu0
      %v2643 = vadd.f32 %v2530, %v2642
      %v2644 = vpop.f32.mrb[0].mxu0
      %v2645 = vadd.f32 %v2532, %v2644
      %v2646 = vpop.f32.mrb[0].mxu0
      %v2647 = vadd.f32 %v2534, %v2646
      %2648 = vmatprep.mubr.bf16.mxu0 0
      %2649 = vmatmul.mubr.bf16.gmra.mrb[0].mxu0 %v1774
      %v2650 = vpop.f32.mrb[0].mxu0
      %v2651 = vadd.f32 %v2538, %v2650
      %v2652 = vpop.f32.mrb[0].mxu0
      %v2653 = vadd.f32 %v2540, %v2652
      %v2654 = vpop.f32.mrb[0].mxu0
      %v2655 = vadd.f32 %v2542, %v2654
      %v2656 = vpop.f32.mrb[0].mxu0
      %v2657 = vadd.f32 %v2544, %v2656
      %2658 = vmatprep.mubr.bf16.mxu0 0
      %2659 = vmatmul.mubr.bf16.gmra.mrb[0].mxu0 %v1777
      %v2660 = vpop.f32.mrb[0].mxu0
      %v2661 = vadd.f32 %v2548, %v2660
      %v2662 = vpop.f32.mrb[0].mxu0
      %v2663 = vadd.f32 %v2550, %v2662
      %v2664 = vpop.f32.mrb[0].mxu0
      %v2665 = vadd.f32 %v2552, %v2664
      %v2666 = vpop.f32.mrb[0].mxu0
      %v2667 = vadd.f32 %v2554, %v2666
      %2668 = vmatprep.mubr.bf16.mxu0 0
      %2669 = vmatmul.mubr.bf16.gmra.mrb[0].mxu0 %v1780
      %v2670 = vpop.f32.mrb[0].mxu0
      %v2671 = vadd.f32 %v2558, %v2670
      %v2672 = vpop.f32.mrb[0].mxu0
      %v2673 = vadd.f32 %v2560, %v2672
      %v2674 = vpop.f32.mrb[0].mxu0
      %v2675 = vadd.f32 %v2562, %v2674
      %v2676 = vpop.f32.mrb[0].mxu0
      %v2677 = vadd.f32 %v2564, %v2676
      %2678 = vmatprep.mubr.bf16.mxu0 0
      %2679 = vmatmul.mubr.bf16.gmra.mrb[0].mxu0 %v1783
      %v2680 = vpop.f32.mrb[0].mxu0
      %v2681 = vadd.f32 %v2568, %v2680
      %v2682 = vpop.f32.mrb[0].mxu0
      %v2683 = vadd.f32 %v2570, %v2682
      %v2684 = vpop.f32.mrb[0].mxu0
      %v2685 = vadd.f32 %v2572, %v2684
      %v2686 = vpop.f32.mrb[0].mxu0
      %v2687 = vadd.f32 %v2574, %v2686
      %2688 = vdwg.mxu0
      %v2689 = vmax.f32 %v2159, 0.0
      %v2690 = vmax.f32 %v2161, 0.0
      %v2691 = vmax.f32 %v2611, 0.0
      %v2692 = vmax.f32 %v2613, 0.0
      %v2693 = vmax.f32 %v2163, 0.0
      %v2694 = vmax.f32 %v2165, 0.0
      %v2695 = vmax.f32 %v2615, 0.0
      %v2696 = vmax.f32 %v2617, 0.0
      %v2697 = vmax.f32 %v2169, 0.0
      %v2698 = vmax.f32 %v2171, 0.0
      %v2699 = vmax.f32 %v2621, 0.0
      %v2700 = vmax.f32 %v2623, 0.0
      %v2701 = vmax.f32 %v2173, 0.0
      %v2702 = vmax.f32 %v2175, 0.0
      %v2703 = vmax.f32 %v2625, 0.0
      %v2704 = vmax.f32 %v2627, 0.0
      %v2705 = vmax.f32 %v2179, 0.0
      %v2706 = vmax.f32 %v2181, 0.0
      %v2707 = vmax.f32 %v2631, 0.0
      %v2708 = vmax.f32 %v2633, 0.0
      %v2709 = vmax.f32 %v2183, 0.0
      %v2710 = vmax.f32 %v2185, 0.0
      %v2711 = vmax.f32 %v2635, 0.0
      %v2712 = vmax.f32 %v2637, 0.0
      %v2713 = vmax.f32 %v2189, 0.0
      %v2714 = vmax.f32 %v2191, 0.0
      %v2715 = vmax.f32 %v2641, 0.0
      %v2716 = vmax.f32 %v2643, 0.0
      %v2717 = vmax.f32 %v2193, 0.0
      %v2718 = vmax.f32 %v2195, 0.0
      %v2719 = vmax.f32 %v2645, 0.0
      %v2720 = vmax.f32 %v2647, 0.0
      %v2721 = vmax.f32 %v2199, 0.0
      %v2722 = vmax.f32 %v2201, 0.0
      %v2723 = vmax.f32 %v2651, 0.0
      %v2724 = vmax.f32 %v2653, 0.0
      %v2725 = vmax.f32 %v2203, 0.0
      %v2726 = vmax.f32 %v2205, 0.0
      %v2727 = vmax.f32 %v2655, 0.0
      %v2728 = vmax.f32 %v2657, 0.0
      %v2729 = vmax.f32 %v2209, 0.0
      %v2730 = vmax.f32 %v2211, 0.0
      %v2731 = vmax.f32 %v2661, 0.0
      %v2732 = vmax.f32 %v2663, 0.0
      %v2733 = vmax.f32 %v2213, 0.0
      %v2734 = vmax.f32 %v2215, 0.0
      %v2735 = vmax.f32 %v2665, 0.0
      %v2736 = vmax.f32 %v2667, 0.0
      %v2737 = vmax.f32 %v2219, 0.0
      %v2738 = vmax.f32 %v2221, 0.0
      %v2739 = vmax.f32 %v2671, 0.0
      %v2740 = vmax.f32 %v2673, 0.0
      %v2741 = vmax.f32 %v2223, 0.0
      %v2742 = vmax.f32 %v2225, 0.0
      %v2743 = vmax.f32 %v2675, 0.0
      %v2744 = vmax.f32 %v2677, 0.0
      %v2745 = vmax.f32 %v2229, 0.0
      %v2746 = vmax.f32 %v2231, 0.0
      %v2747 = vmax.f32 %v2681, 0.0
      %v2748 = vmax.f32 %v2683, 0.0
      %v2749 = vmax.f32 %v2233, 0.0
      %v2750 = vmax.f32 %v2235, 0.0
      %v2751 = vmax.f32 %v2685, 0.0
      %v2752 = vmax.f32 %v2687, 0.0
      %v2753 = vpack.c.bf16 %v2693, %v2689
      %v2754 = vpack.c.bf16 %v2694, %v2690
      %v2755 = vpack.c.bf16 %v2695, %v2691
      %v2756 = vpack.c.bf16 %v2696, %v2692
      %v2757 = vpack.c.bf16 %v2701, %v2697
      %v2758 = vpack.c.bf16 %v2702, %v2698
      %v2759 = vpack.c.bf16 %v2703, %v2699
      %v2760 = vpack.c.bf16 %v2704, %v2700
      %v2761 = vpack.c.bf16 %v2709, %v2705
      %v2762 = vpack.c.bf16 %v2710, %v2706
      %v2763 = vpack.c.bf16 %v2711, %v2707
      %v2764 = vpack.c.bf16 %v2712, %v2708
      %v2765 = vpack.c.bf16 %v2717, %v2713
      %v2766 = vpack.c.bf16 %v2718, %v2714
      %v2767 = vpack.c.bf16 %v2719, %v2715
      %v2768 = vpack.c.bf16 %v2720, %v2716
      %v2769 = vpack.c.bf16 %v2725, %v2721
      %v2770 = vpack.c.bf16 %v2726, %v2722
      %v2771 = vpack.c.bf16 %v2727, %v2723
      %v2772 = vpack.c.bf16 %v2728, %v2724
      %v2773 = vpack.c.bf16 %v2733, %v2729
      %v2774 = vpack.c.bf16 %v2734, %v2730
      %v2775 = vpack.c.bf16 %v2735, %v2731
      %v2776 = vpack.c.bf16 %v2736, %v2732
      %v2777 = vpack.c.bf16 %v2741, %v2737
      %v2778 = vpack.c.bf16 %v2742, %v2738
      %v2779 = vpack.c.bf16 %v2743, %v2739
      %v2780 = vpack.c.bf16 %v2744, %v2740
      %v2781 = vpack.c.bf16 %v2749, %v2745
      %v2782 = vpack.c.bf16 %v2750, %v2746
      %v2783 = vpack.c.bf16 %v2751, %v2747
      %v2784 = vpack.c.bf16 %v2752, %v2748
      %v2785 = vld [vmem:[%s3] sm:$0xff]
      %v2786 = vld [vmem:[%s3 + $0x8] sm:$0xff]
      %v2787 = vld [vmem:[%s3 + $0x10] sm:$0xff]
      %v2788 = vld [vmem:[%s3 + $0x18] sm:$0xff]
      %v2789 = vld [vmem:[%s3 + $0x20] sm:$0xff]
      %v2790 = vld [vmem:[%s3 + $0x28] sm:$0xff]
      %v2791 = vld [vmem:[%s3 + $0x30] sm:$0xff]
      %v2792 = vld [vmem:[%s3 + $0x38] sm:$0xff]
      %v2793 = vld [vmem:[%s3 + $0x40] sm:$0xff]
      %v2794 = vld [vmem:[%s3 + $0x48] sm:$0xff]
      %v2795 = vld [vmem:[%s3 + $0x50] sm:$0xff]
      %v2796 = vld [vmem:[%s3 + $0x58] sm:$0xff]
      %v2797 = vld [vmem:[%s3 + $0x60] sm:$0xff]
      %v2798 = vld [vmem:[%s3 + $0x68] sm:$0xff]
      %v2799 = vld [vmem:[%s3 + $0x70] sm:$0xff]
      %v2800 = vld [vmem:[%s3 + $0x78] sm:$0xff]
      %v2801 = vld [vmem:[%s3 + $0x80] sm:$0xff]
      %v2802 = vld [vmem:[%s3 + $0x88] sm:$0xff]
      %v2803 = vld [vmem:[%s3 + $0x90] sm:$0xff]
      %v2804 = vld [vmem:[%s3 + $0x98] sm:$0xff]
      %v2805 = vld [vmem:[%s3 + $0xa0] sm:$0xff]
      %v2806 = vld [vmem:[%s3 + $0xa8] sm:$0xff]
      %v2807 = vld [vmem:[%s3 + $0xb0] sm:$0xff]
      %v2808 = vld [vmem:[%s3 + $0xb8] sm:$0xff]
      %v2809 = vld [vmem:[%s3 + $0xc0] sm:$0xff]
      %v2810 = vld [vmem:[%s3 + $0xc8] sm:$0xff]
      %v2811 = vld [vmem:[%s3 + $0xd0] sm:$0xff]
      %v2812 = vld [vmem:[%s3 + $0xd8] sm:$0xff]
      %v2813 = vld [vmem:[%s3 + $0xe0] sm:$0xff]
      %v2814 = vld [vmem:[%s3 + $0xe8] sm:$0xff]
      %v2815 = vld [vmem:[%s3 + $0xf0] sm:$0xff]
      %v2816 = vld [vmem:[%s3 + $0xf8] sm:$0xff]
      %v2817 = vld [vmem:[%s3 + $0x100] sm:$0xff]
      %v2818 = vld [vmem:[%s3 + $0x108] sm:$0xff]
      %v2819 = vld [vmem:[%s3 + $0x110] sm:$0xff]
      %v2820 = vld [vmem:[%s3 + $0x118] sm:$0xff]
      %v2821 = vld [vmem:[%s3 + $0x120] sm:$0xff]
      %v2822 = vld [vmem:[%s3 + $0x128] sm:$0xff]
      %v2823 = vld [vmem:[%s3 + $0x130] sm:$0xff]
      %v2824 = vld [vmem:[%s3 + $0x138] sm:$0xff]
      %v2825 = vld [vmem:[%s3 + $0x140] sm:$0xff]
      %v2826 = vld [vmem:[%s3 + $0x148] sm:$0xff]
      %v2827 = vld [vmem:[%s3 + $0x150] sm:$0xff]
      %v2828 = vld [vmem:[%s3 + $0x158] sm:$0xff]
      %v2829 = vld [vmem:[%s3 + $0x160] sm:$0xff]
      %v2830 = vld [vmem:[%s3 + $0x168] sm:$0xff]
      %v2831 = vld [vmem:[%s3 + $0x170] sm:$0xff]
      %v2832 = vld [vmem:[%s3 + $0x178] sm:$0xff]
      %v2833 = vld [vmem:[%s3 + $0x180] sm:$0xff]
      %v2834 = vld [vmem:[%s3 + $0x188] sm:$0xff]
      %v2835 = vld [vmem:[%s3 + $0x190] sm:$0xff]
      %v2836 = vld [vmem:[%s3 + $0x198] sm:$0xff]
      %v2837 = vld [vmem:[%s3 + $0x1a0] sm:$0xff]
      %v2838 = vld [vmem:[%s3 + $0x1a8] sm:$0xff]
      %v2839 = vld [vmem:[%s3 + $0x1b0] sm:$0xff]
      %v2840 = vld [vmem:[%s3 + $0x1b8] sm:$0xff]
      %v2841 = vld [vmem:[%s3 + $0x1c0] sm:$0xff]
      %v2842 = vld [vmem:[%s3 + $0x1c8] sm:$0xff]
      %v2843 = vld [vmem:[%s3 + $0x1d0] sm:$0xff]
      %v2844 = vld [vmem:[%s3 + $0x1d8] sm:$0xff]
      %v2845 = vld [vmem:[%s3 + $0x1e0] sm:$0xff]
      %v2846 = vld [vmem:[%s3 + $0x1e8] sm:$0xff]
      %v2847 = vld [vmem:[%s3 + $0x1f0] sm:$0xff]
      %v2848 = vld [vmem:[%s3 + $0x1f8] sm:$0xff]
      %v2849 = vld [vmem:[%s4] sm:$0x3]
      %v2851 = vlaneseq
      %v2852 = vshrl.u32 %v2851, 7
      %v2853 = vsub.s32 0, %v2852
      %v2854 = vrot.slane %v2849, %v2853
      %v2855 = vlaneseq
      %v2856 = vshrl.u32 %v2855, 7
      %v2857 = vsub.s32 1, %v2856
      %v2858 = vrot.slane %v2849, %v2857
      %v2925 = vunpack.c.l.b16 %v2785
      %v2926 = vunpack.c.h.b16 %v2785
      %v2927 = vunpack.c.l.b16 %v2786
      %v2928 = vunpack.c.h.b16 %v2786
      %v2929 = vunpack.c.l.b16 %v2787
      %v2930 = vunpack.c.h.b16 %v2787
      %v2931 = vunpack.c.l.b16 %v2788
      %v2932 = vunpack.c.h.b16 %v2788
      %v2933 = vunpack.c.l.b16 %v2789
      %v2934 = vunpack.c.h.b16 %v2789
      %v2935 = vunpack.c.l.b16 %v2790
      %v2936 = vunpack.c.h.b16 %v2790
      %v2937 = vunpack.c.l.b16 %v2791
      %v2938 = vunpack.c.h.b16 %v2791
      %v2939 = vunpack.c.l.b16 %v2792
      %v2940 = vunpack.c.h.b16 %v2792
      %v2941 = vunpack.c.l.b16 %v2793
      %v2942 = vunpack.c.h.b16 %v2793
      %v2943 = vunpack.c.l.b16 %v2794
      %v2944 = vunpack.c.h.b16 %v2794
      %v2945 = vunpack.c.l.b16 %v2795
      %v2946 = vunpack.c.h.b16 %v2795
      %v2947 = vunpack.c.l.b16 %v2796
      %v2948 = vunpack.c.h.b16 %v2796
      %v2949 = vunpack.c.l.b16 %v2797
      %v2950 = vunpack.c.h.b16 %v2797
      %v2951 = vunpack.c.l.b16 %v2798
      %v2952 = vunpack.c.h.b16 %v2798
      %v2953 = vunpack.c.l.b16 %v2799
      %v2954 = vunpack.c.h.b16 %v2799
      %v2955 = vunpack.c.l.b16 %v2800
      %v2956 = vunpack.c.h.b16 %v2800
      %v2957 = vunpack.c.l.b16 %v2801
      %v2958 = vunpack.c.h.b16 %v2801
      %v2959 = vunpack.c.l.b16 %v2802
      %v2960 = vunpack.c.h.b16 %v2802
      %v2961 = vunpack.c.l.b16 %v2803
      %v2962 = vunpack.c.h.b16 %v2803
      %v2963 = vunpack.c.l.b16 %v2804
      %v2964 = vunpack.c.h.b16 %v2804
      %v2965 = vunpack.c.l.b16 %v2805
      %v2966 = vunpack.c.h.b16 %v2805
      %v2967 = vunpack.c.l.b16 %v2806
      %v2968 = vunpack.c.h.b16 %v2806
      %v2969 = vunpack.c.l.b16 %v2807
      %v2970 = vunpack.c.h.b16 %v2807
      %v2971 = vunpack.c.l.b16 %v2808
      %v2972 = vunpack.c.h.b16 %v2808
      %v2973 = vunpack.c.l.b16 %v2809
      %v2974 = vunpack.c.h.b16 %v2809
      %v2975 = vunpack.c.l.b16 %v2810
      %v2976 = vunpack.c.h.b16 %v2810
      %v2977 = vunpack.c.l.b16 %v2811
      %v2978 = vunpack.c.h.b16 %v2811
      %v2979 = vunpack.c.l.b16 %v2812
      %v2980 = vunpack.c.h.b16 %v2812
      %v2981 = vunpack.c.l.b16 %v2813
      %v2982 = vunpack.c.h.b16 %v2813
      %v2983 = vunpack.c.l.b16 %v2814
      %v2984 = vunpack.c.h.b16 %v2814
      %v2985 = vunpack.c.l.b16 %v2815
      %v2986 = vunpack.c.h.b16 %v2815
      %v2987 = vunpack.c.l.b16 %v2816
      %v2988 = vunpack.c.h.b16 %v2816
      %v2989 = vunpack.c.l.b16 %v2817
      %v2990 = vunpack.c.h.b16 %v2817
      %v2991 = vunpack.c.l.b16 %v2818
      %v2992 = vunpack.c.h.b16 %v2818
      %v2993 = vunpack.c.l.b16 %v2819
      %v2994 = vunpack.c.h.b16 %v2819
      %v2995 = vunpack.c.l.b16 %v2820
      %v2996 = vunpack.c.h.b16 %v2820
      %v2997 = vunpack.c.l.b16 %v2821
      %v2998 = vunpack.c.h.b16 %v2821
      %v2999 = vunpack.c.l.b16 %v2822
      %v3000 = vunpack.c.h.b16 %v2822
      %v3001 = vunpack.c.l.b16 %v2823
      %v3002 = vunpack.c.h.b16 %v2823
      %v3003 = vunpack.c.l.b16 %v2824
      %v3004 = vunpack.c.h.b16 %v2824
      %v3005 = vunpack.c.l.b16 %v2825
      %v3006 = vunpack.c.h.b16 %v2825
      %v3007 = vunpack.c.l.b16 %v2826
      %v3008 = vunpack.c.h.b16 %v2826
      %v3009 = vunpack.c.l.b16 %v2827
      %v3010 = vunpack.c.h.b16 %v2827
      %v3011 = vunpack.c.l.b16 %v2828
      %v3012 = vunpack.c.h.b16 %v2828
      %v3013 = vunpack.c.l.b16 %v2829
      %v3014 = vunpack.c.h.b16 %v2829
      %v3015 = vunpack.c.l.b16 %v2830
      %v3016 = vunpack.c.h.b16 %v2830
      %v3017 = vunpack.c.l.b16 %v2831
      %v3018 = vunpack.c.h.b16 %v2831
      %v3019 = vunpack.c.l.b16 %v2832
      %v3020 = vunpack.c.h.b16 %v2832
      %v3021 = vunpack.c.l.b16 %v2833
      %v3022 = vunpack.c.h.b16 %v2833
      %v3023 = vunpack.c.l.b16 %v2834
      %v3024 = vunpack.c.h.b16 %v2834
      %v3025 = vunpack.c.l.b16 %v2835
      %v3026 = vunpack.c.h.b16 %v2835
      %v3027 = vunpack.c.l.b16 %v2836
      %v3028 = vunpack.c.h.b16 %v2836
      %v3029 = vunpack.c.l.b16 %v2837
      %v3030 = vunpack.c.h.b16 %v2837
      %v3031 = vunpack.c.l.b16 %v2838
      %v3032 = vunpack.c.h.b16 %v2838
      %v3033 = vunpack.c.l.b16 %v2839
      %v3034 = vunpack.c.h.b16 %v2839
      %v3035 = vunpack.c.l.b16 %v2840
      %v3036 = vunpack.c.h.b16 %v2840
      %v3037 = vunpack.c.l.b16 %v2841
      %v3038 = vunpack.c.h.b16 %v2841
      %v3039 = vunpack.c.l.b16 %v2842
      %v3040 = vunpack.c.h.b16 %v2842
      %v3041 = vunpack.c.l.b16 %v2843
      %v3042 = vunpack.c.h.b16 %v2843
      %v3043 = vunpack.c.l.b16 %v2844
      %v3044 = vunpack.c.h.b16 %v2844
      %v3045 = vunpack.c.l.b16 %v2845
      %v3046 = vunpack.c.h.b16 %v2845
      %v3047 = vunpack.c.l.b16 %v2846
      %v3048 = vunpack.c.h.b16 %v2846
      %v3049 = vunpack.c.l.b16 %v2847
      %v3050 = vunpack.c.h.b16 %v2847
      %v3051 = vunpack.c.l.b16 %v2848
      %v3052 = vunpack.c.h.b16 %v2848
      %v3053 = vpack.c.b16 %v2927, %v2925
      %v3054 = vpack.c.b16 %v2928, %v2926
      %v3055 = vpack.c.b16 %v2931, %v2929
      %v3056 = vpack.c.b16 %v2932, %v2930
      %v3057 = vpack.c.b16 %v2935, %v2933
      %v3058 = vpack.c.b16 %v2936, %v2934
      %v3059 = vpack.c.b16 %v2939, %v2937
      %v3060 = vpack.c.b16 %v2940, %v2938
      %v3061 = vpack.c.b16 %v2943, %v2941
      %v3062 = vpack.c.b16 %v2944, %v2942
      %v3063 = vpack.c.b16 %v2947, %v2945
      %v3064 = vpack.c.b16 %v2948, %v2946
      %v3065 = vpack.c.b16 %v2951, %v2949
      %v3066 = vpack.c.b16 %v2952, %v2950
      %v3067 = vpack.c.b16 %v2955, %v2953
      %v3068 = vpack.c.b16 %v2956, %v2954
      %v3069 = vpack.c.b16 %v2959, %v2957
      %v3070 = vpack.c.b16 %v2960, %v2958
      %v3071 = vpack.c.b16 %v2963, %v2961
      %v3072 = vpack.c.b16 %v2964, %v2962
      %v3073 = vpack.c.b16 %v2967, %v2965
      %v3074 = vpack.c.b16 %v2968, %v2966
      %v3075 = vpack.c.b16 %v2971, %v2969
      %v3076 = vpack.c.b16 %v2972, %v2970
      %v3077 = vpack.c.b16 %v2975, %v2973
      %v3078 = vpack.c.b16 %v2976, %v2974
      %v3079 = vpack.c.b16 %v2979, %v2977
      %v3080 = vpack.c.b16 %v2980, %v2978
      %v3081 = vpack.c.b16 %v2983, %v2981
      %v3082 = vpack.c.b16 %v2984, %v2982
      %v3083 = vpack.c.b16 %v2987, %v2985
      %v3084 = vpack.c.b16 %v2988, %v2986
      %v3085 = vpack.c.b16 %v2991, %v2989
      %v3086 = vpack.c.b16 %v2992, %v2990
      %v3087 = vpack.c.b16 %v2995, %v2993
      %v3088 = vpack.c.b16 %v2996, %v2994
      %v3089 = vpack.c.b16 %v2999, %v2997
      %v3090 = vpack.c.b16 %v3000, %v2998
      %v3091 = vpack.c.b16 %v3003, %v3001
      %v3092 = vpack.c.b16 %v3004, %v3002
      %v3093 = vpack.c.b16 %v3007, %v3005
      %v3094 = vpack.c.b16 %v3008, %v3006
      %v3095 = vpack.c.b16 %v3011, %v3009
      %v3096 = vpack.c.b16 %v3012, %v3010
      %v3097 = vpack.c.b16 %v3015, %v3013
      %v3098 = vpack.c.b16 %v3016, %v3014
      %v3099 = vpack.c.b16 %v3019, %v3017
      %v3100 = vpack.c.b16 %v3020, %v3018
      %v3101 = vpack.c.b16 %v3023, %v3021
      %v3102 = vpack.c.b16 %v3024, %v3022
      %v3103 = vpack.c.b16 %v3027, %v3025
      %v3104 = vpack.c.b16 %v3028, %v3026
      %v3105 = vpack.c.b16 %v3031, %v3029
      %v3106 = vpack.c.b16 %v3032, %v3030
      %v3107 = vpack.c.b16 %v3035, %v3033
      %v3108 = vpack.c.b16 %v3036, %v3034
      %v3109 = vpack.c.b16 %v3039, %v3037
      %v3110 = vpack.c.b16 %v3040, %v3038
      %v3111 = vpack.c.b16 %v3043, %v3041
      %v3112 = vpack.c.b16 %v3044, %v3042
      %v3113 = vpack.c.b16 %v3047, %v3045
      %v3114 = vpack.c.b16 %v3048, %v3046
      %v3115 = vpack.c.b16 %v3051, %v3049
      %v3116 = vpack.c.b16 %v3052, %v3050
      %3181 = vmatprep.subr.bf16.mxu0 %v3054
      %3182 = vmatpush1.bf16.msra.mxu0 %v3053
      %3183 = vmatprep.subr.bf16.mxu0 %v3056
      %3184 = vmatpush1.bf16.msra.mxu0 %v3055
      %3185 = vmatprep.subr.bf16.mxu0 %v3058
      %3186 = vmatpush1.bf16.msra.mxu0 %v3057
      %3187 = vmatprep.subr.bf16.mxu0 %v3060
      %3188 = vmatpush1.bf16.msra.mxu0 %v3059
      %3189 = vmatprep.subr.bf16.mxu0 %v3062
      %3190 = vmatpush1.bf16.msra.mxu0 %v3061
      %3191 = vmatprep.subr.bf16.mxu0 %v3064
      %3192 = vmatpush1.bf16.msra.mxu0 %v3063
      %3193 = vmatprep.subr.bf16.mxu0 %v3066
      %3194 = vmatpush1.bf16.msra.mxu0 %v3065
      %3195 = vmatprep.subr.bf16.mxu0 %v3068
      %3196 = vmatpush1.bf16.msra.mxu0 %v3067
      %3197 = vmatprep.subr.bf16.mxu0 %v3070
      %3198 = vmatpush1.bf16.msra.mxu0 %v3069
      %3199 = vmatprep.subr.bf16.mxu0 %v3072
      %3200 = vmatpush1.bf16.msra.mxu0 %v3071
      %3201 = vmatprep.subr.bf16.mxu0 %v3074
      %3202 = vmatpush1.bf16.msra.mxu0 %v3073
      %3203 = vmatprep.subr.bf16.mxu0 %v3076
      %3204 = vmatpush1.bf16.msra.mxu0 %v3075
      %3205 = vmatprep.subr.bf16.mxu0 %v3078
      %3206 = vmatpush1.bf16.msra.mxu0 %v3077
      %3207 = vmatprep.subr.bf16.mxu0 %v3080
      %3208 = vmatpush1.bf16.msra.mxu0 %v3079
      %3209 = vmatprep.subr.bf16.mxu0 %v3082
      %3210 = vmatpush1.bf16.msra.mxu0 %v3081
      %3211 = vmatprep.subr.bf16.mxu0 %v3084
      %3212 = vmatpush1.bf16.msra.mxu0 %v3083
      %3213 = vmatprep.mubr.bf16.mxu0 %v2754
      %3214 = vmatmul.mubr.bf16.gmra.mrb[0].mxu0 %v2753
      %v3215 = vpop.f32.mrb[0].mxu0
      %v3216 = vadd.f32 %v2854, %v3215
      %v3217 = vpop.f32.mrb[0].mxu0
      %v3218 = vadd.f32 %v2858, %v3217
      %v3219 = vpop.f32.mrb[0].mxu0
      %v3220 = vadd.f32 %v2854, %v3219
      %v3221 = vpop.f32.mrb[0].mxu0
      %v3222 = vadd.f32 %v2858, %v3221
      %3223 = vmatprep.mubr.bf16.mxu0 %v2758
      %3224 = vmatmul.mubr.bf16.gmra.mrb[0].mxu0 %v2757
      %v3225 = vpop.f32.mrb[0].mxu0
      %v3226 = vadd.f32 %v2854, %v3225
      %v3227 = vpop.f32.mrb[0].mxu0
      %v3228 = vadd.f32 %v2858, %v3227
      %v3229 = vpop.f32.mrb[0].mxu0
      %v3230 = vadd.f32 %v2854, %v3229
      %v3231 = vpop.f32.mrb[0].mxu0
      %v3232 = vadd.f32 %v2858, %v3231
      %3233 = vmatprep.mubr.bf16.mxu0 %v2762
      %3234 = vmatmul.mubr.bf16.gmra.mrb[0].mxu0 %v2761
      %v3235 = vpop.f32.mrb[0].mxu0
      %v3236 = vadd.f32 %v2854, %v3235
      %v3237 = vpop.f32.mrb[0].mxu0
      %v3238 = vadd.f32 %v2858, %v3237
      %v3239 = vpop.f32.mrb[0].mxu0
      %v3240 = vadd.f32 %v2854, %v3239
      %v3241 = vpop.f32.mrb[0].mxu0
      %v3242 = vadd.f32 %v2858, %v3241
      %3243 = vmatprep.mubr.bf16.mxu0 %v2766
      %3244 = vmatmul.mubr.bf16.gmra.mrb[0].mxu0 %v2765
      %v3245 = vpop.f32.mrb[0].mxu0
      %v3246 = vadd.f32 %v2854, %v3245
      %v3247 = vpop.f32.mrb[0].mxu0
      %v3248 = vadd.f32 %v2858, %v3247
      %v3249 = vpop.f32.mrb[0].mxu0
      %v3250 = vadd.f32 %v2854, %v3249
      %v3251 = vpop.f32.mrb[0].mxu0
      %v3252 = vadd.f32 %v2858, %v3251
      %3253 = vmatprep.mubr.bf16.mxu0 %v2770
      %3254 = vmatmul.mubr.bf16.gmra.mrb[0].mxu0 %v2769
      %v3255 = vpop.f32.mrb[0].mxu0
      %v3256 = vadd.f32 %v2854, %v3255
      %v3257 = vpop.f32.mrb[0].mxu0
      %v3258 = vadd.f32 %v2858, %v3257
      %v3259 = vpop.f32.mrb[0].mxu0
      %v3260 = vadd.f32 %v2854, %v3259
      %v3261 = vpop.f32.mrb[0].mxu0
      %v3262 = vadd.f32 %v2858, %v3261
      %3263 = vmatprep.mubr.bf16.mxu0 %v2774
      %3264 = vmatmul.mubr.bf16.gmra.mrb[0].mxu0 %v2773
      %v3265 = vpop.f32.mrb[0].mxu0
      %v3266 = vadd.f32 %v2854, %v3265
      %v3267 = vpop.f32.mrb[0].mxu0
      %v3268 = vadd.f32 %v2858, %v3267
      %v3269 = vpop.f32.mrb[0].mxu0
      %v3270 = vadd.f32 %v2854, %v3269
      %v3271 = vpop.f32.mrb[0].mxu0
      %v3272 = vadd.f32 %v2858, %v3271
      %3273 = vmatprep.mubr.bf16.mxu0 %v2778
      %3274 = vmatmul.mubr.bf16.gmra.mrb[0].mxu0 %v2777
      %v3275 = vpop.f32.mrb[0].mxu0
      %v3276 = vadd.f32 %v2854, %v3275
      %v3277 = vpop.f32.mrb[0].mxu0
      %v3278 = vadd.f32 %v2858, %v3277
      %v3279 = vpop.f32.mrb[0].mxu0
      %v3280 = vadd.f32 %v2854, %v3279
      %v3281 = vpop.f32.mrb[0].mxu0
      %v3282 = vadd.f32 %v2858, %v3281
      %3283 = vmatprep.mubr.bf16.mxu0 %v2782
      %3284 = vmatmul.mubr.bf16.gmra.mrb[0].mxu0 %v2781
      %v3285 = vpop.f32.mrb[0].mxu0
      %v3286 = vadd.f32 %v2854, %v3285
      %v3287 = vpop.f32.mrb[0].mxu0
      %v3288 = vadd.f32 %v2858, %v3287
      %v3289 = vpop.f32.mrb[0].mxu0
      %v3290 = vadd.f32 %v2854, %v3289
      %v3291 = vpop.f32.mrb[0].mxu0
      %v3292 = vadd.f32 %v2858, %v3291
      %3293 = vdwg.mxu0
      %3294 = vmatprep.subr.bf16.mxu0 %v3086
      %3295 = vmatpush1.bf16.msra.mxu0 %v3085
      %3296 = vmatprep.subr.bf16.mxu0 %v3088
      %3297 = vmatpush1.bf16.msra.mxu0 %v3087
      %3298 = vmatprep.subr.bf16.mxu0 %v3090
      %3299 = vmatpush1.bf16.msra.mxu0 %v3089
      %3300 = vmatprep.subr.bf16.mxu0 %v3092
      %3301 = vmatpush1.bf16.msra.mxu0 %v3091
      %3302 = vmatprep.subr.bf16.mxu0 %v3094
      %3303 = vmatpush1.bf16.msra.mxu0 %v3093
      %3304 = vmatprep.subr.bf16.mxu0 %v3096
      %3305 = vmatpush1.bf16.msra.mxu0 %v3095
      %3306 = vmatprep.subr.bf16.mxu0 %v3098
      %3307 = vmatpush1.bf16.msra.mxu0 %v3097
      %3308 = vmatprep.subr.bf16.mxu0 %v3100
      %3309 = vmatpush1.bf16.msra.mxu0 %v3099
      %3310 = vmatprep.subr.bf16.mxu0 %v3102
      %3311 = vmatpush1.bf16.msra.mxu0 %v3101
      %3312 = vmatprep.subr.bf16.mxu0 %v3104
      %3313 = vmatpush1.bf16.msra.mxu0 %v3103
      %3314 = vmatprep.subr.bf16.mxu0 %v3106
      %3315 = vmatpush1.bf16.msra.mxu0 %v3105
      %3316 = vmatprep.subr.bf16.mxu0 %v3108
      %3317 = vmatpush1.bf16.msra.mxu0 %v3107
      %3318 = vmatprep.subr.bf16.mxu0 %v3110
      %3319 = vmatpush1.bf16.msra.mxu0 %v3109
      %3320 = vmatprep.subr.bf16.mxu0 %v3112
      %3321 = vmatpush1.bf16.msra.mxu0 %v3111
      %3322 = vmatprep.subr.bf16.mxu0 %v3114
      %3323 = vmatpush1.bf16.msra.mxu0 %v3113
      %3324 = vmatprep.subr.bf16.mxu0 %v3116
      %3325 = vmatpush1.bf16.msra.mxu0 %v3115
      %3326 = vmatprep.mubr.bf16.mxu0 %v2756
      %3327 = vmatmul.mubr.bf16.gmra.mrb[0].mxu0 %v2755
      %v3328 = vpop.f32.mrb[0].mxu0
      %v3329 = vadd.f32 %v3216, %v3328
      %v3330 = vpop.f32.mrb[0].mxu0
      %v3331 = vadd.f32 %v3218, %v3330
      %v3332 = vpop.f32.mrb[0].mxu0
      %v3333 = vadd.f32 %v3220, %v3332
      %v3334 = vpop.f32.mrb[0].mxu0
      %v3335 = vadd.f32 %v3222, %v3334
      %3336 = vmatprep.mubr.bf16.mxu0 %v2760
      %3337 = vmatmul.mubr.bf16.gmra.mrb[0].mxu0 %v2759
      %v3338 = vpop.f32.mrb[0].mxu0
      %v3339 = vadd.f32 %v3226, %v3338
      %v3340 = vpop.f32.mrb[0].mxu0
      %v3341 = vadd.f32 %v3228, %v3340
      %v3342 = vpop.f32.mrb[0].mxu0
      %v3343 = vadd.f32 %v3230, %v3342
      %v3344 = vpop.f32.mrb[0].mxu0
      %v3345 = vadd.f32 %v3232, %v3344
      %3346 = vmatprep.mubr.bf16.mxu0 %v2764
      %3347 = vmatmul.mubr.bf16.gmra.mrb[0].mxu0 %v2763
      %v3348 = vpop.f32.mrb[0].mxu0
      %v3349 = vadd.f32 %v3236, %v3348
      %v3350 = vpop.f32.mrb[0].mxu0
      %v3351 = vadd.f32 %v3238, %v3350
      %v3352 = vpop.f32.mrb[0].mxu0
      %v3353 = vadd.f32 %v3240, %v3352
      %v3354 = vpop.f32.mrb[0].mxu0
      %v3355 = vadd.f32 %v3242, %v3354
      %3356 = vmatprep.mubr.bf16.mxu0 %v2768
      %3357 = vmatmul.mubr.bf16.gmra.mrb[0].mxu0 %v2767
      %v3358 = vpop.f32.mrb[0].mxu0
      %v3359 = vadd.f32 %v3246, %v3358
      %v3360 = vpop.f32.mrb[0].mxu0
      %v3361 = vadd.f32 %v3248, %v3360
      %v3362 = vpop.f32.mrb[0].mxu0
      %v3363 = vadd.f32 %v3250, %v3362
      %v3364 = vpop.f32.mrb[0].mxu0
      %v3365 = vadd.f32 %v3252, %v3364
      %3366 = vmatprep.mubr.bf16.mxu0 %v2772
      %3367 = vmatmul.mubr.bf16.gmra.mrb[0].mxu0 %v2771
      %v3368 = vpop.f32.mrb[0].mxu0
      %v3369 = vadd.f32 %v3256, %v3368
      %v3370 = vpop.f32.mrb[0].mxu0
      %v3371 = vadd.f32 %v3258, %v3370
      %v3372 = vpop.f32.mrb[0].mxu0
      %v3373 = vadd.f32 %v3260, %v3372
      %v3374 = vpop.f32.mrb[0].mxu0
      %v3375 = vadd.f32 %v3262, %v3374
      %3376 = vmatprep.mubr.bf16.mxu0 %v2776
      %3377 = vmatmul.mubr.bf16.gmra.mrb[0].mxu0 %v2775
      %v3378 = vpop.f32.mrb[0].mxu0
      %v3379 = vadd.f32 %v3266, %v3378
      %v3380 = vpop.f32.mrb[0].mxu0
      %v3381 = vadd.f32 %v3268, %v3380
      %v3382 = vpop.f32.mrb[0].mxu0
      %v3383 = vadd.f32 %v3270, %v3382
      %v3384 = vpop.f32.mrb[0].mxu0
      %v3385 = vadd.f32 %v3272, %v3384
      %3386 = vmatprep.mubr.bf16.mxu0 %v2780
      %3387 = vmatmul.mubr.bf16.gmra.mrb[0].mxu0 %v2779
      %v3388 = vpop.f32.mrb[0].mxu0
      %v3389 = vadd.f32 %v3276, %v3388
      %v3390 = vpop.f32.mrb[0].mxu0
      %v3391 = vadd.f32 %v3278, %v3390
      %v3392 = vpop.f32.mrb[0].mxu0
      %v3393 = vadd.f32 %v3280, %v3392
      %v3394 = vpop.f32.mrb[0].mxu0
      %v3395 = vadd.f32 %v3282, %v3394
      %3396 = vmatprep.mubr.bf16.mxu0 %v2784
      %3397 = vmatmul.mubr.bf16.gmra.mrb[0].mxu0 %v2783
      %v3398 = vpop.f32.mrb[0].mxu0
      %v3399 = vadd.f32 %v3286, %v3398
      %v3400 = vpop.f32.mrb[0].mxu0
      %v3401 = vadd.f32 %v3288, %v3400
      %v3402 = vpop.f32.mrb[0].mxu0
      %v3403 = vadd.f32 %v3290, %v3402
      %v3404 = vpop.f32.mrb[0].mxu0
      %v3405 = vadd.f32 %v3292, %v3404
      %3406 = vdwg.mxu0
      %v3407 = vmax.f32 %v3329, 0.0
      %v3408 = vmax.f32 %v3331, 0.0
      %v3409 = vmax.f32 %v3333, 0.0
      %v3410 = vmax.f32 %v3335, 0.0
      %v3411 = vmax.f32 %v3339, 0.0
      %v3412 = vmax.f32 %v3341, 0.0
      %v3413 = vmax.f32 %v3343, 0.0
      %v3414 = vmax.f32 %v3345, 0.0
      %v3415 = vmax.f32 %v3349, 0.0
      %v3416 = vmax.f32 %v3351, 0.0
      %v3417 = vmax.f32 %v3353, 0.0
      %v3418 = vmax.f32 %v3355, 0.0
      %v3419 = vmax.f32 %v3359, 0.0
      %v3420 = vmax.f32 %v3361, 0.0
      %v3421 = vmax.f32 %v3363, 0.0
      %v3422 = vmax.f32 %v3365, 0.0
      %v3423 = vmax.f32 %v3369, 0.0
      %v3424 = vmax.f32 %v3371, 0.0
      %v3425 = vmax.f32 %v3373, 0.0
      %v3426 = vmax.f32 %v3375, 0.0
      %v3427 = vmax.f32 %v3379, 0.0
      %v3428 = vmax.f32 %v3381, 0.0
      %v3429 = vmax.f32 %v3383, 0.0
      %v3430 = vmax.f32 %v3385, 0.0
      %v3431 = vmax.f32 %v3389, 0.0
      %v3432 = vmax.f32 %v3391, 0.0
      %v3433 = vmax.f32 %v3393, 0.0
      %v3434 = vmax.f32 %v3395, 0.0
      %v3435 = vmax.f32 %v3399, 0.0
      %v3436 = vmax.f32 %v3401, 0.0
      %v3437 = vmax.f32 %v3403, 0.0
      %v3438 = vmax.f32 %v3405, 0.0
      %v3439 = vpack.c.bf16 %v3409, %v3407
      %v3440 = vpack.c.bf16 %v3410, %v3408
      %v3441 = vpack.c.bf16 %v3413, %v3411
      %v3442 = vpack.c.bf16 %v3414, %v3412
      %v3443 = vpack.c.bf16 %v3417, %v3415
      %v3444 = vpack.c.bf16 %v3418, %v3416
      %v3445 = vpack.c.bf16 %v3421, %v3419
      %v3446 = vpack.c.bf16 %v3422, %v3420
      %v3447 = vpack.c.bf16 %v3425, %v3423
      %v3448 = vpack.c.bf16 %v3426, %v3424
      %v3449 = vpack.c.bf16 %v3429, %v3427
      %v3450 = vpack.c.bf16 %v3430, %v3428
      %v3451 = vpack.c.bf16 %v3433, %v3431
      %v3452 = vpack.c.bf16 %v3434, %v3432
      %v3453 = vpack.c.bf16 %v3437, %v3435
      %v3454 = vpack.c.bf16 %v3438, %v3436
      %v3455 = vld [vmem:[%s5] sm:$0xf]
      %v3456 = vld [vmem:[%s5 + $0x4] sm:$0xf]
      %v3457 = vld [vmem:[%s5 + $0x8] sm:$0xf]
      %v3458 = vld [vmem:[%s5 + $0xc] sm:$0xf]
      %v3459 = vld [vmem:[%s5 + $0x10] sm:$0xf]
      %v3460 = vld [vmem:[%s5 + $0x14] sm:$0xf]
      %v3461 = vld [vmem:[%s5 + $0x18] sm:$0xf]
      %v3462 = vld [vmem:[%s5 + $0x1c] sm:$0xf]
      %v3463 = vld [vmem:[%s5 + $0x20] sm:$0xf]
      %v3464 = vld [vmem:[%s5 + $0x24] sm:$0xf]
      %v3465 = vld [vmem:[%s5 + $0x28] sm:$0xf]
      %v3466 = vld [vmem:[%s5 + $0x2c] sm:$0xf]
      %v3467 = vld [vmem:[%s5 + $0x30] sm:$0xf]
      %v3468 = vld [vmem:[%s5 + $0x34] sm:$0xf]
      %v3469 = vld [vmem:[%s5 + $0x38] sm:$0xf]
      %v3470 = vld [vmem:[%s5 + $0x3c] sm:$0xf]
      %v3471 = vld [vmem:[%s5 + $0x40] sm:$0xf]
      %v3472 = vld [vmem:[%s5 + $0x44] sm:$0xf]
      %v3473 = vld [vmem:[%s5 + $0x48] sm:$0xf]
      %v3474 = vld [vmem:[%s5 + $0x4c] sm:$0xf]
      %v3475 = vld [vmem:[%s5 + $0x50] sm:$0xf]
      %v3476 = vld [vmem:[%s5 + $0x54] sm:$0xf]
      %v3477 = vld [vmem:[%s5 + $0x58] sm:$0xf]
      %v3478 = vld [vmem:[%s5 + $0x5c] sm:$0xf]
      %v3479 = vld [vmem:[%s5 + $0x60] sm:$0xf]
      %v3480 = vld [vmem:[%s5 + $0x64] sm:$0xf]
      %v3481 = vld [vmem:[%s5 + $0x68] sm:$0xf]
      %v3482 = vld [vmem:[%s5 + $0x6c] sm:$0xf]
      %v3483 = vld [vmem:[%s5 + $0x70] sm:$0xf]
      %v3484 = vld [vmem:[%s5 + $0x74] sm:$0xf]
      %v3485 = vld [vmem:[%s5 + $0x78] sm:$0xf]
      %v3486 = vld [vmem:[%s5 + $0x7c] sm:$0xf]
      %v3487 = vld [vmem:[%s6] sm:$0x1]
      %v3489 = vlaneseq
      %v3490 = vshrl.u32 %v3489, 7
      %v3491 = vsub.s32 0, %v3490
      %v3492 = vrot.slane %v3487, %v3491
      %v3526 = vunpack.c.l.b16 %v3455
      %v3527 = vunpack.c.l.b16 %v3456
      %v3528 = vunpack.c.l.b16 %v3457
      %v3529 = vunpack.c.l.b16 %v3458
      %v3530 = vunpack.c.l.b16 %v3459
      %v3531 = vunpack.c.l.b16 %v3460
      %v3532 = vunpack.c.l.b16 %v3461
      %v3533 = vunpack.c.l.b16 %v3462
      %v3534 = vunpack.c.l.b16 %v3463
      %v3535 = vunpack.c.l.b16 %v3464
      %v3536 = vunpack.c.l.b16 %v3465
      %v3537 = vunpack.c.l.b16 %v3466
      %v3538 = vunpack.c.l.b16 %v3467
      %v3539 = vunpack.c.l.b16 %v3468
      %v3540 = vunpack.c.l.b16 %v3469
      %v3541 = vunpack.c.l.b16 %v3470
      %v3542 = vunpack.c.l.b16 %v3471
      %v3543 = vunpack.c.l.b16 %v3472
      %v3544 = vunpack.c.l.b16 %v3473
      %v3545 = vunpack.c.l.b16 %v3474
      %v3546 = vunpack.c.l.b16 %v3475
      %v3547 = vunpack.c.l.b16 %v3476
      %v3548 = vunpack.c.l.b16 %v3477
      %v3549 = vunpack.c.l.b16 %v3478
      %v3550 = vunpack.c.l.b16 %v3479
      %v3551 = vunpack.c.l.b16 %v3480
      %v3552 = vunpack.c.l.b16 %v3481
      %v3553 = vunpack.c.l.b16 %v3482
      %v3554 = vunpack.c.l.b16 %v3483
      %v3555 = vunpack.c.l.b16 %v3484
      %v3556 = vunpack.c.l.b16 %v3485
      %v3557 = vunpack.c.l.b16 %v3486
      %v3558 = vpack.c.b16 %v3527, %v3526
      %v3559 = vpack.c.b16 %v3529, %v3528
      %v3560 = vpack.c.b16 %v3531, %v3530
      %v3561 = vpack.c.b16 %v3533, %v3532
      %v3562 = vpack.c.b16 %v3535, %v3534
      %v3563 = vpack.c.b16 %v3537, %v3536
      %v3564 = vpack.c.b16 %v3539, %v3538
      %v3565 = vpack.c.b16 %v3541, %v3540
      %v3566 = vpack.c.b16 %v3543, %v3542
      %v3567 = vpack.c.b16 %v3545, %v3544
      %v3568 = vpack.c.b16 %v3547, %v3546
      %v3569 = vpack.c.b16 %v3549, %v3548
      %v3570 = vpack.c.b16 %v3551, %v3550
      %v3571 = vpack.c.b16 %v3553, %v3552
      %v3572 = vpack.c.b16 %v3555, %v3554
      %v3573 = vpack.c.b16 %v3557, %v3556
      %3590 = vmatprep.subr.bf16.mxu0 0
      %3591 = vmatpush1.bf16.msra.mxu0 %v3558
      %3592 = vmatprep.subr.bf16.mxu0 0
      %3593 = vmatpush1.bf16.msra.mxu0 %v3559
      %3594 = vmatprep.subr.bf16.mxu0 0
      %3595 = vmatpush1.bf16.msra.mxu0 %v3560
      %3596 = vmatprep.subr.bf16.mxu0 0
      %3597 = vmatpush1.bf16.msra.mxu0 %v3561
      %3598 = vmatprep.subr.bf16.mxu0 0
      %3599 = vmatpush1.bf16.msra.mxu0 %v3562
      %3600 = vmatprep.subr.bf16.mxu0 0
      %3601 = vmatpush1.bf16.msra.mxu0 %v3563
      %3602 = vmatprep.subr.bf16.mxu0 0
      %3603 = vmatpush1.bf16.msra.mxu0 %v3564
      %3604 = vmatprep.subr.bf16.mxu0 0
      %3605 = vmatpush1.bf16.msra.mxu0 %v3565
      %3606 = vmatprep.subr.bf16.mxu0 0
      %3607 = vmatpush1.bf16.msra.mxu0 %v3566
      %3608 = vmatprep.subr.bf16.mxu0 0
      %3609 = vmatpush1.bf16.msra.mxu0 %v3567
      %3610 = vmatprep.subr.bf16.mxu0 0
      %3611 = vmatpush1.bf16.msra.mxu0 %v3568
      %3612 = vmatprep.subr.bf16.mxu0 0
      %3613 = vmatpush1.bf16.msra.mxu0 %v3569
      %3614 = vmatprep.subr.bf16.mxu0 0
      %3615 = vmatpush1.bf16.msra.mxu0 %v3570
      %3616 = vmatprep.subr.bf16.mxu0 0
      %3617 = vmatpush1.bf16.msra.mxu0 %v3571
      %3618 = vmatprep.subr.bf16.mxu0 0
      %3619 = vmatpush1.bf16.msra.mxu0 %v3572
      %3620 = vmatprep.subr.bf16.mxu0 0
      %3621 = vmatpush1.bf16.msra.mxu0 %v3573
      %3622 = vmatprep.mubr.bf16.mxu0 %v3440
      %3623 = vmatmul.mubr.bf16.gmra.mrb[0].mxu0 %v3439
      %v3624 = vpop.f32.mrb[0].mxu0
      %v3625 = vadd.f32 %v3492, %v3624
      %v3626 = vpop.f32.mrb[0].mxu0
      %v3627 = vpop.f32.mrb[0].mxu0
      %v3628 = vadd.f32 %v3492, %v3627
      %v3629 = vpop.f32.mrb[0].mxu0
      %3630 = vmatprep.mubr.bf16.mxu0 %v3442
      %3631 = vmatmul.mubr.bf16.gmra.mrb[0].mxu0 %v3441
      %v3632 = vpop.f32.mrb[0].mxu0
      %v3633 = vadd.f32 %v3492, %v3632
      %v3634 = vpop.f32.mrb[0].mxu0
      %v3635 = vpop.f32.mrb[0].mxu0
      %v3636 = vadd.f32 %v3492, %v3635
      %v3637 = vpop.f32.mrb[0].mxu0
      %3638 = vmatprep.mubr.bf16.mxu0 %v3444
      %3639 = vmatmul.mubr.bf16.gmra.mrb[0].mxu0 %v3443
      %v3640 = vpop.f32.mrb[0].mxu0
      %v3641 = vadd.f32 %v3492, %v3640
      %v3642 = vpop.f32.mrb[0].mxu0
      %v3643 = vpop.f32.mrb[0].mxu0
      %v3644 = vadd.f32 %v3492, %v3643
      %v3645 = vpop.f32.mrb[0].mxu0
      %3646 = vmatprep.mubr.bf16.mxu0 %v3446
      %3647 = vmatmul.mubr.bf16.gmra.mrb[0].mxu0 %v3445
      %v3648 = vpop.f32.mrb[0].mxu0
      %v3649 = vadd.f32 %v3492, %v3648
      %v3650 = vpop.f32.mrb[0].mxu0
      %v3651 = vpop.f32.mrb[0].mxu0
      %v3652 = vadd.f32 %v3492, %v3651
      %v3653 = vpop.f32.mrb[0].mxu0
      %3654 = vmatprep.mubr.bf16.mxu0 %v3448
      %3655 = vmatmul.mubr.bf16.gmra.mrb[0].mxu0 %v3447
      %v3656 = vpop.f32.mrb[0].mxu0
      %v3657 = vadd.f32 %v3492, %v3656
      %v3658 = vpop.f32.mrb[0].mxu0
      %v3659 = vpop.f32.mrb[0].mxu0
      %v3660 = vadd.f32 %v3492, %v3659
      %v3661 = vpop.f32.mrb[0].mxu0
      %3662 = vmatprep.mubr.bf16.mxu0 %v3450
      %3663 = vmatmul.mubr.bf16.gmra.mrb[0].mxu0 %v3449
      %v3664 = vpop.f32.mrb[0].mxu0
      %v3665 = vadd.f32 %v3492, %v3664
      %v3666 = vpop.f32.mrb[0].mxu0
      %v3667 = vpop.f32.mrb[0].mxu0
      %v3668 = vadd.f32 %v3492, %v3667
      %v3669 = vpop.f32.mrb[0].mxu0
      %3670 = vmatprep.mubr.bf16.mxu0 %v3452
      %3671 = vmatmul.mubr.bf16.gmra.mrb[0].mxu0 %v3451
      %v3672 = vpop.f32.mrb[0].mxu0
      %v3673 = vadd.f32 %v3492, %v3672
      %v3674 = vpop.f32.mrb[0].mxu0
      %v3675 = vpop.f32.mrb[0].mxu0
      %v3676 = vadd.f32 %v3492, %v3675
      %v3677 = vpop.f32.mrb[0].mxu0
      %3678 = vmatprep.mubr.bf16.mxu0 %v3454
      %3679 = vmatmul.mubr.bf16.gmra.mrb[0].mxu0 %v3453
      %v3680 = vpop.f32.mrb[0].mxu0
      %v3681 = vadd.f32 %v3492, %v3680
      %v3682 = vpop.f32.mrb[0].mxu0
      %v3683 = vpop.f32.mrb[0].mxu0
      %v3684 = vadd.f32 %v3492, %v3683
      %v3685 = vpop.f32.mrb[0].mxu0
      %3686 = vdwg.mxu0
      %v3687 = vmax.f32 %v3625, 0.0
      %v3688 = vmax.f32 %v3628, 0.0
      %v3689 = vmax.f32 %v3633, 0.0
      %v3690 = vmax.f32 %v3636, 0.0
      %v3691 = vmax.f32 %v3641, 0.0
      %v3692 = vmax.f32 %v3644, 0.0
      %v3693 = vmax.f32 %v3649, 0.0
      %v3694 = vmax.f32 %v3652, 0.0
      %v3695 = vmax.f32 %v3657, 0.0
      %v3696 = vmax.f32 %v3660, 0.0
      %v3697 = vmax.f32 %v3665, 0.0
      %v3698 = vmax.f32 %v3668, 0.0
      %v3699 = vmax.f32 %v3673, 0.0
      %v3700 = vmax.f32 %v3676, 0.0
      %v3701 = vmax.f32 %v3681, 0.0
      %v3702 = vmax.f32 %v3684, 0.0
      %v3703 = vpack.c.bf16 %v3688, %v3687
      %v3704 = vpack.c.bf16 %v3690, %v3689
      %v3705 = vpack.c.bf16 %v3692, %v3691
      %v3706 = vpack.c.bf16 %v3694, %v3693
      %v3707 = vpack.c.bf16 %v3696, %v3695
      %v3708 = vpack.c.bf16 %v3698, %v3697
      %v3709 = vpack.c.bf16 %v3700, %v3699
      %v3710 = vpack.c.bf16 %v3702, %v3701
      %v3711 = vld [vmem:[%s7] sm:$0xf]
      %v3712 = vld [vmem:[%s7 + $0x4] sm:$0xf]
      %v3713 = vld [vmem:[%s7 + $0x8] sm:$0xf]
      %v3714 = vld [vmem:[%s7 + $0xc] sm:$0xf]
      %v3715 = vld [vmem:[%s7 + $0x10] sm:$0xf]
      %v3716 = vld [vmem:[%s7 + $0x14] sm:$0xf]
      %v3717 = vld [vmem:[%s7 + $0x18] sm:$0xf]
      %v3718 = vld [vmem:[%s7 + $0x1c] sm:$0xf]
      %v3719 = vld [vmem:[%s7 + $0x20] sm:$0xf]
      %v3720 = vld [vmem:[%s7 + $0x24] sm:$0xf]
      %v3721 = vld [vmem:[%s7 + $0x28] sm:$0xf]
      %v3722 = vld [vmem:[%s7 + $0x2c] sm:$0xf]
      %v3723 = vld [vmem:[%s7 + $0x30] sm:$0xf]
      %v3724 = vld [vmem:[%s7 + $0x34] sm:$0xf]
      %v3725 = vld [vmem:[%s7 + $0x38] sm:$0xf]
      %v3726 = vld [vmem:[%s7 + $0x3c] sm:$0xf]
      %v3727 = vld [vmem:[%s8] sm:$0x1]
      %v3729 = vlaneseq
      %v3730 = vshrl.u32 %v3729, 7
      %v3731 = vsub.s32 0, %v3730
      %v3732 = vrot.slane %v3727, %v3731
      %v3750 = vunpack.c.l.b16 %v3711
      %v3751 = vunpack.c.l.b16 %v3712
      %v3752 = vunpack.c.l.b16 %v3713
      %v3753 = vunpack.c.l.b16 %v3714
      %v3754 = vunpack.c.l.b16 %v3715
      %v3755 = vunpack.c.l.b16 %v3716
      %v3756 = vunpack.c.l.b16 %v3717
      %v3757 = vunpack.c.l.b16 %v3718
      %v3758 = vunpack.c.l.b16 %v3719
      %v3759 = vunpack.c.l.b16 %v3720
      %v3760 = vunpack.c.l.b16 %v3721
      %v3761 = vunpack.c.l.b16 %v3722
      %v3762 = vunpack.c.l.b16 %v3723
      %v3763 = vunpack.c.l.b16 %v3724
      %v3764 = vunpack.c.l.b16 %v3725
      %v3765 = vunpack.c.l.b16 %v3726
      %v3766 = vpack.c.b16 %v3751, %v3750
      %v3767 = vpack.c.b16 %v3753, %v3752
      %v3768 = vpack.c.b16 %v3755, %v3754
      %v3769 = vpack.c.b16 %v3757, %v3756
      %v3770 = vpack.c.b16 %v3759, %v3758
      %v3771 = vpack.c.b16 %v3761, %v3760
      %v3772 = vpack.c.b16 %v3763, %v3762
      %v3773 = vpack.c.b16 %v3765, %v3764
      %3782 = vmatprep.subr.bf16.mxu0 0
      %3783 = vmatpush1.bf16.msra.mxu0 %v3766
      %3784 = vmatprep.subr.bf16.mxu0 0
      %3785 = vmatpush1.bf16.msra.mxu0 %v3767
      %3786 = vmatprep.subr.bf16.mxu0 0
      %3787 = vmatpush1.bf16.msra.mxu0 %v3768
      %3788 = vmatprep.subr.bf16.mxu0 0
      %3789 = vmatpush1.bf16.msra.mxu0 %v3769
      %3790 = vmatprep.subr.bf16.mxu0 0
      %3791 = vmatpush1.bf16.msra.mxu0 %v3770
      %3792 = vmatprep.subr.bf16.mxu0 0
      %3793 = vmatpush1.bf16.msra.mxu0 %v3771
      %3794 = vmatprep.subr.bf16.mxu0 0
      %3795 = vmatpush1.bf16.msra.mxu0 %v3772
      %3796 = vmatprep.subr.bf16.mxu0 0
      %3797 = vmatpush1.bf16.msra.mxu0 %v3773
      %3798 = vmatprep.subr.bf16.mxu0 0
      %3799 = vmatpush1.bf16.msra.mxu0 0
      %3800 = vmatprep.subr.bf16.mxu0 0
      %3801 = vmatpush1.bf16.msra.mxu0 0
      %3802 = vmatprep.subr.bf16.mxu0 0
      %3803 = vmatpush1.bf16.msra.mxu0 0
      %3804 = vmatprep.subr.bf16.mxu0 0
      %3805 = vmatpush1.bf16.msra.mxu0 0
      %3806 = vmatprep.subr.bf16.mxu0 0
      %3807 = vmatpush1.bf16.msra.mxu0 0
      %3808 = vmatprep.subr.bf16.mxu0 0
      %3809 = vmatpush1.bf16.msra.mxu0 0
      %3810 = vmatprep.subr.bf16.mxu0 0
      %3811 = vmatpush1.bf16.msra.mxu0 0
      %3812 = vmatprep.subr.bf16.mxu0 0
      %3813 = vmatpush1.bf16.msra.mxu0 0
      %3814 = vmatprep.mubr.bf16.mxu0 0
      %3815 = vmatmul.mubr.bf16.gmra.mrb[0].mxu0 %v3703
      %v3816 = vpop.f32.mrb[0].mxu0
      %v3817 = vadd.f32 %v3732, %v3816
      %v3818 = vpop.f32.mrb[0].mxu0
      %v3819 = vpop.f32.mrb[0].mxu0
      %v3820 = vadd.f32 %v3732, %v3819
      %v3821 = vpop.f32.mrb[0].mxu0
      %3822 = vmatprep.mubr.bf16.mxu0 0
      %3823 = vmatmul.mubr.bf16.gmra.mrb[0].mxu0 %v3704
      %v3824 = vpop.f32.mrb[0].mxu0
      %v3825 = vadd.f32 %v3732, %v3824
      %v3826 = vpop.f32.mrb[0].mxu0
      %v3827 = vpop.f32.mrb[0].mxu0
      %v3828 = vadd.f32 %v3732, %v3827
      %v3829 = vpop.f32.mrb[0].mxu0
      %3830 = vmatprep.mubr.bf16.mxu0 0
      %3831 = vmatmul.mubr.bf16.gmra.mrb[0].mxu0 %v3705
      %v3832 = vpop.f32.mrb[0].mxu0
      %v3833 = vadd.f32 %v3732, %v3832
      %v3834 = vpop.f32.mrb[0].mxu0
      %v3835 = vpop.f32.mrb[0].mxu0
      %v3836 = vadd.f32 %v3732, %v3835
      %v3837 = vpop.f32.mrb[0].mxu0
      %3838 = vmatprep.mubr.bf16.mxu0 0
      %3839 = vmatmul.mubr.bf16.gmra.mrb[0].mxu0 %v3706
      %v3840 = vpop.f32.mrb[0].mxu0
      %v3841 = vadd.f32 %v3732, %v3840
      %v3842 = vpop.f32.mrb[0].mxu0
      %v3843 = vpop.f32.mrb[0].mxu0
      %v3844 = vadd.f32 %v3732, %v3843
      %v3845 = vpop.f32.mrb[0].mxu0
      %3846 = vmatprep.mubr.bf16.mxu0 0
      %3847 = vmatmul.mubr.bf16.gmra.mrb[0].mxu0 %v3707
      %v3848 = vpop.f32.mrb[0].mxu0
      %v3849 = vadd.f32 %v3732, %v3848
      %v3850 = vpop.f32.mrb[0].mxu0
      %v3851 = vpop.f32.mrb[0].mxu0
      %v3852 = vadd.f32 %v3732, %v3851
      %v3853 = vpop.f32.mrb[0].mxu0
      %3854 = vmatprep.mubr.bf16.mxu0 0
      %3855 = vmatmul.mubr.bf16.gmra.mrb[0].mxu0 %v3708
      %v3856 = vpop.f32.mrb[0].mxu0
      %v3857 = vadd.f32 %v3732, %v3856
      %v3858 = vpop.f32.mrb[0].mxu0
      %v3859 = vpop.f32.mrb[0].mxu0
      %v3860 = vadd.f32 %v3732, %v3859
      %v3861 = vpop.f32.mrb[0].mxu0
      %3862 = vmatprep.mubr.bf16.mxu0 0
      %3863 = vmatmul.mubr.bf16.gmra.mrb[0].mxu0 %v3709
      %v3864 = vpop.f32.mrb[0].mxu0
      %v3865 = vadd.f32 %v3732, %v3864
      %v3866 = vpop.f32.mrb[0].mxu0
      %v3867 = vpop.f32.mrb[0].mxu0
      %v3868 = vadd.f32 %v3732, %v3867
      %v3869 = vpop.f32.mrb[0].mxu0
      %3870 = vmatprep.mubr.bf16.mxu0 0
      %3871 = vmatmul.mubr.bf16.gmra.mrb[0].mxu0 %v3710
      %v3872 = vpop.f32.mrb[0].mxu0
      %v3873 = vadd.f32 %v3732, %v3872
      %v3874 = vpop.f32.mrb[0].mxu0
      %v3875 = vpop.f32.mrb[0].mxu0
      %v3876 = vadd.f32 %v3732, %v3875
      %v3877 = vpop.f32.mrb[0].mxu0
      %3878 = vdwg.mxu0
      %v3879 = vmax.f32 %v3817, 0.0
      %v3880 = vmax.f32 %v3820, 0.0
      %v3881 = vmax.f32 %v3825, 0.0
      %v3882 = vmax.f32 %v3828, 0.0
      %v3883 = vmax.f32 %v3833, 0.0
      %v3884 = vmax.f32 %v3836, 0.0
      %v3885 = vmax.f32 %v3841, 0.0
      %v3886 = vmax.f32 %v3844, 0.0
      %v3887 = vmax.f32 %v3849, 0.0
      %v3888 = vmax.f32 %v3852, 0.0
      %v3889 = vmax.f32 %v3857, 0.0
      %v3890 = vmax.f32 %v3860, 0.0
      %v3891 = vmax.f32 %v3865, 0.0
      %v3892 = vmax.f32 %v3868, 0.0
      %v3893 = vmax.f32 %v3873, 0.0
      %v3894 = vmax.f32 %v3876, 0.0
      %v3895 = vpack.c.bf16 %v3880, %v3879
      %v3896 = vpack.c.bf16 %v3882, %v3881
      %v3897 = vpack.c.bf16 %v3884, %v3883
      %v3898 = vpack.c.bf16 %v3886, %v3885
      %v3899 = vpack.c.bf16 %v3888, %v3887
      %v3900 = vpack.c.bf16 %v3890, %v3889
      %v3901 = vpack.c.bf16 %v3892, %v3891
      %v3902 = vpack.c.bf16 %v3894, %v3893
      %v3903 = vld [vmem:[%s9] sm:$0xf]
      %v3904 = vld [vmem:[%s9 + $0x4] sm:$0xf]
      %v3905 = vld [vmem:[%s9 + $0x8] sm:$0xf]
      %v3906 = vld [vmem:[%s9 + $0xc] sm:$0xf]
      %v3907 = vld [vmem:[%s9 + $0x10] sm:$0xf]
      %v3908 = vld [vmem:[%s9 + $0x14] sm:$0xf]
      %v3909 = vld [vmem:[%s9 + $0x18] sm:$0xf]
      %v3910 = vld [vmem:[%s9 + $0x1c] sm:$0xf]
      %v3911 = vld [vmem:[%s9 + $0x20] sm:$0xf]
      %v3912 = vld [vmem:[%s9 + $0x24] sm:$0xf]
      %v3913 = vld [vmem:[%s9 + $0x28] sm:$0xf]
      %v3914 = vld [vmem:[%s9 + $0x2c] sm:$0xf]
      %v3915 = vld [vmem:[%s9 + $0x30] sm:$0xf]
      %v3916 = vld [vmem:[%s9 + $0x34] sm:$0xf]
      %v3917 = vld [vmem:[%s9 + $0x38] sm:$0xf]
      %v3918 = vld [vmem:[%s9 + $0x3c] sm:$0xf]
      %v3919 = vld [vmem:[%s10] sm:$0x1]
      %v3921 = vlaneseq
      %v3922 = vshrl.u32 %v3921, 7
      %v3923 = vsub.s32 0, %v3922
      %v3924 = vrot.slane %v3919, %v3923
      %v3942 = vunpack.c.l.b16 %v3903
      %v3943 = vunpack.c.l.b16 %v3904
      %v3944 = vunpack.c.l.b16 %v3905
      %v3945 = vunpack.c.l.b16 %v3906
      %v3946 = vunpack.c.l.b16 %v3907
      %v3947 = vunpack.c.l.b16 %v3908
      %v3948 = vunpack.c.l.b16 %v3909
      %v3949 = vunpack.c.l.b16 %v3910
      %v3950 = vunpack.c.l.b16 %v3911
      %v3951 = vunpack.c.l.b16 %v3912
      %v3952 = vunpack.c.l.b16 %v3913
      %v3953 = vunpack.c.l.b16 %v3914
      %v3954 = vunpack.c.l.b16 %v3915
      %v3955 = vunpack.c.l.b16 %v3916
      %v3956 = vunpack.c.l.b16 %v3917
      %v3957 = vunpack.c.l.b16 %v3918
      %v3958 = vpack.c.b16 %v3943, %v3942
      %v3959 = vpack.c.b16 %v3945, %v3944
      %v3960 = vpack.c.b16 %v3947, %v3946
      %v3961 = vpack.c.b16 %v3949, %v3948
      %v3962 = vpack.c.b16 %v3951, %v3950
      %v3963 = vpack.c.b16 %v3953, %v3952
      %v3964 = vpack.c.b16 %v3955, %v3954
      %v3965 = vpack.c.b16 %v3957, %v3956
      %3974 = vmatprep.subr.bf16.mxu0 0
      %3975 = vmatpush1.bf16.msra.mxu0 %v3958
      %3976 = vmatprep.subr.bf16.mxu0 0
      %3977 = vmatpush1.bf16.msra.mxu0 %v3959
      %3978 = vmatprep.subr.bf16.mxu0 0
      %3979 = vmatpush1.bf16.msra.mxu0 %v3960
      %3980 = vmatprep.subr.bf16.mxu0 0
      %3981 = vmatpush1.bf16.msra.mxu0 %v3961
      %3982 = vmatprep.subr.bf16.mxu0 0
      %3983 = vmatpush1.bf16.msra.mxu0 %v3962
      %3984 = vmatprep.subr.bf16.mxu0 0
      %3985 = vmatpush1.bf16.msra.mxu0 %v3963
      %3986 = vmatprep.subr.bf16.mxu0 0
      %3987 = vmatpush1.bf16.msra.mxu0 %v3964
      %3988 = vmatprep.subr.bf16.mxu0 0
      %3989 = vmatpush1.bf16.msra.mxu0 %v3965
      %3990 = vmatprep.subr.bf16.mxu0 0
      %3991 = vmatpush1.bf16.msra.mxu0 0
      %3992 = vmatprep.subr.bf16.mxu0 0
      %3993 = vmatpush1.bf16.msra.mxu0 0
      %3994 = vmatprep.subr.bf16.mxu0 0
      %3995 = vmatpush1.bf16.msra.mxu0 0
      %3996 = vmatprep.subr.bf16.mxu0 0
      %3997 = vmatpush1.bf16.msra.mxu0 0
      %3998 = vmatprep.subr.bf16.mxu0 0
      %3999 = vmatpush1.bf16.msra.mxu0 0
      %4000 = vmatprep.subr.bf16.mxu0 0
      %4001 = vmatpush1.bf16.msra.mxu0 0
      %4002 = vmatprep.subr.bf16.mxu0 0
      %4003 = vmatpush1.bf16.msra.mxu0 0
      %4004 = vmatprep.subr.bf16.mxu0 0
      %4005 = vmatpush1.bf16.msra.mxu0 0
      %4006 = vmatprep.mubr.bf16.mxu0 0
      %4007 = vmatmul.mubr.bf16.gmra.mrb[0].mxu0 %v3895
      %v4008 = vpop.f32.mrb[0].mxu0
      %v4009 = vadd.f32 %v3924, %v4008
      %v4010 = vpop.f32.mrb[0].mxu0
      %v4011 = vpop.f32.mrb[0].mxu0
      %v4012 = vadd.f32 %v3924, %v4011
      %v4013 = vpop.f32.mrb[0].mxu0
      %4014 = vmatprep.mubr.bf16.mxu0 0
      %4015 = vmatmul.mubr.bf16.gmra.mrb[0].mxu0 %v3896
      %v4016 = vpop.f32.mrb[0].mxu0
      %v4017 = vadd.f32 %v3924, %v4016
      %v4018 = vpop.f32.mrb[0].mxu0
      %v4019 = vpop.f32.mrb[0].mxu0
      %v4020 = vadd.f32 %v3924, %v4019
      %v4021 = vpop.f32.mrb[0].mxu0
      %4022 = vmatprep.mubr.bf16.mxu0 0
      %4023 = vmatmul.mubr.bf16.gmra.mrb[0].mxu0 %v3897
      %v4024 = vpop.f32.mrb[0].mxu0
      %v4025 = vadd.f32 %v3924, %v4024
      %v4026 = vpop.f32.mrb[0].mxu0
      %v4027 = vpop.f32.mrb[0].mxu0
      %v4028 = vadd.f32 %v3924, %v4027
      %v4029 = vpop.f32.mrb[0].mxu0
      %4030 = vmatprep.mubr.bf16.mxu0 0
      %4031 = vmatmul.mubr.bf16.gmra.mrb[0].mxu0 %v3898
      %v4032 = vpop.f32.mrb[0].mxu0
      %v4033 = vadd.f32 %v3924, %v4032
      %v4034 = vpop.f32.mrb[0].mxu0
      %v4035 = vpop.f32.mrb[0].mxu0
      %v4036 = vadd.f32 %v3924, %v4035
      %v4037 = vpop.f32.mrb[0].mxu0
      %4038 = vmatprep.mubr.bf16.mxu0 0
      %4039 = vmatmul.mubr.bf16.gmra.mrb[0].mxu0 %v3899
      %v4040 = vpop.f32.mrb[0].mxu0
      %v4041 = vadd.f32 %v3924, %v4040
      %v4042 = vpop.f32.mrb[0].mxu0
      %v4043 = vpop.f32.mrb[0].mxu0
      %v4044 = vadd.f32 %v3924, %v4043
      %v4045 = vpop.f32.mrb[0].mxu0
      %4046 = vmatprep.mubr.bf16.mxu0 0
      %4047 = vmatmul.mubr.bf16.gmra.mrb[0].mxu0 %v3900
      %v4048 = vpop.f32.mrb[0].mxu0
      %v4049 = vadd.f32 %v3924, %v4048
      %v4050 = vpop.f32.mrb[0].mxu0
      %v4051 = vpop.f32.mrb[0].mxu0
      %v4052 = vadd.f32 %v3924, %v4051
      %v4053 = vpop.f32.mrb[0].mxu0
      %4054 = vmatprep.mubr.bf16.mxu0 0
      %4055 = vmatmul.mubr.bf16.gmra.mrb[0].mxu0 %v3901
      %v4056 = vpop.f32.mrb[0].mxu0
      %v4057 = vadd.f32 %v3924, %v4056
      %v4058 = vpop.f32.mrb[0].mxu0
      %v4059 = vpop.f32.mrb[0].mxu0
      %v4060 = vadd.f32 %v3924, %v4059
      %v4061 = vpop.f32.mrb[0].mxu0
      %4062 = vmatprep.mubr.bf16.mxu0 0
      %4063 = vmatmul.mubr.bf16.gmra.mrb[0].mxu0 %v3902
      %v4064 = vpop.f32.mrb[0].mxu0
      %v4065 = vadd.f32 %v3924, %v4064
      %v4066 = vpop.f32.mrb[0].mxu0
      %v4067 = vpop.f32.mrb[0].mxu0
      %v4068 = vadd.f32 %v3924, %v4067
      %v4069 = vpop.f32.mrb[0].mxu0
      %4070 = vdwg.mxu0
      %v4071 = vpack.c.bf16 %v4012, %v4009
      %v4072 = vpack.c.bf16 %v4020, %v4017
      %v4073 = vpack.c.bf16 %v4028, %v4025
      %v4074 = vpack.c.bf16 %v4036, %v4033
      %v4075 = vpack.c.bf16 %v4044, %v4041
      %v4076 = vpack.c.bf16 %v4052, %v4049
      %v4077 = vpack.c.bf16 %v4060, %v4057
      %v4078 = vpack.c.bf16 %v4068, %v4065
      %v4087 = vunpack.c.l.b16 %v4071
      %v4088 = vunpack.c.h.b16 %v4071
      %v4089 = vunpack.c.l.b16 %v4072
      %v4090 = vunpack.c.h.b16 %v4072
      %v4091 = vunpack.c.l.b16 %v4073
      %v4092 = vunpack.c.h.b16 %v4073
      %v4093 = vunpack.c.l.b16 %v4074
      %v4094 = vunpack.c.h.b16 %v4074
      %v4095 = vunpack.c.l.b16 %v4075
      %v4096 = vunpack.c.h.b16 %v4075
      %v4097 = vunpack.c.l.b16 %v4076
      %v4098 = vunpack.c.h.b16 %v4076
      %v4099 = vunpack.c.l.b16 %v4077
      %v4100 = vunpack.c.h.b16 %v4077
      %v4101 = vunpack.c.l.b16 %v4078
      %v4102 = vunpack.c.h.b16 %v4078
      %v4103 = vpack.c.b16 %v4087, %v4087
      %v4104 = vpack.c.b16 %v4088, %v4088
      %v4105 = vpack.c.b16 %v4089, %v4089
      %v4106 = vpack.c.b16 %v4090, %v4090
      %v4107 = vpack.c.b16 %v4091, %v4091
      %v4108 = vpack.c.b16 %v4092, %v4092
      %v4109 = vpack.c.b16 %v4093, %v4093
      %v4110 = vpack.c.b16 %v4094, %v4094
      %v4111 = vpack.c.b16 %v4095, %v4095
      %v4112 = vpack.c.b16 %v4096, %v4096
      %v4113 = vpack.c.b16 %v4097, %v4097
      %v4114 = vpack.c.b16 %v4098, %v4098
      %v4115 = vpack.c.b16 %v4099, %v4099
      %v4116 = vpack.c.b16 %v4100, %v4100
      %v4117 = vpack.c.b16 %v4101, %v4101
      %v4118 = vpack.c.b16 %v4102, %v4102
      %4135 = vst [vmem:[%s391] sm:$0xf] %v4103
      %4136 = vst [vmem:[%s391 + $0x4] sm:$0xf] %v4104
      %4137 = vst [vmem:[%s391 + $0x8] sm:$0xf] %v4105
      %4138 = vst [vmem:[%s391 + $0xc] sm:$0xf] %v4106
      %4139 = vst [vmem:[%s391 + $0x10] sm:$0xf] %v4107
      %4140 = vst [vmem:[%s391 + $0x14] sm:$0xf] %v4108
      %4141 = vst [vmem:[%s391 + $0x18] sm:$0xf] %v4109
      %4142 = vst [vmem:[%s391 + $0x1c] sm:$0xf] %v4110
      %4143 = vst [vmem:[%s391 + $0x20] sm:$0xf] %v4111
      %4144 = vst [vmem:[%s391 + $0x24] sm:$0xf] %v4112
      %4145 = vst [vmem:[%s391 + $0x28] sm:$0xf] %v4113
      %4146 = vst [vmem:[%s391 + $0x2c] sm:$0xf] %v4114
      %4147 = vst [vmem:[%s391 + $0x30] sm:$0xf] %v4115
      %4148 = vst [vmem:[%s391 + $0x34] sm:$0xf] %v4116
      %4149 = vst [vmem:[%s391 + $0x38] sm:$0xf] %v4117
      %4150 = vst [vmem:[%s391 + $0x3c] sm:$0xf] %v4118
      %s4151 = smul.u32 16, %s22
      %p4152 = scmp.lt.s32.totalorder %s4151, 63
      %s4153 = scalar_select %p4152, %s4151, 63
      %s4154 = smul.addr %s4153, 4
      %s4155 = scalar_lea.vmem %s11, %s4154
      // Predicated region
      $region65: #{_lambda_.1} parent=63 // pred_check
        %p4156 = pneg %p276
      $region66: #{_lambda_.1} parent=63 // pred_check_branch
        %4158 = sbr.rel (%p4156) target = $region68
      $region67: #{_lambda_.1} parent=63 // pred_region
        %s4159 = smul.u32 16, %s22
      $region68: #{_lambda_.1} parent=63 // pred_fallthru
        _
    $region64: #{_lambda_.1} parent=5 // pred_fallthru
      _
    %p4160 = scmp.le.s32.totalorder 2, %s17
    // Predicated region
    $region69: #{_lambda_.1} parent=5 // pred_check
      %p4161 = pneg %p4160
    $region70: #{_lambda_.1} parent=5 // pred_check_branch
      %4163 = sbr.rel (%p4161) target = $region72
    $region71: #{_lambda_.1} parent=5 // pred_region
      %s4164 = ssub.s32 %s17, 2
      // Predicated region
      $region73: #{_lambda_.1} parent=71 // pred_check
        %p4165 = pneg %p282
      $region74: #{_lambda_.1} parent=71 // pred_check_branch
        %4167 = sbr.rel (%p4165) target = $region76
      $region75: #{_lambda_.1} parent=71 // pred_region
        %s4168 = smul.u32 16, %s23
        %p4169 = scmp.lt.s32.totalorder %s4168, 63
        %s4170 = scalar_select %p4169, %s4168, 63
        %s4171 = smul.addr %s4170, 4
        %s4172 = scalar_lea.vmem %s11, %s4171
      $region76: #{_lambda_.1} parent=71 // pred_fallthru
        _
    $region72: #{_lambda_.1} parent=5 // pred_fallthru
      _
  $region6: #{_lambda_.1} parent=0 // loop_footer
    %s21 = sadd.s32 1, %s17
  $region7: #{_lambda_.1} parent=0 // loop_footer_branch
    %16 = sbr.rel target = $region3
  $region8: #{_lambda_.1} parent=0 // loop_exit
    _

</llo_original>
